<compile_context>
chip_gen: v7x
topology: tpu7x:2x2x1
jax: 0.10.0
libtpu: 0.0.40
codegen_flags: <defaults>
</compile_context>

<pallas_src>
import math
from functools import partial

import jax
import jax.numpy as jnp
from jax import lax
from jax.experimental import pallas as pl
from jax.experimental.pallas import tpu as pltpu


def _kwinners(y, k, *, global_threshold):
    """Keep the k largest entries of `y` (globally over the whole array when
    global_threshold=True, else independently per row); zero the rest.

    Exact threshold via a fixed 32-step radix bisection on the
    order-preserving int32 image of float32 -> cost independent of k.
    Ties at the threshold value are all kept (differs from torch.topk scatter
    only for bit-identical values).  `k` is static.
    """
    if k <= 0:                       # torch KWinners with k == 0 -> all zeros
        return jnp.zeros_like(y)
    n = y.size if global_threshold else y.shape[-1]
    if k >= n:                       # keep everything
        return y

    bits = pltpu.bitcast(y, jnp.int32)
    # Monotone (order-preserving) int32 key: flip magnitude bits of negatives.
    flip = jnp.where(bits < 0, jnp.int32(0x7FFFFFFF), jnp.int32(0))
    skey = bits ^ flip

    rows = 1 if global_threshold else y.shape[0]

    def count_ge(c):                 # #elements per row (or total) with key >= c
        cnt = jnp.sum((skey >= c).astype(jnp.int32), axis=-1, keepdims=True)
        if global_threshold:
            cnt = jnp.sum(cnt, axis=0, keepdims=True)
        return cnt

    zero = jnp.zeros((rows, 1), jnp.int32)
    int_min = jnp.full((rows, 1), jnp.int32(-(2 ** 31)))
    # Decide the sign bit of the threshold first (signed keys), then greedily
    # set the 31 magnitude bits MSB -> LSB.  32 fixed passes, k-independent.
    thr = jnp.where(count_ge(zero) >= k, zero, int_min)
    for b in range(30, -1, -1):
        cand = thr | jnp.int32(1 << b)
        thr = jnp.where(count_ge(cand) >= k, cand, thr)

    return jnp.where(skey >= thr, y, jnp.zeros_like(y))


def _nmnet_fused_kernel(x_ref, w1_ref, b1_ref, w2_ref, b2_ref, o_ref, *,
                        z_dim, k1, k2, use_relu):
    """Fused forward: fc1 -> KWinners -> fc2 -> (relu | KWinners).

    x_ref  : SMEM (z_dim,)            latent vector
    w1_ref : VMEM (z_dim, s0, z_dim)  fc1 weight, pre-permuted so that
                                      fc1(x).reshape(s0, z_dim) == b1 + sum_j x[j]*w1[j]
    b1_ref : VMEM (s0, z_dim)
    w2_ref : VMEM (z_dim, s1)         fc2 weight, pre-transposed
    b2_ref : VMEM (1, s1)
    o_ref  : VMEM (s0, s1)
    """
    # fc1 as an unrolled VPU GEMV (an M=1 MXU matmul would waste 255/256 rows);
    # the torch (1, n1) -> (s0, z_dim) reshape is folded into the host-side
    # weight permutation, so no in-kernel relayout is needed.
    h = b1_ref[...]
    for j in range(z_dim):                       # z_dim is small & static
        h = h + x_ref[j] * w1_ref[j]
    # act1: KWinners over the whole fc1 activation vector (global threshold).
    h = _kwinners(h, k1, global_threshold=True)
    # fc2 on the MXU.
    y = jnp.dot(h, w2_ref[...], preferred_element_type=jnp.float32) + b2_ref[...]
    # act2 (static, shape-based branch as in the torch module).
    if use_relu:
        y = jnp.maximum(y, 0.0)
    else:
        y = _kwinners(y, k2, global_threshold=False)   # per-row KWinners
    o_ref[...] = y


class NMNetKWinnersPallas:
    """Pallas re-implementation of NMNetKWinners.forward (fresh-init state)."""

    def __init__(self, weight_shape, z_dim, percent_on=0.3, *, key):
        self.original_shape = tuple(int(s) for s in weight_shape)
        if len(self.original_shape) == 1:
            self.weight_shape = (1,) + self.original_shape
        else:
            self.weight_shape = tuple(self.original_shape[::-1])
        self.z_dim = int(z_dim)
        s0, s1 = int(self.weight_shape[0]), int(self.weight_shape[1])
        self.s0, self.s1 = s0, s1
        self.n1 = self.z_dim * s0
        self.k1 = int(round(self.n1 * percent_on))   # KWinners: k = round(n * percent_on)
        self.k2 = int(round(s1 * percent_on))
        self.use_relu = (s0 < 5) and (s1 < 5)        # static, shape-based branch

        # Deterministic torch-Linear-style init: U(-1/sqrt(fan_in), 1/sqrt(fan_in)).
        k1w, k1b, k2w, k2b = jax.random.split(key, 4)
        bound = 1.0 / math.sqrt(self.z_dim)
        self.w1 = jax.random.uniform(k1w, (self.n1, self.z_dim), jnp.float32, -bound, bound)
        self.b1 = jax.random.uniform(k1b, (self.n1,), jnp.float32, -bound, bound)
        self.w2 = jax.random.uniform(k2w, (s1, self.z_dim), jnp.float32, -bound, bound)
        self.b2 = jax.random.uniform(k2b, (s1,), jnp.float32, -bound, bound)

        # Pre-arrange parameters ONCE (previously a full weight transpose /
        # bias reshape was paid on every forward call):
        #   w1_k[j, r, c] = w1[r*z_dim + c, j]
        # so that fc1(x).reshape(s0, z_dim) == b1_2d + sum_j x[j] * w1_k[j].
        self.w1_k = jnp.transpose(self.w1.reshape(s0, self.z_dim, self.z_dim), (2, 0, 1))
        self.b1_2d = self.b1.reshape(s0, self.z_dim)
        self.w2_t = self.w2.T                        # (z_dim, s1)
        self.b2_row = self.b2.reshape(1, s1)

        # One fused pallas_call for the whole forward pass.
        # TODO(synk): for n1 too large for VMEM, fc1 needs a grid over the n1
        # axis (>=512-wide double-buffered weight tiles) plus a two-pass /
        # streaming global-KWinners threshold; the generated-weight shapes this
        # module targets are small, so the whole problem fits in one block.
        vmem = pl.BlockSpec(memory_space=pltpu.MemorySpace.VMEM)
        smem = pl.BlockSpec(memory_space=pltpu.MemorySpace.SMEM)
        self._fwd = pl.pallas_call(
            partial(_nmnet_fused_kernel, z_dim=self.z_dim, k1=self.k1,
                    k2=self.k2, use_relu=self.use_relu),
            out_shape=jax.ShapeDtypeStruct((s0, s1), jnp.float32),
            in_specs=[smem, vmem, vmem, vmem, vmem],
            out_specs=vmem,
        )

        # TODO(synk): training-time duty-cycle update / boost-factor state of
        # KWinners is stateful across steps and not represented in this
        # single-forward kernel (at fresh init boost factors are uniform).

    def __call__(self, x):
        x = jnp.asarray(x, jnp.float32).reshape(self.z_dim)
        y = self._fwd(x, self.w1_k, self.b1_2d, self.w2_t, self.b2_row)
        return y.reshape(self.original_shape)

    # ---------------- pure-JAX reference (for the self-test) ----------------
    def reference(self, x):
        def kw(y, k):
            if k <= 0:
                return jnp.zeros_like(y)
            if k >= y.shape[-1]:
                return y
            thr = jnp.sort(y, axis=-1)[:, y.shape[-1] - k][:, None]
            return jnp.where(y >= thr, y, 0.0)

        x = jnp.asarray(x, jnp.float32).reshape(self.z_dim)
        h = jnp.dot(x, self.w1.T, precision=lax.Precision.HIGHEST) + self.b1
        h = kw(h[None, :], self.k1)
        a = h.reshape(self.s0, self.z_dim)
        y = jnp.dot(a, self.w2.T, precision=lax.Precision.HIGHEST) + self.b2
        y = jnp.maximum(y, 0.0) if self.use_relu else kw(y, self.k2)
        return y.reshape(self.original_shape)


if __name__ == "__main__":
    key = jax.random.PRNGKey(0)
    k_params, k_x = jax.random.split(key)

    z_dim = 8
    original_shape = (16, 32)       # e.g. a Linear(32 -> 16) weight to be generated

    net = NMNetKWinnersPallas(original_shape, z_dim, percent_on=0.3, key=k_params)
    x = jax.random.normal(k_x, (z_dim,), dtype=jnp.float32)

    out = jax.block_until_ready(net(x))

    assert out.shape == original_shape, out.shape
    assert out.dtype == jnp.float32, out.dtype
    assert bool(jnp.all(jnp.isfinite(out)))

    # Tolerant reference check: MXU rounding can (very rarely) flip a winner
    # sitting exactly at the KWinners threshold, so check the element-wise
    # mismatch rate instead of strict allclose.
    ref = net.reference(x)
    bad = jnp.abs(out - ref) > (1e-3 + 1e-3 * jnp.abs(ref))
    frac_bad = float(jnp.mean(bad.astype(jnp.float32)))
    assert frac_bad < 0.05, frac_bad

    print("KERNEL_OK")
</pallas_src>

<mosaic_0001>
module attributes {stable_mosaic.version = 11 : i64} {
  func.func @_nmnet_fused_kernel(%arg0: memref<8xf32, #tpu.memory_space<smem>>, %arg1: memref<8x32x8xf32, #tpu.memory_space<vmem>>, %arg2: memref<32x8xf32, #tpu.memory_space<vmem>>, %arg3: memref<8x16xf32, #tpu.memory_space<vmem>>, %arg4: memref<1x16xf32, #tpu.memory_space<vmem>>, %arg5: memref<32x16xf32, #tpu.memory_space<vmem>>) attributes {dimension_semantics = [], scalar_prefetch = 0 : i64, scratch_operands = 0 : i64, tpu.core_type = #tpu.core_type<tc>} {
    %c0 = arith.constant 0 : index
    %c0_0 = arith.constant 0 : index
    %0 = vector.load %arg2[%c0, %c0_0] : memref<32x8xf32, #tpu.memory_space<vmem>>, vector<32x8xf32>
    %c0_1 = arith.constant 0 : index
    %1 = memref.load %arg0[%c0_1] : memref<8xf32, #tpu.memory_space<smem>>
    %c0_2 = arith.constant 0 : index
    %c0_3 = arith.constant 0 : index
    %c0_4 = arith.constant 0 : index
    %2 = vector.load %arg1[%c0_2, %c0_3, %c0_4] : memref<8x32x8xf32, #tpu.memory_space<vmem>>, vector<1x32x8xf32>
    %3 = vector.shape_cast %2 : vector<1x32x8xf32> to vector<32x8xf32>
    %4 = vector.broadcast %1 : f32 to vector<32x8xf32>
    %5 = arith.mulf %4, %3 : vector<32x8xf32>
    %6 = arith.addf %0, %5 : vector<32x8xf32>
    %c1 = arith.constant 1 : index
    %7 = memref.load %arg0[%c1] : memref<8xf32, #tpu.memory_space<smem>>
    %c1_5 = arith.constant 1 : index
    %c0_6 = arith.constant 0 : index
    %c0_7 = arith.constant 0 : index
    %8 = vector.load %arg1[%c1_5, %c0_6, %c0_7] : memref<8x32x8xf32, #tpu.memory_space<vmem>>, vector<1x32x8xf32>
    %9 = vector.shape_cast %8 : vector<1x32x8xf32> to vector<32x8xf32>
    %10 = vector.broadcast %7 : f32 to vector<32x8xf32>
    %11 = arith.mulf %10, %9 : vector<32x8xf32>
    %12 = arith.addf %6, %11 : vector<32x8xf32>
    %c2 = arith.constant 2 : index
    %13 = memref.load %arg0[%c2] : memref<8xf32, #tpu.memory_space<smem>>
    %c2_8 = arith.constant 2 : index
    %c0_9 = arith.constant 0 : index
    %c0_10 = arith.constant 0 : index
    %14 = vector.load %arg1[%c2_8, %c0_9, %c0_10] : memref<8x32x8xf32, #tpu.memory_space<vmem>>, vector<1x32x8xf32>
    %15 = vector.shape_cast %14 : vector<1x32x8xf32> to vector<32x8xf32>
    %16 = vector.broadcast %13 : f32 to vector<32x8xf32>
    %17 = arith.mulf %16, %15 : vector<32x8xf32>
    %18 = arith.addf %12, %17 : vector<32x8xf32>
    %c3 = arith.constant 3 : index
    %19 = memref.load %arg0[%c3] : memref<8xf32, #tpu.memory_space<smem>>
    %c3_11 = arith.constant 3 : index
    %c0_12 = arith.constant 0 : index
    %c0_13 = arith.constant 0 : index
    %20 = vector.load %arg1[%c3_11, %c0_12, %c0_13] : memref<8x32x8xf32, #tpu.memory_space<vmem>>, vector<1x32x8xf32>
    %21 = vector.shape_cast %20 : vector<1x32x8xf32> to vector<32x8xf32>
    %22 = vector.broadcast %19 : f32 to vector<32x8xf32>
    %23 = arith.mulf %22, %21 : vector<32x8xf32>
    %24 = arith.addf %18, %23 : vector<32x8xf32>
    %c4 = arith.constant 4 : index
    %25 = memref.load %arg0[%c4] : memref<8xf32, #tpu.memory_space<smem>>
    %c4_14 = arith.constant 4 : index
    %c0_15 = arith.constant 0 : index
    %c0_16 = arith.constant 0 : index
    %26 = vector.load %arg1[%c4_14, %c0_15, %c0_16] : memref<8x32x8xf32, #tpu.memory_space<vmem>>, vector<1x32x8xf32>
    %27 = vector.shape_cast %26 : vector<1x32x8xf32> to vector<32x8xf32>
    %28 = vector.broadcast %25 : f32 to vector<32x8xf32>
    %29 = arith.mulf %28, %27 : vector<32x8xf32>
    %30 = arith.addf %24, %29 : vector<32x8xf32>
    %c5 = arith.constant 5 : index
    %31 = memref.load %arg0[%c5] : memref<8xf32, #tpu.memory_space<smem>>
    %c5_17 = arith.constant 5 : index
    %c0_18 = arith.constant 0 : index
    %c0_19 = arith.constant 0 : index
    %32 = vector.load %arg1[%c5_17, %c0_18, %c0_19] : memref<8x32x8xf32, #tpu.memory_space<vmem>>, vector<1x32x8xf32>
    %33 = vector.shape_cast %32 : vector<1x32x8xf32> to vector<32x8xf32>
    %34 = vector.broadcast %31 : f32 to vector<32x8xf32>
    %35 = arith.mulf %34, %33 : vector<32x8xf32>
    %36 = arith.addf %30, %35 : vector<32x8xf32>
    %c6 = arith.constant 6 : index
    %37 = memref.load %arg0[%c6] : memref<8xf32, #tpu.memory_space<smem>>
    %c6_20 = arith.constant 6 : index
    %c0_21 = arith.constant 0 : index
    %c0_22 = arith.constant 0 : index
    %38 = vector.load %arg1[%c6_20, %c0_21, %c0_22] : memref<8x32x8xf32, #tpu.memory_space<vmem>>, vector<1x32x8xf32>
    %39 = vector.shape_cast %38 : vector<1x32x8xf32> to vector<32x8xf32>
    %40 = vector.broadcast %37 : f32 to vector<32x8xf32>
    %41 = arith.mulf %40, %39 : vector<32x8xf32>
    %42 = arith.addf %36, %41 : vector<32x8xf32>
    %c7 = arith.constant 7 : index
    %43 = memref.load %arg0[%c7] : memref<8xf32, #tpu.memory_space<smem>>
    %c7_23 = arith.constant 7 : index
    %c0_24 = arith.constant 0 : index
    %c0_25 = arith.constant 0 : index
    %44 = vector.load %arg1[%c7_23, %c0_24, %c0_25] : memref<8x32x8xf32, #tpu.memory_space<vmem>>, vector<1x32x8xf32>
    %45 = vector.shape_cast %44 : vector<1x32x8xf32> to vector<32x8xf32>
    %46 = vector.broadcast %43 : f32 to vector<32x8xf32>
    %47 = arith.mulf %46, %45 : vector<32x8xf32>
    %48 = arith.addf %42, %47 : vector<32x8xf32>
    %49 = tpu.bitcast %48 : vector<32x8xf32> -> vector<32x8xi32>
    %c0_i32 = arith.constant 0 : i32
    %50 = vector.broadcast %c0_i32 : i32 to vector<32x8xi32>
    %51 = arith.cmpi slt, %49, %50 : vector<32x8xi32>
    %c2147483647_i32 = arith.constant 2147483647 : i32
    %c0_i32_26 = arith.constant 0 : i32
    %52 = vector.broadcast %c2147483647_i32 : i32 to vector<32x8xi32>
    %53 = vector.broadcast %c0_i32_26 : i32 to vector<32x8xi32>
    %54 = arith.select %51, %52, %53 : vector<32x8xi1>, vector<32x8xi32>
    %55 = arith.xori %49, %54 : vector<32x8xi32>
    %c0_i32_27 = arith.constant 0 : i32
    %56 = vector.broadcast %c0_i32_27 : i32 to vector<1x1xi32>
    %c-2147483648_i32 = arith.constant -2147483648 : i32
    %57 = vector.broadcast %c-2147483648_i32 : i32 to vector<1x1xi32>
    %58 = vector.broadcast %56 : vector<1x1xi32> to vector<32x8xi32>
    %59 = arith.cmpi sge, %55, %58 : vector<32x8xi32>
    %60 = arith.extui %59 : vector<32x8xi1> to vector<32x8xi32>
    %cst = arith.constant dense<0> : vector<32xi32>
    %61 = vector.multi_reduction <add>, %60, %cst [1] : vector<32x8xi32> to vector<32xi32>
    %62 = vector.shape_cast %61 : vector<32xi32> to vector<32x1xi32>
    %cst_28 = arith.constant dense<0> : vector<1xi32>
    %63 = vector.multi_reduction <add>, %62, %cst_28 [0] : vector<32x1xi32> to vector<1xi32>
    %64 = vector.shape_cast %63 : vector<1xi32> to vector<1x1xi32>
    %c77_i32 = arith.constant 77 : i32
    %65 = vector.broadcast %c77_i32 : i32 to vector<1x1xi32>
    %66 = arith.cmpi sge, %64, %65 : vector<1x1xi32>
    %67 = arith.select %66, %56, %57 : vector<1x1xi1>, vector<1x1xi32>
    %c1073741824_i32 = arith.constant 1073741824 : i32
    %68 = vector.broadcast %c1073741824_i32 : i32 to vector<1x1xi32>
    %69 = arith.ori %67, %68 : vector<1x1xi32>
    %70 = vector.broadcast %69 : vector<1x1xi32> to vector<32x8xi32>
    %71 = arith.cmpi sge, %55, %70 : vector<32x8xi32>
    %72 = arith.extui %71 : vector<32x8xi1> to vector<32x8xi32>
    %cst_29 = arith.constant dense<0> : vector<32xi32>
    %73 = vector.multi_reduction <add>, %72, %cst_29 [1] : vector<32x8xi32> to vector<32xi32>
    %74 = vector.shape_cast %73 : vector<32xi32> to vector<32x1xi32>
    %cst_30 = arith.constant dense<0> : vector<1xi32>
    %75 = vector.multi_reduction <add>, %74, %cst_30 [0] : vector<32x1xi32> to vector<1xi32>
    %76 = vector.shape_cast %75 : vector<1xi32> to vector<1x1xi32>
    %c77_i32_31 = arith.constant 77 : i32
    %77 = vector.broadcast %c77_i32_31 : i32 to vector<1x1xi32>
    %78 = arith.cmpi sge, %76, %77 : vector<1x1xi32>
    %79 = arith.select %78, %69, %67 : vector<1x1xi1>, vector<1x1xi32>
    %c536870912_i32 = arith.constant 536870912 : i32
    %80 = vector.broadcast %c536870912_i32 : i32 to vector<1x1xi32>
    %81 = arith.ori %79, %80 : vector<1x1xi32>
    %82 = vector.broadcast %81 : vector<1x1xi32> to vector<32x8xi32>
    %83 = arith.cmpi sge, %55, %82 : vector<32x8xi32>
    %84 = arith.extui %83 : vector<32x8xi1> to vector<32x8xi32>
    %cst_32 = arith.constant dense<0> : vector<32xi32>
    %85 = vector.multi_reduction <add>, %84, %cst_32 [1] : vector<32x8xi32> to vector<32xi32>
    %86 = vector.shape_cast %85 : vector<32xi32> to vector<32x1xi32>
    %cst_33 = arith.constant dense<0> : vector<1xi32>
    %87 = vector.multi_reduction <add>, %86, %cst_33 [0] : vector<32x1xi32> to vector<1xi32>
    %88 = vector.shape_cast %87 : vector<1xi32> to vector<1x1xi32>
    %c77_i32_34 = arith.constant 77 : i32
    %89 = vector.broadcast %c77_i32_34 : i32 to vector<1x1xi32>
    %90 = arith.cmpi sge, %88, %89 : vector<1x1xi32>
    %91 = arith.select %90, %81, %79 : vector<1x1xi1>, vector<1x1xi32>
    %c268435456_i32 = arith.constant 268435456 : i32
    %92 = vector.broadcast %c268435456_i32 : i32 to vector<1x1xi32>
    %93 = arith.ori %91, %92 : vector<1x1xi32>
    %94 = vector.broadcast %93 : vector<1x1xi32> to vector<32x8xi32>
    %95 = arith.cmpi sge, %55, %94 : vector<32x8xi32>
    %96 = arith.extui %95 : vector<32x8xi1> to vector<32x8xi32>
    %cst_35 = arith.constant dense<0> : vector<32xi32>
    %97 = vector.multi_reduction <add>, %96, %cst_35 [1] : vector<32x8xi32> to vector<32xi32>
    %98 = vector.shape_cast %97 : vector<32xi32> to vector<32x1xi32>
    %cst_36 = arith.constant dense<0> : vector<1xi32>
    %99 = vector.multi_reduction <add>, %98, %cst_36 [0] : vector<32x1xi32> to vector<1xi32>
    %100 = vector.shape_cast %99 : vector<1xi32> to vector<1x1xi32>
    %c77_i32_37 = arith.constant 77 : i32
    %101 = vector.broadcast %c77_i32_37 : i32 to vector<1x1xi32>
    %102 = arith.cmpi sge, %100, %101 : vector<1x1xi32>
    %103 = arith.select %102, %93, %91 : vector<1x1xi1>, vector<1x1xi32>
    %c134217728_i32 = arith.constant 134217728 : i32
    %104 = vector.broadcast %c134217728_i32 : i32 to vector<1x1xi32>
    %105 = arith.ori %103, %104 : vector<1x1xi32>
    %106 = vector.broadcast %105 : vector<1x1xi32> to vector<32x8xi32>
    %107 = arith.cmpi sge, %55, %106 : vector<32x8xi32>
    %108 = arith.extui %107 : vector<32x8xi1> to vector<32x8xi32>
    %cst_38 = arith.constant dense<0> : vector<32xi32>
    %109 = vector.multi_reduction <add>, %108, %cst_38 [1] : vector<32x8xi32> to vector<32xi32>
    %110 = vector.shape_cast %109 : vector<32xi32> to vector<32x1xi32>
    %cst_39 = arith.constant dense<0> : vector<1xi32>
    %111 = vector.multi_reduction <add>, %110, %cst_39 [0] : vector<32x1xi32> to vector<1xi32>
    %112 = vector.shape_cast %111 : vector<1xi32> to vector<1x1xi32>
    %c77_i32_40 = arith.constant 77 : i32
    %113 = vector.broadcast %c77_i32_40 : i32 to vector<1x1xi32>
    %114 = arith.cmpi sge, %112, %113 : vector<1x1xi32>
    %115 = arith.select %114, %105, %103 : vector<1x1xi1>, vector<1x1xi32>
    %c67108864_i32 = arith.constant 67108864 : i32
    %116 = vector.broadcast %c67108864_i32 : i32 to vector<1x1xi32>
    %117 = arith.ori %115, %116 : vector<1x1xi32>
    %118 = vector.broadcast %117 : vector<1x1xi32> to vector<32x8xi32>
    %119 = arith.cmpi sge, %55, %118 : vector<32x8xi32>
    %120 = arith.extui %119 : vector<32x8xi1> to vector<32x8xi32>
    %cst_41 = arith.constant dense<0> : vector<32xi32>
    %121 = vector.multi_reduction <add>, %120, %cst_41 [1] : vector<32x8xi32> to vector<32xi32>
    %122 = vector.shape_cast %121 : vector<32xi32> to vector<32x1xi32>
    %cst_42 = arith.constant dense<0> : vector<1xi32>
    %123 = vector.multi_reduction <add>, %122, %cst_42 [0] : vector<32x1xi32> to vector<1xi32>
    %124 = vector.shape_cast %123 : vector<1xi32> to vector<1x1xi32>
    %c77_i32_43 = arith.constant 77 : i32
    %125 = vector.broadcast %c77_i32_43 : i32 to vector<1x1xi32>
    %126 = arith.cmpi sge, %124, %125 : vector<1x1xi32>
    %127 = arith.select %126, %117, %115 : vector<1x1xi1>, vector<1x1xi32>
    %c33554432_i32 = arith.constant 33554432 : i32
    %128 = vector.broadcast %c33554432_i32 : i32 to vector<1x1xi32>
    %129 = arith.ori %127, %128 : vector<1x1xi32>
    %130 = vector.broadcast %129 : vector<1x1xi32> to vector<32x8xi32>
    %131 = arith.cmpi sge, %55, %130 : vector<32x8xi32>
    %132 = arith.extui %131 : vector<32x8xi1> to vector<32x8xi32>
    %cst_44 = arith.constant dense<0> : vector<32xi32>
    %133 = vector.multi_reduction <add>, %132, %cst_44 [1] : vector<32x8xi32> to vector<32xi32>
    %134 = vector.shape_cast %133 : vector<32xi32> to vector<32x1xi32>
    %cst_45 = arith.constant dense<0> : vector<1xi32>
    %135 = vector.multi_reduction <add>, %134, %cst_45 [0] : vector<32x1xi32> to vector<1xi32>
    %136 = vector.shape_cast %135 : vector<1xi32> to vector<1x1xi32>
    %c77_i32_46 = arith.constant 77 : i32
    %137 = vector.broadcast %c77_i32_46 : i32 to vector<1x1xi32>
    %138 = arith.cmpi sge, %136, %137 : vector<1x1xi32>
    %139 = arith.select %138, %129, %127 : vector<1x1xi1>, vector<1x1xi32>
    %c16777216_i32 = arith.constant 16777216 : i32
    %140 = vector.broadcast %c16777216_i32 : i32 to vector<1x1xi32>
    %141 = arith.ori %139, %140 : vector<1x1xi32>
    %142 = vector.broadcast %141 : vector<1x1xi32> to vector<32x8xi32>
    %143 = arith.cmpi sge, %55, %142 : vector<32x8xi32>
    %144 = arith.extui %143 : vector<32x8xi1> to vector<32x8xi32>
    %cst_47 = arith.constant dense<0> : vector<32xi32>
    %145 = vector.multi_reduction <add>, %144, %cst_47 [1] : vector<32x8xi32> to vector<32xi32>
    %146 = vector.shape_cast %145 : vector<32xi32> to vector<32x1xi32>
    %cst_48 = arith.constant dense<0> : vector<1xi32>
    %147 = vector.multi_reduction <add>, %146, %cst_48 [0] : vector<32x1xi32> to vector<1xi32>
    %148 = vector.shape_cast %147 : vector<1xi32> to vector<1x1xi32>
    %c77_i32_49 = arith.constant 77 : i32
    %149 = vector.broadcast %c77_i32_49 : i32 to vector<1x1xi32>
    %150 = arith.cmpi sge, %148, %149 : vector<1x1xi32>
    %151 = arith.select %150, %141, %139 : vector<1x1xi1>, vector<1x1xi32>
    %c8388608_i32 = arith.constant 8388608 : i32
    %152 = vector.broadcast %c8388608_i32 : i32 to vector<1x1xi32>
    %153 = arith.ori %151, %152 : vector<1x1xi32>
    %154 = vector.broadcast %153 : vector<1x1xi32> to vector<32x8xi32>
    %155 = arith.cmpi sge, %55, %154 : vector<32x8xi32>
    %156 = arith.extui %155 : vector<32x8xi1> to vector<32x8xi32>
    %cst_50 = arith.constant dense<0> : vector<32xi32>
    %157 = vector.multi_reduction <add>, %156, %cst_50 [1] : vector<32x8xi32> to vector<32xi32>
    %158 = vector.shape_cast %157 : vector<32xi32> to vector<32x1xi32>
    %cst_51 = arith.constant dense<0> : vector<1xi32>
    %159 = vector.multi_reduction <add>, %158, %cst_51 [0] : vector<32x1xi32> to vector<1xi32>
    %160 = vector.shape_cast %159 : vector<1xi32> to vector<1x1xi32>
    %c77_i32_52 = arith.constant 77 : i32
    %161 = vector.broadcast %c77_i32_52 : i32 to vector<1x1xi32>
    %162 = arith.cmpi sge, %160, %161 : vector<1x1xi32>
    %163 = arith.select %162, %153, %151 : vector<1x1xi1>, vector<1x1xi32>
    %c4194304_i32 = arith.constant 4194304 : i32
    %164 = vector.broadcast %c4194304_i32 : i32 to vector<1x1xi32>
    %165 = arith.ori %163, %164 : vector<1x1xi32>
    %166 = vector.broadcast %165 : vector<1x1xi32> to vector<32x8xi32>
    %167 = arith.cmpi sge, %55, %166 : vector<32x8xi32>
    %168 = arith.extui %167 : vector<32x8xi1> to vector<32x8xi32>
    %cst_53 = arith.constant dense<0> : vector<32xi32>
    %169 = vector.multi_reduction <add>, %168, %cst_53 [1] : vector<32x8xi32> to vector<32xi32>
    %170 = vector.shape_cast %169 : vector<32xi32> to vector<32x1xi32>
    %cst_54 = arith.constant dense<0> : vector<1xi32>
    %171 = vector.multi_reduction <add>, %170, %cst_54 [0] : vector<32x1xi32> to vector<1xi32>
    %172 = vector.shape_cast %171 : vector<1xi32> to vector<1x1xi32>
    %c77_i32_55 = arith.constant 77 : i32
    %173 = vector.broadcast %c77_i32_55 : i32 to vector<1x1xi32>
    %174 = arith.cmpi sge, %172, %173 : vector<1x1xi32>
    %175 = arith.select %174, %165, %163 : vector<1x1xi1>, vector<1x1xi32>
    %c2097152_i32 = arith.constant 2097152 : i32
    %176 = vector.broadcast %c2097152_i32 : i32 to vector<1x1xi32>
    %177 = arith.ori %175, %176 : vector<1x1xi32>
    %178 = vector.broadcast %177 : vector<1x1xi32> to vector<32x8xi32>
    %179 = arith.cmpi sge, %55, %178 : vector<32x8xi32>
    %180 = arith.extui %179 : vector<32x8xi1> to vector<32x8xi32>
    %cst_56 = arith.constant dense<0> : vector<32xi32>
    %181 = vector.multi_reduction <add>, %180, %cst_56 [1] : vector<32x8xi32> to vector<32xi32>
    %182 = vector.shape_cast %181 : vector<32xi32> to vector<32x1xi32>
    %cst_57 = arith.constant dense<0> : vector<1xi32>
    %183 = vector.multi_reduction <add>, %182, %cst_57 [0] : vector<32x1xi32> to vector<1xi32>
    %184 = vector.shape_cast %183 : vector<1xi32> to vector<1x1xi32>
    %c77_i32_58 = arith.constant 77 : i32
    %185 = vector.broadcast %c77_i32_58 : i32 to vector<1x1xi32>
    %186 = arith.cmpi sge, %184, %185 : vector<1x1xi32>
    %187 = arith.select %186, %177, %175 : vector<1x1xi1>, vector<1x1xi32>
    %c1048576_i32 = arith.constant 1048576 : i32
    %188 = vector.broadcast %c1048576_i32 : i32 to vector<1x1xi32>
    %189 = arith.ori %187, %188 : vector<1x1xi32>
    %190 = vector.broadcast %189 : vector<1x1xi32> to vector<32x8xi32>
    %191 = arith.cmpi sge, %55, %190 : vector<32x8xi32>
    %192 = arith.extui %191 : vector<32x8xi1> to vector<32x8xi32>
    %cst_59 = arith.constant dense<0> : vector<32xi32>
    %193 = vector.multi_reduction <add>, %192, %cst_59 [1] : vector<32x8xi32> to vector<32xi32>
    %194 = vector.shape_cast %193 : vector<32xi32> to vector<32x1xi32>
    %cst_60 = arith.constant dense<0> : vector<1xi32>
    %195 = vector.multi_reduction <add>, %194, %cst_60 [0] : vector<32x1xi32> to vector<1xi32>
    %196 = vector.shape_cast %195 : vector<1xi32> to vector<1x1xi32>
    %c77_i32_61 = arith.constant 77 : i32
    %197 = vector.broadcast %c77_i32_61 : i32 to vector<1x1xi32>
    %198 = arith.cmpi sge, %196, %197 : vector<1x1xi32>
    %199 = arith.select %198, %189, %187 : vector<1x1xi1>, vector<1x1xi32>
    %c524288_i32 = arith.constant 524288 : i32
    %200 = vector.broadcast %c524288_i32 : i32 to vector<1x1xi32>
    %201 = arith.ori %199, %200 : vector<1x1xi32>
    %202 = vector.broadcast %201 : vector<1x1xi32> to vector<32x8xi32>
    %203 = arith.cmpi sge, %55, %202 : vector<32x8xi32>
    %204 = arith.extui %203 : vector<32x8xi1> to vector<32x8xi32>
    %cst_62 = arith.constant dense<0> : vector<32xi32>
    %205 = vector.multi_reduction <add>, %204, %cst_62 [1] : vector<32x8xi32> to vector<32xi32>
    %206 = vector.shape_cast %205 : vector<32xi32> to vector<32x1xi32>
    %cst_63 = arith.constant dense<0> : vector<1xi32>
    %207 = vector.multi_reduction <add>, %206, %cst_63 [0] : vector<32x1xi32> to vector<1xi32>
    %208 = vector.shape_cast %207 : vector<1xi32> to vector<1x1xi32>
    %c77_i32_64 = arith.constant 77 : i32
    %209 = vector.broadcast %c77_i32_64 : i32 to vector<1x1xi32>
    %210 = arith.cmpi sge, %208, %209 : vector<1x1xi32>
    %211 = arith.select %210, %201, %199 : vector<1x1xi1>, vector<1x1xi32>
    %c262144_i32 = arith.constant 262144 : i32
    %212 = vector.broadcast %c262144_i32 : i32 to vector<1x1xi32>
    %213 = arith.ori %211, %212 : vector<1x1xi32>
    %214 = vector.broadcast %213 : vector<1x1xi32> to vector<32x8xi32>
    %215 = arith.cmpi sge, %55, %214 : vector<32x8xi32>
    %216 = arith.extui %215 : vector<32x8xi1> to vector<32x8xi32>
    %cst_65 = arith.constant dense<0> : vector<32xi32>
    %217 = vector.multi_reduction <add>, %216, %cst_65 [1] : vector<32x8xi32> to vector<32xi32>
    %218 = vector.shape_cast %217 : vector<32xi32> to vector<32x1xi32>
    %cst_66 = arith.constant dense<0> : vector<1xi32>
    %219 = vector.multi_reduction <add>, %218, %cst_66 [0] : vector<32x1xi32> to vector<1xi32>
    %220 = vector.shape_cast %219 : vector<1xi32> to vector<1x1xi32>
    %c77_i32_67 = arith.constant 77 : i32
    %221 = vector.broadcast %c77_i32_67 : i32 to vector<1x1xi32>
    %222 = arith.cmpi sge, %220, %221 : vector<1x1xi32>
    %223 = arith.select %222, %213, %211 : vector<1x1xi1>, vector<1x1xi32>
    %c131072_i32 = arith.constant 131072 : i32
    %224 = vector.broadcast %c131072_i32 : i32 to vector<1x1xi32>
    %225 = arith.ori %223, %224 : vector<1x1xi32>
    %226 = vector.broadcast %225 : vector<1x1xi32> to vector<32x8xi32>
    %227 = arith.cmpi sge, %55, %226 : vector<32x8xi32>
    %228 = arith.extui %227 : vector<32x8xi1> to vector<32x8xi32>
    %cst_68 = arith.constant dense<0> : vector<32xi32>
    %229 = vector.multi_reduction <add>, %228, %cst_68 [1] : vector<32x8xi32> to vector<32xi32>
    %230 = vector.shape_cast %229 : vector<32xi32> to vector<32x1xi32>
    %cst_69 = arith.constant dense<0> : vector<1xi32>
    %231 = vector.multi_reduction <add>, %230, %cst_69 [0] : vector<32x1xi32> to vector<1xi32>
    %232 = vector.shape_cast %231 : vector<1xi32> to vector<1x1xi32>
    %c77_i32_70 = arith.constant 77 : i32
    %233 = vector.broadcast %c77_i32_70 : i32 to vector<1x1xi32>
    %234 = arith.cmpi sge, %232, %233 : vector<1x1xi32>
    %235 = arith.select %234, %225, %223 : vector<1x1xi1>, vector<1x1xi32>
    %c65536_i32 = arith.constant 65536 : i32
    %236 = vector.broadcast %c65536_i32 : i32 to vector<1x1xi32>
    %237 = arith.ori %235, %236 : vector<1x1xi32>
    %238 = vector.broadcast %237 : vector<1x1xi32> to vector<32x8xi32>
    %239 = arith.cmpi sge, %55, %238 : vector<32x8xi32>
    %240 = arith.extui %239 : vector<32x8xi1> to vector<32x8xi32>
    %cst_71 = arith.constant dense<0> : vector<32xi32>
    %241 = vector.multi_reduction <add>, %240, %cst_71 [1] : vector<32x8xi32> to vector<32xi32>
    %242 = vector.shape_cast %241 : vector<32xi32> to vector<32x1xi32>
    %cst_72 = arith.constant dense<0> : vector<1xi32>
    %243 = vector.multi_reduction <add>, %242, %cst_72 [0] : vector<32x1xi32> to vector<1xi32>
    %244 = vector.shape_cast %243 : vector<1xi32> to vector<1x1xi32>
    %c77_i32_73 = arith.constant 77 : i32
    %245 = vector.broadcast %c77_i32_73 : i32 to vector<1x1xi32>
    %246 = arith.cmpi sge, %244, %245 : vector<1x1xi32>
    %247 = arith.select %246, %237, %235 : vector<1x1xi1>, vector<1x1xi32>
    %c32768_i32 = arith.constant 32768 : i32
    %248 = vector.broadcast %c32768_i32 : i32 to vector<1x1xi32>
    %249 = arith.ori %247, %248 : vector<1x1xi32>
    %250 = vector.broadcast %249 : vector<1x1xi32> to vector<32x8xi32>
    %251 = arith.cmpi sge, %55, %250 : vector<32x8xi32>
    %252 = arith.extui %251 : vector<32x8xi1> to vector<32x8xi32>
    %cst_74 = arith.constant dense<0> : vector<32xi32>
    %253 = vector.multi_reduction <add>, %252, %cst_74 [1] : vector<32x8xi32> to vector<32xi32>
    %254 = vector.shape_cast %253 : vector<32xi32> to vector<32x1xi32>
    %cst_75 = arith.constant dense<0> : vector<1xi32>
    %255 = vector.multi_reduction <add>, %254, %cst_75 [0] : vector<32x1xi32> to vector<1xi32>
    %256 = vector.shape_cast %255 : vector<1xi32> to vector<1x1xi32>
    %c77_i32_76 = arith.constant 77 : i32
    %257 = vector.broadcast %c77_i32_76 : i32 to vector<1x1xi32>
    %258 = arith.cmpi sge, %256, %257 : vector<1x1xi32>
    %259 = arith.select %258, %249, %247 : vector<1x1xi1>, vector<1x1xi32>
    %c16384_i32 = arith.constant 16384 : i32
    %260 = vector.broadcast %c16384_i32 : i32 to vector<1x1xi32>
    %261 = arith.ori %259, %260 : vector<1x1xi32>
    %262 = vector.broadcast %261 : vector<1x1xi32> to vector<32x8xi32>
    %263 = arith.cmpi sge, %55, %262 : vector<32x8xi32>
    %264 = arith.extui %263 : vector<32x8xi1> to vector<32x8xi32>
    %cst_77 = arith.constant dense<0> : vector<32xi32>
    %265 = vector.multi_reduction <add>, %264, %cst_77 [1] : vector<32x8xi32> to vector<32xi32>
    %266 = vector.shape_cast %265 : vector<32xi32> to vector<32x1xi32>
    %cst_78 = arith.constant dense<0> : vector<1xi32>
    %267 = vector.multi_reduction <add>, %266, %cst_78 [0] : vector<32x1xi32> to vector<1xi32>
    %268 = vector.shape_cast %267 : vector<1xi32> to vector<1x1xi32>
    %c77_i32_79 = arith.constant 77 : i32
    %269 = vector.broadcast %c77_i32_79 : i32 to vector<1x1xi32>
    %270 = arith.cmpi sge, %268, %269 : vector<1x1xi32>
    %271 = arith.select %270, %261, %259 : vector<1x1xi1>, vector<1x1xi32>
    %c8192_i32 = arith.constant 8192 : i32
    %272 = vector.broadcast %c8192_i32 : i32 to vector<1x1xi32>
    %273 = arith.ori %271, %272 : vector<1x1xi32>
    %274 = vector.broadcast %273 : vector<1x1xi32> to vector<32x8xi32>
    %275 = arith.cmpi sge, %55, %274 : vector<32x8xi32>
    %276 = arith.extui %275 : vector<32x8xi1> to vector<32x8xi32>
    %cst_80 = arith.constant dense<0> : vector<32xi32>
    %277 = vector.multi_reduction <add>, %276, %cst_80 [1] : vector<32x8xi32> to vector<32xi32>
    %278 = vector.shape_cast %277 : vector<32xi32> to vector<32x1xi32>
    %cst_81 = arith.constant dense<0> : vector<1xi32>
    %279 = vector.multi_reduction <add>, %278, %cst_81 [0] : vector<32x1xi32> to vector<1xi32>
    %280 = vector.shape_cast %279 : vector<1xi32> to vector<1x1xi32>
    %c77_i32_82 = arith.constant 77 : i32
    %281 = vector.broadcast %c77_i32_82 : i32 to vector<1x1xi32>
    %282 = arith.cmpi sge, %280, %281 : vector<1x1xi32>
    %283 = arith.select %282, %273, %271 : vector<1x1xi1>, vector<1x1xi32>
    %c4096_i32 = arith.constant 4096 : i32
    %284 = vector.broadcast %c4096_i32 : i32 to vector<1x1xi32>
    %285 = arith.ori %283, %284 : vector<1x1xi32>
    %286 = vector.broadcast %285 : vector<1x1xi32> to vector<32x8xi32>
    %287 = arith.cmpi sge, %55, %286 : vector<32x8xi32>
    %288 = arith.extui %287 : vector<32x8xi1> to vector<32x8xi32>
    %cst_83 = arith.constant dense<0> : vector<32xi32>
    %289 = vector.multi_reduction <add>, %288, %cst_83 [1] : vector<32x8xi32> to vector<32xi32>
    %290 = vector.shape_cast %289 : vector<32xi32> to vector<32x1xi32>
    %cst_84 = arith.constant dense<0> : vector<1xi32>
    %291 = vector.multi_reduction <add>, %290, %cst_84 [0] : vector<32x1xi32> to vector<1xi32>
    %292 = vector.shape_cast %291 : vector<1xi32> to vector<1x1xi32>
    %c77_i32_85 = arith.constant 77 : i32
    %293 = vector.broadcast %c77_i32_85 : i32 to vector<1x1xi32>
    %294 = arith.cmpi sge, %292, %293 : vector<1x1xi32>
    %295 = arith.select %294, %285, %283 : vector<1x1xi1>, vector<1x1xi32>
    %c2048_i32 = arith.constant 2048 : i32
    %296 = vector.broadcast %c2048_i32 : i32 to vector<1x1xi32>
    %297 = arith.ori %295, %296 : vector<1x1xi32>
    %298 = vector.broadcast %297 : vector<1x1xi32> to vector<32x8xi32>
    %299 = arith.cmpi sge, %55, %298 : vector<32x8xi32>
    %300 = arith.extui %299 : vector<32x8xi1> to vector<32x8xi32>
    %cst_86 = arith.constant dense<0> : vector<32xi32>
    %301 = vector.multi_reduction <add>, %300, %cst_86 [1] : vector<32x8xi32> to vector<32xi32>
    %302 = vector.shape_cast %301 : vector<32xi32> to vector<32x1xi32>
    %cst_87 = arith.constant dense<0> : vector<1xi32>
    %303 = vector.multi_reduction <add>, %302, %cst_87 [0] : vector<32x1xi32> to vector<1xi32>
    %304 = vector.shape_cast %303 : vector<1xi32> to vector<1x1xi32>
    %c77_i32_88 = arith.constant 77 : i32
    %305 = vector.broadcast %c77_i32_88 : i32 to vector<1x1xi32>
    %306 = arith.cmpi sge, %304, %305 : vector<1x1xi32>
    %307 = arith.select %306, %297, %295 : vector<1x1xi1>, vector<1x1xi32>
    %c1024_i32 = arith.constant 1024 : i32
    %308 = vector.broadcast %c1024_i32 : i32 to vector<1x1xi32>
    %309 = arith.ori %307, %308 : vector<1x1xi32>
    %310 = vector.broadcast %309 : vector<1x1xi32> to vector<32x8xi32>
    %311 = arith.cmpi sge, %55, %310 : vector<32x8xi32>
    %312 = arith.extui %311 : vector<32x8xi1> to vector<32x8xi32>
    %cst_89 = arith.constant dense<0> : vector<32xi32>
    %313 = vector.multi_reduction <add>, %312, %cst_89 [1] : vector<32x8xi32> to vector<32xi32>
    %314 = vector.shape_cast %313 : vector<32xi32> to vector<32x1xi32>
    %cst_90 = arith.constant dense<0> : vector<1xi32>
    %315 = vector.multi_reduction <add>, %314, %cst_90 [0] : vector<32x1xi32> to vector<1xi32>
    %316 = vector.shape_cast %315 : vector<1xi32> to vector<1x1xi32>
    %c77_i32_91 = arith.constant 77 : i32
    %317 = vector.broadcast %c77_i32_91 : i32 to vector<1x1xi32>
    %318 = arith.cmpi sge, %316, %317 : vector<1x1xi32>
    %319 = arith.select %318, %309, %307 : vector<1x1xi1>, vector<1x1xi32>
    %c512_i32 = arith.constant 512 : i32
    %320 = vector.broadcast %c512_i32 : i32 to vector<1x1xi32>
    %321 = arith.ori %319, %320 : vector<1x1xi32>
    %322 = vector.broadcast %321 : vector<1x1xi32> to vector<32x8xi32>
    %323 = arith.cmpi sge, %55, %322 : vector<32x8xi32>
    %324 = arith.extui %323 : vector<32x8xi1> to vector<32x8xi32>
    %cst_92 = arith.constant dense<0> : vector<32xi32>
    %325 = vector.multi_reduction <add>, %324, %cst_92 [1] : vector<32x8xi32> to vector<32xi32>
    %326 = vector.shape_cast %325 : vector<32xi32> to vector<32x1xi32>
    %cst_93 = arith.constant dense<0> : vector<1xi32>
    %327 = vector.multi_reduction <add>, %326, %cst_93 [0] : vector<32x1xi32> to vector<1xi32>
    %328 = vector.shape_cast %327 : vector<1xi32> to vector<1x1xi32>
    %c77_i32_94 = arith.constant 77 : i32
    %329 = vector.broadcast %c77_i32_94 : i32 to vector<1x1xi32>
    %330 = arith.cmpi sge, %328, %329 : vector<1x1xi32>
    %331 = arith.select %330, %321, %319 : vector<1x1xi1>, vector<1x1xi32>
    %c256_i32 = arith.constant 256 : i32
    %332 = vector.broadcast %c256_i32 : i32 to vector<1x1xi32>
    %333 = arith.ori %331, %332 : vector<1x1xi32>
    %334 = vector.broadcast %333 : vector<1x1xi32> to vector<32x8xi32>
    %335 = arith.cmpi sge, %55, %334 : vector<32x8xi32>
    %336 = arith.extui %335 : vector<32x8xi1> to vector<32x8xi32>
    %cst_95 = arith.constant dense<0> : vector<32xi32>
    %337 = vector.multi_reduction <add>, %336, %cst_95 [1] : vector<32x8xi32> to vector<32xi32>
    %338 = vector.shape_cast %337 : vector<32xi32> to vector<32x1xi32>
    %cst_96 = arith.constant dense<0> : vector<1xi32>
    %339 = vector.multi_reduction <add>, %338, %cst_96 [0] : vector<32x1xi32> to vector<1xi32>
    %340 = vector.shape_cast %339 : vector<1xi32> to vector<1x1xi32>
    %c77_i32_97 = arith.constant 77 : i32
    %341 = vector.broadcast %c77_i32_97 : i32 to vector<1x1xi32>
    %342 = arith.cmpi sge, %340, %341 : vector<1x1xi32>
    %343 = arith.select %342, %333, %331 : vector<1x1xi1>, vector<1x1xi32>
    %c128_i32 = arith.constant 128 : i32
    %344 = vector.broadcast %c128_i32 : i32 to vector<1x1xi32>
    %345 = arith.ori %343, %344 : vector<1x1xi32>
    %346 = vector.broadcast %345 : vector<1x1xi32> to vector<32x8xi32>
    %347 = arith.cmpi sge, %55, %346 : vector<32x8xi32>
    %348 = arith.extui %347 : vector<32x8xi1> to vector<32x8xi32>
    %cst_98 = arith.constant dense<0> : vector<32xi32>
    %349 = vector.multi_reduction <add>, %348, %cst_98 [1] : vector<32x8xi32> to vector<32xi32>
    %350 = vector.shape_cast %349 : vector<32xi32> to vector<32x1xi32>
    %cst_99 = arith.constant dense<0> : vector<1xi32>
    %351 = vector.multi_reduction <add>, %350, %cst_99 [0] : vector<32x1xi32> to vector<1xi32>
    %352 = vector.shape_cast %351 : vector<1xi32> to vector<1x1xi32>
    %c77_i32_100 = arith.constant 77 : i32
    %353 = vector.broadcast %c77_i32_100 : i32 to vector<1x1xi32>
    %354 = arith.cmpi sge, %352, %353 : vector<1x1xi32>
    %355 = arith.select %354, %345, %343 : vector<1x1xi1>, vector<1x1xi32>
    %c64_i32 = arith.constant 64 : i32
    %356 = vector.broadcast %c64_i32 : i32 to vector<1x1xi32>
    %357 = arith.ori %355, %356 : vector<1x1xi32>
    %358 = vector.broadcast %357 : vector<1x1xi32> to vector<32x8xi32>
    %359 = arith.cmpi sge, %55, %358 : vector<32x8xi32>
    %360 = arith.extui %359 : vector<32x8xi1> to vector<32x8xi32>
    %cst_101 = arith.constant dense<0> : vector<32xi32>
    %361 = vector.multi_reduction <add>, %360, %cst_101 [1] : vector<32x8xi32> to vector<32xi32>
    %362 = vector.shape_cast %361 : vector<32xi32> to vector<32x1xi32>
    %cst_102 = arith.constant dense<0> : vector<1xi32>
    %363 = vector.multi_reduction <add>, %362, %cst_102 [0] : vector<32x1xi32> to vector<1xi32>
    %364 = vector.shape_cast %363 : vector<1xi32> to vector<1x1xi32>
    %c77_i32_103 = arith.constant 77 : i32
    %365 = vector.broadcast %c77_i32_103 : i32 to vector<1x1xi32>
    %366 = arith.cmpi sge, %364, %365 : vector<1x1xi32>
    %367 = arith.select %366, %357, %355 : vector<1x1xi1>, vector<1x1xi32>
    %c32_i32 = arith.constant 32 : i32
    %368 = vector.broadcast %c32_i32 : i32 to vector<1x1xi32>
    %369 = arith.ori %367, %368 : vector<1x1xi32>
    %370 = vector.broadcast %369 : vector<1x1xi32> to vector<32x8xi32>
    %371 = arith.cmpi sge, %55, %370 : vector<32x8xi32>
    %372 = arith.extui %371 : vector<32x8xi1> to vector<32x8xi32>
    %cst_104 = arith.constant dense<0> : vector<32xi32>
    %373 = vector.multi_reduction <add>, %372, %cst_104 [1] : vector<32x8xi32> to vector<32xi32>
    %374 = vector.shape_cast %373 : vector<32xi32> to vector<32x1xi32>
    %cst_105 = arith.constant dense<0> : vector<1xi32>
    %375 = vector.multi_reduction <add>, %374, %cst_105 [0] : vector<32x1xi32> to vector<1xi32>
    %376 = vector.shape_cast %375 : vector<1xi32> to vector<1x1xi32>
    %c77_i32_106 = arith.constant 77 : i32
    %377 = vector.broadcast %c77_i32_106 : i32 to vector<1x1xi32>
    %378 = arith.cmpi sge, %376, %377 : vector<1x1xi32>
    %379 = arith.select %378, %369, %367 : vector<1x1xi1>, vector<1x1xi32>
    %c16_i32 = arith.constant 16 : i32
    %380 = vector.broadcast %c16_i32 : i32 to vector<1x1xi32>
    %381 = arith.ori %379, %380 : vector<1x1xi32>
    %382 = vector.broadcast %381 : vector<1x1xi32> to vector<32x8xi32>
    %383 = arith.cmpi sge, %55, %382 : vector<32x8xi32>
    %384 = arith.extui %383 : vector<32x8xi1> to vector<32x8xi32>
    %cst_107 = arith.constant dense<0> : vector<32xi32>
    %385 = vector.multi_reduction <add>, %384, %cst_107 [1] : vector<32x8xi32> to vector<32xi32>
    %386 = vector.shape_cast %385 : vector<32xi32> to vector<32x1xi32>
    %cst_108 = arith.constant dense<0> : vector<1xi32>
    %387 = vector.multi_reduction <add>, %386, %cst_108 [0] : vector<32x1xi32> to vector<1xi32>
    %388 = vector.shape_cast %387 : vector<1xi32> to vector<1x1xi32>
    %c77_i32_109 = arith.constant 77 : i32
    %389 = vector.broadcast %c77_i32_109 : i32 to vector<1x1xi32>
    %390 = arith.cmpi sge, %388, %389 : vector<1x1xi32>
    %391 = arith.select %390, %381, %379 : vector<1x1xi1>, vector<1x1xi32>
    %c8_i32 = arith.constant 8 : i32
    %392 = vector.broadcast %c8_i32 : i32 to vector<1x1xi32>
    %393 = arith.ori %391, %392 : vector<1x1xi32>
    %394 = vector.broadcast %393 : vector<1x1xi32> to vector<32x8xi32>
    %395 = arith.cmpi sge, %55, %394 : vector<32x8xi32>
    %396 = arith.extui %395 : vector<32x8xi1> to vector<32x8xi32>
    %cst_110 = arith.constant dense<0> : vector<32xi32>
    %397 = vector.multi_reduction <add>, %396, %cst_110 [1] : vector<32x8xi32> to vector<32xi32>
    %398 = vector.shape_cast %397 : vector<32xi32> to vector<32x1xi32>
    %cst_111 = arith.constant dense<0> : vector<1xi32>
    %399 = vector.multi_reduction <add>, %398, %cst_111 [0] : vector<32x1xi32> to vector<1xi32>
    %400 = vector.shape_cast %399 : vector<1xi32> to vector<1x1xi32>
    %c77_i32_112 = arith.constant 77 : i32
    %401 = vector.broadcast %c77_i32_112 : i32 to vector<1x1xi32>
    %402 = arith.cmpi sge, %400, %401 : vector<1x1xi32>
    %403 = arith.select %402, %393, %391 : vector<1x1xi1>, vector<1x1xi32>
    %c4_i32 = arith.constant 4 : i32
    %404 = vector.broadcast %c4_i32 : i32 to vector<1x1xi32>
    %405 = arith.ori %403, %404 : vector<1x1xi32>
    %406 = vector.broadcast %405 : vector<1x1xi32> to vector<32x8xi32>
    %407 = arith.cmpi sge, %55, %406 : vector<32x8xi32>
    %408 = arith.extui %407 : vector<32x8xi1> to vector<32x8xi32>
    %cst_113 = arith.constant dense<0> : vector<32xi32>
    %409 = vector.multi_reduction <add>, %408, %cst_113 [1] : vector<32x8xi32> to vector<32xi32>
    %410 = vector.shape_cast %409 : vector<32xi32> to vector<32x1xi32>
    %cst_114 = arith.constant dense<0> : vector<1xi32>
    %411 = vector.multi_reduction <add>, %410, %cst_114 [0] : vector<32x1xi32> to vector<1xi32>
    %412 = vector.shape_cast %411 : vector<1xi32> to vector<1x1xi32>
    %c77_i32_115 = arith.constant 77 : i32
    %413 = vector.broadcast %c77_i32_115 : i32 to vector<1x1xi32>
    %414 = arith.cmpi sge, %412, %413 : vector<1x1xi32>
    %415 = arith.select %414, %405, %403 : vector<1x1xi1>, vector<1x1xi32>
    %c2_i32 = arith.constant 2 : i32
    %416 = vector.broadcast %c2_i32 : i32 to vector<1x1xi32>
    %417 = arith.ori %415, %416 : vector<1x1xi32>
    %418 = vector.broadcast %417 : vector<1x1xi32> to vector<32x8xi32>
    %419 = arith.cmpi sge, %55, %418 : vector<32x8xi32>
    %420 = arith.extui %419 : vector<32x8xi1> to vector<32x8xi32>
    %cst_116 = arith.constant dense<0> : vector<32xi32>
    %421 = vector.multi_reduction <add>, %420, %cst_116 [1] : vector<32x8xi32> to vector<32xi32>
    %422 = vector.shape_cast %421 : vector<32xi32> to vector<32x1xi32>
    %cst_117 = arith.constant dense<0> : vector<1xi32>
    %423 = vector.multi_reduction <add>, %422, %cst_117 [0] : vector<32x1xi32> to vector<1xi32>
    %424 = vector.shape_cast %423 : vector<1xi32> to vector<1x1xi32>
    %c77_i32_118 = arith.constant 77 : i32
    %425 = vector.broadcast %c77_i32_118 : i32 to vector<1x1xi32>
    %426 = arith.cmpi sge, %424, %425 : vector<1x1xi32>
    %427 = arith.select %426, %417, %415 : vector<1x1xi1>, vector<1x1xi32>
    %c1_i32 = arith.constant 1 : i32
    %428 = vector.broadcast %c1_i32 : i32 to vector<1x1xi32>
    %429 = arith.ori %427, %428 : vector<1x1xi32>
    %430 = vector.broadcast %429 : vector<1x1xi32> to vector<32x8xi32>
    %431 = arith.cmpi sge, %55, %430 : vector<32x8xi32>
    %432 = arith.extui %431 : vector<32x8xi1> to vector<32x8xi32>
    %cst_119 = arith.constant dense<0> : vector<32xi32>
    %433 = vector.multi_reduction <add>, %432, %cst_119 [1] : vector<32x8xi32> to vector<32xi32>
    %434 = vector.shape_cast %433 : vector<32xi32> to vector<32x1xi32>
    %cst_120 = arith.constant dense<0> : vector<1xi32>
    %435 = vector.multi_reduction <add>, %434, %cst_120 [0] : vector<32x1xi32> to vector<1xi32>
    %436 = vector.shape_cast %435 : vector<1xi32> to vector<1x1xi32>
    %c77_i32_121 = arith.constant 77 : i32
    %437 = vector.broadcast %c77_i32_121 : i32 to vector<1x1xi32>
    %438 = arith.cmpi sge, %436, %437 : vector<1x1xi32>
    %439 = arith.select %438, %429, %427 : vector<1x1xi1>, vector<1x1xi32>
    %440 = vector.broadcast %439 : vector<1x1xi32> to vector<32x8xi32>
    %441 = arith.cmpi sge, %55, %440 : vector<32x8xi32>
    %cst_122 = arith.constant 0.000000e+00 : f32
    %442 = vector.broadcast %cst_122 : f32 to vector<32x8xf32>
    %443 = arith.select %441, %48, %442 : vector<32x8xi1>, vector<32x8xf32>
    %c0_123 = arith.constant 0 : index
    %c0_124 = arith.constant 0 : index
    %444 = vector.load %arg3[%c0_123, %c0_124] : memref<8x16xf32, #tpu.memory_space<vmem>>, vector<8x16xf32>
    %cst_125 = arith.constant dense<0.000000e+00> : vector<32x16xf32>
    %445 = tpu.matmul %443, %444, %cst_125 {dimension_numbers = #tpu.dot_dimension_numbers<[1], [0], [0], [1], [0, 0, 1, 1], [], []>} : vector<32x8xf32>, vector<8x16xf32>, vector<32x16xf32> -> vector<32x16xf32>
    %c0_126 = arith.constant 0 : index
    %c0_127 = arith.constant 0 : index
    %446 = vector.load %arg4[%c0_126, %c0_127] : memref<1x16xf32, #tpu.memory_space<vmem>>, vector<1x16xf32>
    %447 = vector.broadcast %446 : vector<1x16xf32> to vector<32x16xf32>
    %448 = arith.addf %445, %447 : vector<32x16xf32>
    %449 = tpu.bitcast %448 : vector<32x16xf32> -> vector<32x16xi32>
    %c0_i32_128 = arith.constant 0 : i32
    %450 = vector.broadcast %c0_i32_128 : i32 to vector<32x16xi32>
    %451 = arith.cmpi slt, %449, %450 : vector<32x16xi32>
    %c2147483647_i32_129 = arith.constant 2147483647 : i32
    %c0_i32_130 = arith.constant 0 : i32
    %452 = vector.broadcast %c2147483647_i32_129 : i32 to vector<32x16xi32>
    %453 = vector.broadcast %c0_i32_130 : i32 to vector<32x16xi32>
    %454 = arith.select %451, %452, %453 : vector<32x16xi1>, vector<32x16xi32>
    %455 = arith.xori %449, %454 : vector<32x16xi32>
    %c0_i32_131 = arith.constant 0 : i32
    %456 = vector.broadcast %c0_i32_131 : i32 to vector<32x1xi32>
    %c-2147483648_i32_132 = arith.constant -2147483648 : i32
    %457 = vector.broadcast %c-2147483648_i32_132 : i32 to vector<32x1xi32>
    %458 = vector.broadcast %456 : vector<32x1xi32> to vector<32x16xi32>
    %459 = arith.cmpi sge, %455, %458 : vector<32x16xi32>
    %460 = arith.extui %459 : vector<32x16xi1> to vector<32x16xi32>
    %cst_133 = arith.constant dense<0> : vector<32xi32>
    %461 = vector.multi_reduction <add>, %460, %cst_133 [1] : vector<32x16xi32> to vector<32xi32>
    %462 = vector.shape_cast %461 : vector<32xi32> to vector<32x1xi32>
    %c5_i32 = arith.constant 5 : i32
    %463 = vector.broadcast %c5_i32 : i32 to vector<32x1xi32>
    %464 = arith.cmpi sge, %462, %463 : vector<32x1xi32>
    %465 = arith.select %464, %456, %457 : vector<32x1xi1>, vector<32x1xi32>
    %c1073741824_i32_134 = arith.constant 1073741824 : i32
    %466 = vector.broadcast %c1073741824_i32_134 : i32 to vector<32x1xi32>
    %467 = arith.ori %465, %466 : vector<32x1xi32>
    %468 = vector.broadcast %467 : vector<32x1xi32> to vector<32x16xi32>
    %469 = arith.cmpi sge, %455, %468 : vector<32x16xi32>
    %470 = arith.extui %469 : vector<32x16xi1> to vector<32x16xi32>
    %cst_135 = arith.constant dense<0> : vector<32xi32>
    %471 = vector.multi_reduction <add>, %470, %cst_135 [1] : vector<32x16xi32> to vector<32xi32>
    %472 = vector.shape_cast %471 : vector<32xi32> to vector<32x1xi32>
    %c5_i32_136 = arith.constant 5 : i32
    %473 = vector.broadcast %c5_i32_136 : i32 to vector<32x1xi32>
    %474 = arith.cmpi sge, %472, %473 : vector<32x1xi32>
    %475 = arith.select %474, %467, %465 : vector<32x1xi1>, vector<32x1xi32>
    %c536870912_i32_137 = arith.constant 536870912 : i32
    %476 = vector.broadcast %c536870912_i32_137 : i32 to vector<32x1xi32>
    %477 = arith.ori %475, %476 : vector<32x1xi32>
    %478 = vector.broadcast %477 : vector<32x1xi32> to vector<32x16xi32>
    %479 = arith.cmpi sge, %455, %478 : vector<32x16xi32>
    %480 = arith.extui %479 : vector<32x16xi1> to vector<32x16xi32>
    %cst_138 = arith.constant dense<0> : vector<32xi32>
    %481 = vector.multi_reduction <add>, %480, %cst_138 [1] : vector<32x16xi32> to vector<32xi32>
    %482 = vector.shape_cast %481 : vector<32xi32> to vector<32x1xi32>
    %c5_i32_139 = arith.constant 5 : i32
    %483 = vector.broadcast %c5_i32_139 : i32 to vector<32x1xi32>
    %484 = arith.cmpi sge, %482, %483 : vector<32x1xi32>
    %485 = arith.select %484, %477, %475 : vector<32x1xi1>, vector<32x1xi32>
    %c268435456_i32_140 = arith.constant 268435456 : i32
    %486 = vector.broadcast %c268435456_i32_140 : i32 to vector<32x1xi32>
    %487 = arith.ori %485, %486 : vector<32x1xi32>
    %488 = vector.broadcast %487 : vector<32x1xi32> to vector<32x16xi32>
    %489 = arith.cmpi sge, %455, %488 : vector<32x16xi32>
    %490 = arith.extui %489 : vector<32x16xi1> to vector<32x16xi32>
    %cst_141 = arith.constant dense<0> : vector<32xi32>
    %491 = vector.multi_reduction <add>, %490, %cst_141 [1] : vector<32x16xi32> to vector<32xi32>
    %492 = vector.shape_cast %491 : vector<32xi32> to vector<32x1xi32>
    %c5_i32_142 = arith.constant 5 : i32
    %493 = vector.broadcast %c5_i32_142 : i32 to vector<32x1xi32>
    %494 = arith.cmpi sge, %492, %493 : vector<32x1xi32>
    %495 = arith.select %494, %487, %485 : vector<32x1xi1>, vector<32x1xi32>
    %c134217728_i32_143 = arith.constant 134217728 : i32
    %496 = vector.broadcast %c134217728_i32_143 : i32 to vector<32x1xi32>
    %497 = arith.ori %495, %496 : vector<32x1xi32>
    %498 = vector.broadcast %497 : vector<32x1xi32> to vector<32x16xi32>
    %499 = arith.cmpi sge, %455, %498 : vector<32x16xi32>
    %500 = arith.extui %499 : vector<32x16xi1> to vector<32x16xi32>
    %cst_144 = arith.constant dense<0> : vector<32xi32>
    %501 = vector.multi_reduction <add>, %500, %cst_144 [1] : vector<32x16xi32> to vector<32xi32>
    %502 = vector.shape_cast %501 : vector<32xi32> to vector<32x1xi32>
    %c5_i32_145 = arith.constant 5 : i32
    %503 = vector.broadcast %c5_i32_145 : i32 to vector<32x1xi32>
    %504 = arith.cmpi sge, %502, %503 : vector<32x1xi32>
    %505 = arith.select %504, %497, %495 : vector<32x1xi1>, vector<32x1xi32>
    %c67108864_i32_146 = arith.constant 67108864 : i32
    %506 = vector.broadcast %c67108864_i32_146 : i32 to vector<32x1xi32>
    %507 = arith.ori %505, %506 : vector<32x1xi32>
    %508 = vector.broadcast %507 : vector<32x1xi32> to vector<32x16xi32>
    %509 = arith.cmpi sge, %455, %508 : vector<32x16xi32>
    %510 = arith.extui %509 : vector<32x16xi1> to vector<32x16xi32>
    %cst_147 = arith.constant dense<0> : vector<32xi32>
    %511 = vector.multi_reduction <add>, %510, %cst_147 [1] : vector<32x16xi32> to vector<32xi32>
    %512 = vector.shape_cast %511 : vector<32xi32> to vector<32x1xi32>
    %c5_i32_148 = arith.constant 5 : i32
    %513 = vector.broadcast %c5_i32_148 : i32 to vector<32x1xi32>
    %514 = arith.cmpi sge, %512, %513 : vector<32x1xi32>
    %515 = arith.select %514, %507, %505 : vector<32x1xi1>, vector<32x1xi32>
    %c33554432_i32_149 = arith.constant 33554432 : i32
    %516 = vector.broadcast %c33554432_i32_149 : i32 to vector<32x1xi32>
    %517 = arith.ori %515, %516 : vector<32x1xi32>
    %518 = vector.broadcast %517 : vector<32x1xi32> to vector<32x16xi32>
    %519 = arith.cmpi sge, %455, %518 : vector<32x16xi32>
    %520 = arith.extui %519 : vector<32x16xi1> to vector<32x16xi32>
    %cst_150 = arith.constant dense<0> : vector<32xi32>
    %521 = vector.multi_reduction <add>, %520, %cst_150 [1] : vector<32x16xi32> to vector<32xi32>
    %522 = vector.shape_cast %521 : vector<32xi32> to vector<32x1xi32>
    %c5_i32_151 = arith.constant 5 : i32
    %523 = vector.broadcast %c5_i32_151 : i32 to vector<32x1xi32>
    %524 = arith.cmpi sge, %522, %523 : vector<32x1xi32>
    %525 = arith.select %524, %517, %515 : vector<32x1xi1>, vector<32x1xi32>
    %c16777216_i32_152 = arith.constant 16777216 : i32
    %526 = vector.broadcast %c16777216_i32_152 : i32 to vector<32x1xi32>
    %527 = arith.ori %525, %526 : vector<32x1xi32>
    %528 = vector.broadcast %527 : vector<32x1xi32> to vector<32x16xi32>
    %529 = arith.cmpi sge, %455, %528 : vector<32x16xi32>
    %530 = arith.extui %529 : vector<32x16xi1> to vector<32x16xi32>
    %cst_153 = arith.constant dense<0> : vector<32xi32>
    %531 = vector.multi_reduction <add>, %530, %cst_153 [1] : vector<32x16xi32> to vector<32xi32>
    %532 = vector.shape_cast %531 : vector<32xi32> to vector<32x1xi32>
    %c5_i32_154 = arith.constant 5 : i32
    %533 = vector.broadcast %c5_i32_154 : i32 to vector<32x1xi32>
    %534 = arith.cmpi sge, %532, %533 : vector<32x1xi32>
    %535 = arith.select %534, %527, %525 : vector<32x1xi1>, vector<32x1xi32>
    %c8388608_i32_155 = arith.constant 8388608 : i32
    %536 = vector.broadcast %c8388608_i32_155 : i32 to vector<32x1xi32>
    %537 = arith.ori %535, %536 : vector<32x1xi32>
    %538 = vector.broadcast %537 : vector<32x1xi32> to vector<32x16xi32>
    %539 = arith.cmpi sge, %455, %538 : vector<32x16xi32>
    %540 = arith.extui %539 : vector<32x16xi1> to vector<32x16xi32>
    %cst_156 = arith.constant dense<0> : vector<32xi32>
    %541 = vector.multi_reduction <add>, %540, %cst_156 [1] : vector<32x16xi32> to vector<32xi32>
    %542 = vector.shape_cast %541 : vector<32xi32> to vector<32x1xi32>
    %c5_i32_157 = arith.constant 5 : i32
    %543 = vector.broadcast %c5_i32_157 : i32 to vector<32x1xi32>
    %544 = arith.cmpi sge, %542, %543 : vector<32x1xi32>
    %545 = arith.select %544, %537, %535 : vector<32x1xi1>, vector<32x1xi32>
    %c4194304_i32_158 = arith.constant 4194304 : i32
    %546 = vector.broadcast %c4194304_i32_158 : i32 to vector<32x1xi32>
    %547 = arith.ori %545, %546 : vector<32x1xi32>
    %548 = vector.broadcast %547 : vector<32x1xi32> to vector<32x16xi32>
    %549 = arith.cmpi sge, %455, %548 : vector<32x16xi32>
    %550 = arith.extui %549 : vector<32x16xi1> to vector<32x16xi32>
    %cst_159 = arith.constant dense<0> : vector<32xi32>
    %551 = vector.multi_reduction <add>, %550, %cst_159 [1] : vector<32x16xi32> to vector<32xi32>
    %552 = vector.shape_cast %551 : vector<32xi32> to vector<32x1xi32>
    %c5_i32_160 = arith.constant 5 : i32
    %553 = vector.broadcast %c5_i32_160 : i32 to vector<32x1xi32>
    %554 = arith.cmpi sge, %552, %553 : vector<32x1xi32>
    %555 = arith.select %554, %547, %545 : vector<32x1xi1>, vector<32x1xi32>
    %c2097152_i32_161 = arith.constant 2097152 : i32
    %556 = vector.broadcast %c2097152_i32_161 : i32 to vector<32x1xi32>
    %557 = arith.ori %555, %556 : vector<32x1xi32>
    %558 = vector.broadcast %557 : vector<32x1xi32> to vector<32x16xi32>
    %559 = arith.cmpi sge, %455, %558 : vector<32x16xi32>
    %560 = arith.extui %559 : vector<32x16xi1> to vector<32x16xi32>
    %cst_162 = arith.constant dense<0> : vector<32xi32>
    %561 = vector.multi_reduction <add>, %560, %cst_162 [1] : vector<32x16xi32> to vector<32xi32>
    %562 = vector.shape_cast %561 : vector<32xi32> to vector<32x1xi32>
    %c5_i32_163 = arith.constant 5 : i32
    %563 = vector.broadcast %c5_i32_163 : i32 to vector<32x1xi32>
    %564 = arith.cmpi sge, %562, %563 : vector<32x1xi32>
    %565 = arith.select %564, %557, %555 : vector<32x1xi1>, vector<32x1xi32>
    %c1048576_i32_164 = arith.constant 1048576 : i32
    %566 = vector.broadcast %c1048576_i32_164 : i32 to vector<32x1xi32>
    %567 = arith.ori %565, %566 : vector<32x1xi32>
    %568 = vector.broadcast %567 : vector<32x1xi32> to vector<32x16xi32>
    %569 = arith.cmpi sge, %455, %568 : vector<32x16xi32>
    %570 = arith.extui %569 : vector<32x16xi1> to vector<32x16xi32>
    %cst_165 = arith.constant dense<0> : vector<32xi32>
    %571 = vector.multi_reduction <add>, %570, %cst_165 [1] : vector<32x16xi32> to vector<32xi32>
    %572 = vector.shape_cast %571 : vector<32xi32> to vector<32x1xi32>
    %c5_i32_166 = arith.constant 5 : i32
    %573 = vector.broadcast %c5_i32_166 : i32 to vector<32x1xi32>
    %574 = arith.cmpi sge, %572, %573 : vector<32x1xi32>
    %575 = arith.select %574, %567, %565 : vector<32x1xi1>, vector<32x1xi32>
    %c524288_i32_167 = arith.constant 524288 : i32
    %576 = vector.broadcast %c524288_i32_167 : i32 to vector<32x1xi32>
    %577 = arith.ori %575, %576 : vector<32x1xi32>
    %578 = vector.broadcast %577 : vector<32x1xi32> to vector<32x16xi32>
    %579 = arith.cmpi sge, %455, %578 : vector<32x16xi32>
    %580 = arith.extui %579 : vector<32x16xi1> to vector<32x16xi32>
    %cst_168 = arith.constant dense<0> : vector<32xi32>
    %581 = vector.multi_reduction <add>, %580, %cst_168 [1] : vector<32x16xi32> to vector<32xi32>
    %582 = vector.shape_cast %581 : vector<32xi32> to vector<32x1xi32>
    %c5_i32_169 = arith.constant 5 : i32
    %583 = vector.broadcast %c5_i32_169 : i32 to vector<32x1xi32>
    %584 = arith.cmpi sge, %582, %583 : vector<32x1xi32>
    %585 = arith.select %584, %577, %575 : vector<32x1xi1>, vector<32x1xi32>
    %c262144_i32_170 = arith.constant 262144 : i32
    %586 = vector.broadcast %c262144_i32_170 : i32 to vector<32x1xi32>
    %587 = arith.ori %585, %586 : vector<32x1xi32>
    %588 = vector.broadcast %587 : vector<32x1xi32> to vector<32x16xi32>
    %589 = arith.cmpi sge, %455, %588 : vector<32x16xi32>
    %590 = arith.extui %589 : vector<32x16xi1> to vector<32x16xi32>
    %cst_171 = arith.constant dense<0> : vector<32xi32>
    %591 = vector.multi_reduction <add>, %590, %cst_171 [1] : vector<32x16xi32> to vector<32xi32>
    %592 = vector.shape_cast %591 : vector<32xi32> to vector<32x1xi32>
    %c5_i32_172 = arith.constant 5 : i32
    %593 = vector.broadcast %c5_i32_172 : i32 to vector<32x1xi32>
    %594 = arith.cmpi sge, %592, %593 : vector<32x1xi32>
    %595 = arith.select %594, %587, %585 : vector<32x1xi1>, vector<32x1xi32>
    %c131072_i32_173 = arith.constant 131072 : i32
    %596 = vector.broadcast %c131072_i32_173 : i32 to vector<32x1xi32>
    %597 = arith.ori %595, %596 : vector<32x1xi32>
    %598 = vector.broadcast %597 : vector<32x1xi32> to vector<32x16xi32>
    %599 = arith.cmpi sge, %455, %598 : vector<32x16xi32>
    %600 = arith.extui %599 : vector<32x16xi1> to vector<32x16xi32>
    %cst_174 = arith.constant dense<0> : vector<32xi32>
    %601 = vector.multi_reduction <add>, %600, %cst_174 [1] : vector<32x16xi32> to vector<32xi32>
    %602 = vector.shape_cast %601 : vector<32xi32> to vector<32x1xi32>
    %c5_i32_175 = arith.constant 5 : i32
    %603 = vector.broadcast %c5_i32_175 : i32 to vector<32x1xi32>
    %604 = arith.cmpi sge, %602, %603 : vector<32x1xi32>
    %605 = arith.select %604, %597, %595 : vector<32x1xi1>, vector<32x1xi32>
    %c65536_i32_176 = arith.constant 65536 : i32
    %606 = vector.broadcast %c65536_i32_176 : i32 to vector<32x1xi32>
    %607 = arith.ori %605, %606 : vector<32x1xi32>
    %608 = vector.broadcast %607 : vector<32x1xi32> to vector<32x16xi32>
    %609 = arith.cmpi sge, %455, %608 : vector<32x16xi32>
    %610 = arith.extui %609 : vector<32x16xi1> to vector<32x16xi32>
    %cst_177 = arith.constant dense<0> : vector<32xi32>
    %611 = vector.multi_reduction <add>, %610, %cst_177 [1] : vector<32x16xi32> to vector<32xi32>
    %612 = vector.shape_cast %611 : vector<32xi32> to vector<32x1xi32>
    %c5_i32_178 = arith.constant 5 : i32
    %613 = vector.broadcast %c5_i32_178 : i32 to vector<32x1xi32>
    %614 = arith.cmpi sge, %612, %613 : vector<32x1xi32>
    %615 = arith.select %614, %607, %605 : vector<32x1xi1>, vector<32x1xi32>
    %c32768_i32_179 = arith.constant 32768 : i32
    %616 = vector.broadcast %c32768_i32_179 : i32 to vector<32x1xi32>
    %617 = arith.ori %615, %616 : vector<32x1xi32>
    %618 = vector.broadcast %617 : vector<32x1xi32> to vector<32x16xi32>
    %619 = arith.cmpi sge, %455, %618 : vector<32x16xi32>
    %620 = arith.extui %619 : vector<32x16xi1> to vector<32x16xi32>
    %cst_180 = arith.constant dense<0> : vector<32xi32>
    %621 = vector.multi_reduction <add>, %620, %cst_180 [1] : vector<32x16xi32> to vector<32xi32>
    %622 = vector.shape_cast %621 : vector<32xi32> to vector<32x1xi32>
    %c5_i32_181 = arith.constant 5 : i32
    %623 = vector.broadcast %c5_i32_181 : i32 to vector<32x1xi32>
    %624 = arith.cmpi sge, %622, %623 : vector<32x1xi32>
    %625 = arith.select %624, %617, %615 : vector<32x1xi1>, vector<32x1xi32>
    %c16384_i32_182 = arith.constant 16384 : i32
    %626 = vector.broadcast %c16384_i32_182 : i32 to vector<32x1xi32>
    %627 = arith.ori %625, %626 : vector<32x1xi32>
    %628 = vector.broadcast %627 : vector<32x1xi32> to vector<32x16xi32>
    %629 = arith.cmpi sge, %455, %628 : vector<32x16xi32>
    %630 = arith.extui %629 : vector<32x16xi1> to vector<32x16xi32>
    %cst_183 = arith.constant dense<0> : vector<32xi32>
    %631 = vector.multi_reduction <add>, %630, %cst_183 [1] : vector<32x16xi32> to vector<32xi32>
    %632 = vector.shape_cast %631 : vector<32xi32> to vector<32x1xi32>
    %c5_i32_184 = arith.constant 5 : i32
    %633 = vector.broadcast %c5_i32_184 : i32 to vector<32x1xi32>
    %634 = arith.cmpi sge, %632, %633 : vector<32x1xi32>
    %635 = arith.select %634, %627, %625 : vector<32x1xi1>, vector<32x1xi32>
    %c8192_i32_185 = arith.constant 8192 : i32
    %636 = vector.broadcast %c8192_i32_185 : i32 to vector<32x1xi32>
    %637 = arith.ori %635, %636 : vector<32x1xi32>
    %638 = vector.broadcast %637 : vector<32x1xi32> to vector<32x16xi32>
    %639 = arith.cmpi sge, %455, %638 : vector<32x16xi32>
    %640 = arith.extui %639 : vector<32x16xi1> to vector<32x16xi32>
    %cst_186 = arith.constant dense<0> : vector<32xi32>
    %641 = vector.multi_reduction <add>, %640, %cst_186 [1] : vector<32x16xi32> to vector<32xi32>
    %642 = vector.shape_cast %641 : vector<32xi32> to vector<32x1xi32>
    %c5_i32_187 = arith.constant 5 : i32
    %643 = vector.broadcast %c5_i32_187 : i32 to vector<32x1xi32>
    %644 = arith.cmpi sge, %642, %643 : vector<32x1xi32>
    %645 = arith.select %644, %637, %635 : vector<32x1xi1>, vector<32x1xi32>
    %c4096_i32_188 = arith.constant 4096 : i32
    %646 = vector.broadcast %c4096_i32_188 : i32 to vector<32x1xi32>
    %647 = arith.ori %645, %646 : vector<32x1xi32>
    %648 = vector.broadcast %647 : vector<32x1xi32> to vector<32x16xi32>
    %649 = arith.cmpi sge, %455, %648 : vector<32x16xi32>
    %650 = arith.extui %649 : vector<32x16xi1> to vector<32x16xi32>
    %cst_189 = arith.constant dense<0> : vector<32xi32>
    %651 = vector.multi_reduction <add>, %650, %cst_189 [1] : vector<32x16xi32> to vector<32xi32>
    %652 = vector.shape_cast %651 : vector<32xi32> to vector<32x1xi32>
    %c5_i32_190 = arith.constant 5 : i32
    %653 = vector.broadcast %c5_i32_190 : i32 to vector<32x1xi32>
    %654 = arith.cmpi sge, %652, %653 : vector<32x1xi32>
    %655 = arith.select %654, %647, %645 : vector<32x1xi1>, vector<32x1xi32>
    %c2048_i32_191 = arith.constant 2048 : i32
    %656 = vector.broadcast %c2048_i32_191 : i32 to vector<32x1xi32>
    %657 = arith.ori %655, %656 : vector<32x1xi32>
    %658 = vector.broadcast %657 : vector<32x1xi32> to vector<32x16xi32>
    %659 = arith.cmpi sge, %455, %658 : vector<32x16xi32>
    %660 = arith.extui %659 : vector<32x16xi1> to vector<32x16xi32>
    %cst_192 = arith.constant dense<0> : vector<32xi32>
    %661 = vector.multi_reduction <add>, %660, %cst_192 [1] : vector<32x16xi32> to vector<32xi32>
    %662 = vector.shape_cast %661 : vector<32xi32> to vector<32x1xi32>
    %c5_i32_193 = arith.constant 5 : i32
    %663 = vector.broadcast %c5_i32_193 : i32 to vector<32x1xi32>
    %664 = arith.cmpi sge, %662, %663 : vector<32x1xi32>
    %665 = arith.select %664, %657, %655 : vector<32x1xi1>, vector<32x1xi32>
    %c1024_i32_194 = arith.constant 1024 : i32
    %666 = vector.broadcast %c1024_i32_194 : i32 to vector<32x1xi32>
    %667 = arith.ori %665, %666 : vector<32x1xi32>
    %668 = vector.broadcast %667 : vector<32x1xi32> to vector<32x16xi32>
    %669 = arith.cmpi sge, %455, %668 : vector<32x16xi32>
    %670 = arith.extui %669 : vector<32x16xi1> to vector<32x16xi32>
    %cst_195 = arith.constant dense<0> : vector<32xi32>
    %671 = vector.multi_reduction <add>, %670, %cst_195 [1] : vector<32x16xi32> to vector<32xi32>
    %672 = vector.shape_cast %671 : vector<32xi32> to vector<32x1xi32>
    %c5_i32_196 = arith.constant 5 : i32
    %673 = vector.broadcast %c5_i32_196 : i32 to vector<32x1xi32>
    %674 = arith.cmpi sge, %672, %673 : vector<32x1xi32>
    %675 = arith.select %674, %667, %665 : vector<32x1xi1>, vector<32x1xi32>
    %c512_i32_197 = arith.constant 512 : i32
    %676 = vector.broadcast %c512_i32_197 : i32 to vector<32x1xi32>
    %677 = arith.ori %675, %676 : vector<32x1xi32>
    %678 = vector.broadcast %677 : vector<32x1xi32> to vector<32x16xi32>
    %679 = arith.cmpi sge, %455, %678 : vector<32x16xi32>
    %680 = arith.extui %679 : vector<32x16xi1> to vector<32x16xi32>
    %cst_198 = arith.constant dense<0> : vector<32xi32>
    %681 = vector.multi_reduction <add>, %680, %cst_198 [1] : vector<32x16xi32> to vector<32xi32>
    %682 = vector.shape_cast %681 : vector<32xi32> to vector<32x1xi32>
    %c5_i32_199 = arith.constant 5 : i32
    %683 = vector.broadcast %c5_i32_199 : i32 to vector<32x1xi32>
    %684 = arith.cmpi sge, %682, %683 : vector<32x1xi32>
    %685 = arith.select %684, %677, %675 : vector<32x1xi1>, vector<32x1xi32>
    %c256_i32_200 = arith.constant 256 : i32
    %686 = vector.broadcast %c256_i32_200 : i32 to vector<32x1xi32>
    %687 = arith.ori %685, %686 : vector<32x1xi32>
    %688 = vector.broadcast %687 : vector<32x1xi32> to vector<32x16xi32>
    %689 = arith.cmpi sge, %455, %688 : vector<32x16xi32>
    %690 = arith.extui %689 : vector<32x16xi1> to vector<32x16xi32>
    %cst_201 = arith.constant dense<0> : vector<32xi32>
    %691 = vector.multi_reduction <add>, %690, %cst_201 [1] : vector<32x16xi32> to vector<32xi32>
    %692 = vector.shape_cast %691 : vector<32xi32> to vector<32x1xi32>
    %c5_i32_202 = arith.constant 5 : i32
    %693 = vector.broadcast %c5_i32_202 : i32 to vector<32x1xi32>
    %694 = arith.cmpi sge, %692, %693 : vector<32x1xi32>
    %695 = arith.select %694, %687, %685 : vector<32x1xi1>, vector<32x1xi32>
    %c128_i32_203 = arith.constant 128 : i32
    %696 = vector.broadcast %c128_i32_203 : i32 to vector<32x1xi32>
    %697 = arith.ori %695, %696 : vector<32x1xi32>
    %698 = vector.broadcast %697 : vector<32x1xi32> to vector<32x16xi32>
    %699 = arith.cmpi sge, %455, %698 : vector<32x16xi32>
    %700 = arith.extui %699 : vector<32x16xi1> to vector<32x16xi32>
    %cst_204 = arith.constant dense<0> : vector<32xi32>
    %701 = vector.multi_reduction <add>, %700, %cst_204 [1] : vector<32x16xi32> to vector<32xi32>
    %702 = vector.shape_cast %701 : vector<32xi32> to vector<32x1xi32>
    %c5_i32_205 = arith.constant 5 : i32
    %703 = vector.broadcast %c5_i32_205 : i32 to vector<32x1xi32>
    %704 = arith.cmpi sge, %702, %703 : vector<32x1xi32>
    %705 = arith.select %704, %697, %695 : vector<32x1xi1>, vector<32x1xi32>
    %c64_i32_206 = arith.constant 64 : i32
    %706 = vector.broadcast %c64_i32_206 : i32 to vector<32x1xi32>
    %707 = arith.ori %705, %706 : vector<32x1xi32>
    %708 = vector.broadcast %707 : vector<32x1xi32> to vector<32x16xi32>
    %709 = arith.cmpi sge, %455, %708 : vector<32x16xi32>
    %710 = arith.extui %709 : vector<32x16xi1> to vector<32x16xi32>
    %cst_207 = arith.constant dense<0> : vector<32xi32>
    %711 = vector.multi_reduction <add>, %710, %cst_207 [1] : vector<32x16xi32> to vector<32xi32>
    %712 = vector.shape_cast %711 : vector<32xi32> to vector<32x1xi32>
    %c5_i32_208 = arith.constant 5 : i32
    %713 = vector.broadcast %c5_i32_208 : i32 to vector<32x1xi32>
    %714 = arith.cmpi sge, %712, %713 : vector<32x1xi32>
    %715 = arith.select %714, %707, %705 : vector<32x1xi1>, vector<32x1xi32>
    %c32_i32_209 = arith.constant 32 : i32
    %716 = vector.broadcast %c32_i32_209 : i32 to vector<32x1xi32>
    %717 = arith.ori %715, %716 : vector<32x1xi32>
    %718 = vector.broadcast %717 : vector<32x1xi32> to vector<32x16xi32>
    %719 = arith.cmpi sge, %455, %718 : vector<32x16xi32>
    %720 = arith.extui %719 : vector<32x16xi1> to vector<32x16xi32>
    %cst_210 = arith.constant dense<0> : vector<32xi32>
    %721 = vector.multi_reduction <add>, %720, %cst_210 [1] : vector<32x16xi32> to vector<32xi32>
    %722 = vector.shape_cast %721 : vector<32xi32> to vector<32x1xi32>
    %c5_i32_211 = arith.constant 5 : i32
    %723 = vector.broadcast %c5_i32_211 : i32 to vector<32x1xi32>
    %724 = arith.cmpi sge, %722, %723 : vector<32x1xi32>
    %725 = arith.select %724, %717, %715 : vector<32x1xi1>, vector<32x1xi32>
    %c16_i32_212 = arith.constant 16 : i32
    %726 = vector.broadcast %c16_i32_212 : i32 to vector<32x1xi32>
    %727 = arith.ori %725, %726 : vector<32x1xi32>
    %728 = vector.broadcast %727 : vector<32x1xi32> to vector<32x16xi32>
    %729 = arith.cmpi sge, %455, %728 : vector<32x16xi32>
    %730 = arith.extui %729 : vector<32x16xi1> to vector<32x16xi32>
    %cst_213 = arith.constant dense<0> : vector<32xi32>
    %731 = vector.multi_reduction <add>, %730, %cst_213 [1] : vector<32x16xi32> to vector<32xi32>
    %732 = vector.shape_cast %731 : vector<32xi32> to vector<32x1xi32>
    %c5_i32_214 = arith.constant 5 : i32
    %733 = vector.broadcast %c5_i32_214 : i32 to vector<32x1xi32>
    %734 = arith.cmpi sge, %732, %733 : vector<32x1xi32>
    %735 = arith.select %734, %727, %725 : vector<32x1xi1>, vector<32x1xi32>
    %c8_i32_215 = arith.constant 8 : i32
    %736 = vector.broadcast %c8_i32_215 : i32 to vector<32x1xi32>
    %737 = arith.ori %735, %736 : vector<32x1xi32>
    %738 = vector.broadcast %737 : vector<32x1xi32> to vector<32x16xi32>
    %739 = arith.cmpi sge, %455, %738 : vector<32x16xi32>
    %740 = arith.extui %739 : vector<32x16xi1> to vector<32x16xi32>
    %cst_216 = arith.constant dense<0> : vector<32xi32>
    %741 = vector.multi_reduction <add>, %740, %cst_216 [1] : vector<32x16xi32> to vector<32xi32>
    %742 = vector.shape_cast %741 : vector<32xi32> to vector<32x1xi32>
    %c5_i32_217 = arith.constant 5 : i32
    %743 = vector.broadcast %c5_i32_217 : i32 to vector<32x1xi32>
    %744 = arith.cmpi sge, %742, %743 : vector<32x1xi32>
    %745 = arith.select %744, %737, %735 : vector<32x1xi1>, vector<32x1xi32>
    %c4_i32_218 = arith.constant 4 : i32
    %746 = vector.broadcast %c4_i32_218 : i32 to vector<32x1xi32>
    %747 = arith.ori %745, %746 : vector<32x1xi32>
    %748 = vector.broadcast %747 : vector<32x1xi32> to vector<32x16xi32>
    %749 = arith.cmpi sge, %455, %748 : vector<32x16xi32>
    %750 = arith.extui %749 : vector<32x16xi1> to vector<32x16xi32>
    %cst_219 = arith.constant dense<0> : vector<32xi32>
    %751 = vector.multi_reduction <add>, %750, %cst_219 [1] : vector<32x16xi32> to vector<32xi32>
    %752 = vector.shape_cast %751 : vector<32xi32> to vector<32x1xi32>
    %c5_i32_220 = arith.constant 5 : i32
    %753 = vector.broadcast %c5_i32_220 : i32 to vector<32x1xi32>
    %754 = arith.cmpi sge, %752, %753 : vector<32x1xi32>
    %755 = arith.select %754, %747, %745 : vector<32x1xi1>, vector<32x1xi32>
    %c2_i32_221 = arith.constant 2 : i32
    %756 = vector.broadcast %c2_i32_221 : i32 to vector<32x1xi32>
    %757 = arith.ori %755, %756 : vector<32x1xi32>
    %758 = vector.broadcast %757 : vector<32x1xi32> to vector<32x16xi32>
    %759 = arith.cmpi sge, %455, %758 : vector<32x16xi32>
    %760 = arith.extui %759 : vector<32x16xi1> to vector<32x16xi32>
    %cst_222 = arith.constant dense<0> : vector<32xi32>
    %761 = vector.multi_reduction <add>, %760, %cst_222 [1] : vector<32x16xi32> to vector<32xi32>
    %762 = vector.shape_cast %761 : vector<32xi32> to vector<32x1xi32>
    %c5_i32_223 = arith.constant 5 : i32
    %763 = vector.broadcast %c5_i32_223 : i32 to vector<32x1xi32>
    %764 = arith.cmpi sge, %762, %763 : vector<32x1xi32>
    %765 = arith.select %764, %757, %755 : vector<32x1xi1>, vector<32x1xi32>
    %c1_i32_224 = arith.constant 1 : i32
    %766 = vector.broadcast %c1_i32_224 : i32 to vector<32x1xi32>
    %767 = arith.ori %765, %766 : vector<32x1xi32>
    %768 = vector.broadcast %767 : vector<32x1xi32> to vector<32x16xi32>
    %769 = arith.cmpi sge, %455, %768 : vector<32x16xi32>
    %770 = arith.extui %769 : vector<32x16xi1> to vector<32x16xi32>
    %cst_225 = arith.constant dense<0> : vector<32xi32>
    %771 = vector.multi_reduction <add>, %770, %cst_225 [1] : vector<32x16xi32> to vector<32xi32>
    %772 = vector.shape_cast %771 : vector<32xi32> to vector<32x1xi32>
    %c5_i32_226 = arith.constant 5 : i32
    %773 = vector.broadcast %c5_i32_226 : i32 to vector<32x1xi32>
    %774 = arith.cmpi sge, %772, %773 : vector<32x1xi32>
    %775 = arith.select %774, %767, %765 : vector<32x1xi1>, vector<32x1xi32>
    %776 = vector.broadcast %775 : vector<32x1xi32> to vector<32x16xi32>
    %777 = arith.cmpi sge, %455, %776 : vector<32x16xi32>
    %cst_227 = arith.constant 0.000000e+00 : f32
    %778 = vector.broadcast %cst_227 : f32 to vector<32x16xf32>
    %779 = arith.select %777, %448, %778 : vector<32x16xi1>, vector<32x16xf32>
    %c0_228 = arith.constant 0 : index
    %c0_229 = arith.constant 0 : index
    %780 = vector.load %arg5[%c0_228, %c0_229] : memref<32x16xf32, #tpu.memory_space<vmem>>, vector<32x16xf32>
    tpu.vector_store %arg5[%c0_228, %c0_229], %779 {strides = array<i32>} : memref<32x16xf32, #tpu.memory_space<vmem>>, vector<32x16xf32>,
    return
  }
}

</mosaic_0001>

<llo_original>
// kernel: tpu_custom_call.1
$region0: #{tpu_custom_call.1}
  #allocation0 [shape = 'u32[]', space=smem, size = 0x4, offset = 0x4, fixed_abs, tag = 'smem constant byte address 0x4 - core index']
  #allocation1 [shape = 'u32[144,128]{1,0:T(1,128)}', space=vmem, size = 0x12000, scoped, tag = 'internal scratch']
  %s0 = inlined_call_operand.vmem [shape: f32[8], index: 0, kind: input, shape index: {}]
  %s1 = inlined_call_operand.vmem [shape: f32[8,32,8], index: 1, kind: input, shape index: {}]
  %s2 = inlined_call_operand.vmem [shape: f32[32,8], index: 2, kind: input, shape index: {}]
  %s3 = inlined_call_operand.vmem [shape: f32[8,16], index: 3, kind: input, shape index: {}]
  %s4 = inlined_call_operand.vmem [shape: f32[1,16], index: 4, kind: input, shape index: {}]
  %s5 = inlined_call_operand.vmem [shape: f32[32,16], index: 5, kind: output, shape index: {}]
  %s6 = sld [smem:[#allocation0]]
  $region34: #{tpu_custom_call.1} parent=0
    _
  %s8 = ssub.s32 1, %s6
  %s9 = scalar_select 0, %s8, %s6
  $region1: #{tpu_custom_call.1} parent=0
    #allocation2 [shape = 'u8[512]{0}', space=smem, size = 0x200, scoped, tag = 'input window, operand 0, single buffered']
    #allocation3 [shape = 's32[1]{0}', space=sflag, size = 0x4, scoped, tag = 'scoped memory for tpu_custom_call.1']
    %10 = vsyncpa [#allocation3], 0
    // Predicated region
    $region2: #{tpu_custom_call.1} parent=1 // pred_check
      _
    $region3: #{tpu_custom_call.1} parent=1 // pred_check_branch
      %12 = sbr.rel (0) target = $region5
    $region4: #{tpu_custom_call.1} parent=1 // pred_region
      %s14 = ssub.s32 16, 16
      %15 = vsyncadd [#allocation3], %s14
      %s17 = sshll.u32 %s0, 4
      %s18 = int_to_ptr.vmem [resolvable:$true] %s17
      %20 = dma.vmem_to_smem %s18, 16, [#allocation2], [#allocation3]
    $region5: #{tpu_custom_call.1} parent=1 // pred_fallthru
      _
    // Predicated region
    $region6: #{tpu_custom_call.1} parent=1 // pred_check
      _
    $region7: #{tpu_custom_call.1} parent=1 // pred_check_branch
      %22 = sbr.rel (0) target = $region9
    $region8: #{tpu_custom_call.1} parent=1 // pred_region
      _
    $region9: #{tpu_custom_call.1} parent=1 // pred_fallthru
      _
    // Predicated region
    $region10: #{tpu_custom_call.1} parent=1 // pred_check
      _
    $region11: #{tpu_custom_call.1} parent=1 // pred_check_branch
      %24 = sbr.rel (0) target = $region13
    $region12: #{tpu_custom_call.1} parent=1 // pred_region
      _
    $region13: #{tpu_custom_call.1} parent=1 // pred_fallthru
      _
    // Predicated region
    $region14: #{tpu_custom_call.1} parent=1 // pred_check
      _
    $region15: #{tpu_custom_call.1} parent=1 // pred_check_branch
      %26 = sbr.rel (0) target = $region17
    $region16: #{tpu_custom_call.1} parent=1 // pred_region
      _
    $region17: #{tpu_custom_call.1} parent=1 // pred_fallthru
      _
    // Predicated region
    $region18: #{tpu_custom_call.1} parent=1 // pred_check
      _
    $region19: #{tpu_custom_call.1} parent=1 // pred_check_branch
      %28 = sbr.rel (0) target = $region21
    $region20: #{tpu_custom_call.1} parent=1 // pred_region
      _
    $region21: #{tpu_custom_call.1} parent=1 // pred_fallthru
      _
    // Predicated region
    $region22: #{tpu_custom_call.1} parent=1 // pred_check
      _
    $region23: #{tpu_custom_call.1} parent=1 // pred_check_branch
      %30 = sbr.rel (0) target = $region25
    $region24: #{tpu_custom_call.1} parent=1 // pred_region
      %31 = dma.done [#allocation3], 16
    $region25: #{tpu_custom_call.1} parent=1 // pred_fallthru
      _
    %32 = sfence
    %v33 = vld [vmem:[%s2] sm:$0xff]
    %v34 = vld [vmem:[%s2 + $0x8] sm:$0xff]
    %v35 = vld [vmem:[%s2 + $0x10] sm:$0xff]
    %v36 = vld [vmem:[%s2 + $0x18] sm:$0xff]
    %s37 = sld [smem:[#allocation2]]
    %v38 = vld [vmem:[%s1] sm:$0xff]
    %v39 = vld [vmem:[%s1 + $0x8] sm:$0xff]
    %v40 = vld [vmem:[%s1 + $0x10] sm:$0xff]
    %v41 = vld [vmem:[%s1 + $0x18] sm:$0xff]
    %v42 = vstv %s37
    %v43 = vmul.f32 %v42, %v38
    %v44 = vmul.f32 %v42, %v39
    %v45 = vmul.f32 %v42, %v40
    %v46 = vmul.f32 %v42, %v41
    %v47 = vadd.f32 %v33, %v43
    %v48 = vadd.f32 %v34, %v44
    %v49 = vadd.f32 %v35, %v45
    %v50 = vadd.f32 %v36, %v46
    %s51 = sld [smem:[#allocation2 + $0x1]]
    %s52 = scalar_lea.vmem %s1, 32
    %v53 = vld [vmem:[%s52] sm:$0xff]
    %v54 = vld [vmem:[%s52 + $0x8] sm:$0xff]
    %v55 = vld [vmem:[%s52 + $0x10] sm:$0xff]
    %v56 = vld [vmem:[%s52 + $0x18] sm:$0xff]
    %v57 = vstv %s51
    %v58 = vmul.f32 %v57, %v53
    %v59 = vmul.f32 %v57, %v54
    %v60 = vmul.f32 %v57, %v55
    %v61 = vmul.f32 %v57, %v56
    %v62 = vadd.f32 %v47, %v58
    %v63 = vadd.f32 %v48, %v59
    %v64 = vadd.f32 %v49, %v60
    %v65 = vadd.f32 %v50, %v61
    %s66 = sld [smem:[#allocation2 + $0x2]]
    %s67 = scalar_lea.vmem %s1, 64
    %v68 = vld [vmem:[%s67] sm:$0xff]
    %v69 = vld [vmem:[%s67 + $0x8] sm:$0xff]
    %v70 = vld [vmem:[%s67 + $0x10] sm:$0xff]
    %v71 = vld [vmem:[%s67 + $0x18] sm:$0xff]
    %v72 = vstv %s66
    %v73 = vmul.f32 %v72, %v68
    %v74 = vmul.f32 %v72, %v69
    %v75 = vmul.f32 %v72, %v70
    %v76 = vmul.f32 %v72, %v71
    %v77 = vadd.f32 %v62, %v73
    %v78 = vadd.f32 %v63, %v74
    %v79 = vadd.f32 %v64, %v75
    %v80 = vadd.f32 %v65, %v76
    %s81 = sld [smem:[#allocation2 + $0x3]]
    %s82 = scalar_lea.vmem %s1, 96
    %v83 = vld [vmem:[%s82] sm:$0xff]
    %v84 = vld [vmem:[%s82 + $0x8] sm:$0xff]
    %v85 = vld [vmem:[%s82 + $0x10] sm:$0xff]
    %v86 = vld [vmem:[%s82 + $0x18] sm:$0xff]
    %v87 = vstv %s81
    %v88 = vmul.f32 %v87, %v83
    %v89 = vmul.f32 %v87, %v84
    %v90 = vmul.f32 %v87, %v85
    %v91 = vmul.f32 %v87, %v86
    %v92 = vadd.f32 %v77, %v88
    %v93 = vadd.f32 %v78, %v89
    %v94 = vadd.f32 %v79, %v90
    %v95 = vadd.f32 %v80, %v91
    %s96 = sld [smem:[#allocation2 + $0x4]]
    %s97 = scalar_lea.vmem %s1, 128
    %v98 = vld [vmem:[%s97] sm:$0xff]
    %v99 = vld [vmem:[%s97 + $0x8] sm:$0xff]
    %v100 = vld [vmem:[%s97 + $0x10] sm:$0xff]
    %v101 = vld [vmem:[%s97 + $0x18] sm:$0xff]
    %v102 = vstv %s96
    %v103 = vmul.f32 %v102, %v98
    %v104 = vmul.f32 %v102, %v99
    %v105 = vmul.f32 %v102, %v100
    %v106 = vmul.f32 %v102, %v101
    %v107 = vadd.f32 %v92, %v103
    %v108 = vadd.f32 %v93, %v104
    %v109 = vadd.f32 %v94, %v105
    %v110 = vadd.f32 %v95, %v106
    %s111 = sld [smem:[#allocation2 + $0x5]]
    %s112 = scalar_lea.vmem %s1, 160
    %v113 = vld [vmem:[%s112] sm:$0xff]
    %v114 = vld [vmem:[%s112 + $0x8] sm:$0xff]
    %v115 = vld [vmem:[%s112 + $0x10] sm:$0xff]
    %v116 = vld [vmem:[%s112 + $0x18] sm:$0xff]
    %v117 = vstv %s111
    %v118 = vmul.f32 %v117, %v113
    %v119 = vmul.f32 %v117, %v114
    %v120 = vmul.f32 %v117, %v115
    %v121 = vmul.f32 %v117, %v116
    %v122 = vadd.f32 %v107, %v118
    %v123 = vadd.f32 %v108, %v119
    %v124 = vadd.f32 %v109, %v120
    %v125 = vadd.f32 %v110, %v121
    %s126 = sld [smem:[#allocation2 + $0x6]]
    %s127 = scalar_lea.vmem %s1, 192
    %v128 = vld [vmem:[%s127] sm:$0xff]
    %v129 = vld [vmem:[%s127 + $0x8] sm:$0xff]
    %v130 = vld [vmem:[%s127 + $0x10] sm:$0xff]
    %v131 = vld [vmem:[%s127 + $0x18] sm:$0xff]
    %v132 = vstv %s126
    %v133 = vmul.f32 %v132, %v128
    %v134 = vmul.f32 %v132, %v129
    %v135 = vmul.f32 %v132, %v130
    %v136 = vmul.f32 %v132, %v131
    %v137 = vadd.f32 %v122, %v133
    %v138 = vadd.f32 %v123, %v134
    %v139 = vadd.f32 %v124, %v135
    %v140 = vadd.f32 %v125, %v136
    %s141 = sld [smem:[#allocation2 + $0x7]]
    %s142 = scalar_lea.vmem %s1, 224
    %v143 = vld [vmem:[%s142] sm:$0xff]
    %v144 = vld [vmem:[%s142 + $0x8] sm:$0xff]
    %v145 = vld [vmem:[%s142 + $0x10] sm:$0xff]
    %v146 = vld [vmem:[%s142 + $0x18] sm:$0xff]
    %v147 = vstv %s141
    %v148 = vmul.f32 %v147, %v143
    %v149 = vmul.f32 %v147, %v144
    %v150 = vmul.f32 %v147, %v145
    %v151 = vmul.f32 %v147, %v146
    %v152 = vadd.f32 %v137, %v148
    %v153 = vadd.f32 %v138, %v149
    %v154 = vadd.f32 %v139, %v150
    %v155 = vadd.f32 %v140, %v151
    %vm160 = vcmp.lt.s32.totalorder %v152, 0
    %vm161 = vcmp.lt.s32.totalorder %v153, 0
    %vm162 = vcmp.lt.s32.totalorder %v154, 0
    %vm163 = vcmp.lt.s32.totalorder %v155, 0
    %v164 = vsel %vm160, 2147483647, 0
    %v165 = vsel %vm161, 2147483647, 0
    %v166 = vsel %vm162, 2147483647, 0
    %v167 = vsel %vm163, 2147483647, 0
    %v168 = vxor.u32 %v152, %v164
    %v169 = vxor.u32 %v153, %v165
    %v170 = vxor.u32 %v154, %v166
    %v171 = vxor.u32 %v155, %v167
    %vm172 = vcmp.ge.s32.totalorder %v168, 0
    %vm173 = vcmp.ge.s32.totalorder %v169, 0
    %vm174 = vcmp.ge.s32.totalorder %v170, 0
    %vm175 = vcmp.ge.s32.totalorder %v171, 0
    %v176 = vsel %vm172, 1, 0
    %v177 = vsel %vm173, 1, 0
    %v178 = vsel %vm174, 1, 0
    %v179 = vsel %vm175, 1, 0
    %vm180 = vcmask 64512
    %v181 = vsel %vm180, %v176, 0
    %v182 = vand.u32 %v181, 65535
    %v183 = vshrl.u32 %v181, 16
    %v184 = vcvt.s32.f32 %v182
    %v185 = vcvt.s32.f32 %v183
    %186 = vadd.xlane.f32.xlu0 %v184
    %v187 = vpop.xlane.xlu0 %186
    %188 = vadd.xlane.f32.xlu0 %v185
    %v189 = vpop.xlane.xlu0 %188
    %v190 = vcvt.f32.s32 %v187
    %v191 = vcvt.f32.s32 %v189
    %v192 = vshll.u32 %v191, 16
    %v193 = vadd.s32 %v192, %v190
    %v194 = vsel %vm180, %v177, 0
    %v195 = vand.u32 %v194, 65535
    %v196 = vshrl.u32 %v194, 16
    %v197 = vcvt.s32.f32 %v195
    %v198 = vcvt.s32.f32 %v196
    %199 = vadd.xlane.f32.xlu0 %v197
    %v200 = vpop.xlane.xlu0 %199
    %201 = vadd.xlane.f32.xlu0 %v198
    %v202 = vpop.xlane.xlu0 %201
    %v203 = vcvt.f32.s32 %v200
    %v204 = vcvt.f32.s32 %v202
    %v205 = vshll.u32 %v204, 16
    %v206 = vadd.s32 %v205, %v203
    %v207 = vsel %vm180, %v178, 0
    %v208 = vand.u32 %v207, 65535
    %v209 = vshrl.u32 %v207, 16
    %v210 = vcvt.s32.f32 %v208
    %v211 = vcvt.s32.f32 %v209
    %212 = vadd.xlane.f32.xlu0 %v210
    %v213 = vpop.xlane.xlu0 %212
    %214 = vadd.xlane.f32.xlu0 %v211
    %v215 = vpop.xlane.xlu0 %214
    %v216 = vcvt.f32.s32 %v213
    %v217 = vcvt.f32.s32 %v215
    %v218 = vshll.u32 %v217, 16
    %v219 = vadd.s32 %v218, %v216
    %v220 = vsel %vm180, %v179, 0
    %v221 = vand.u32 %v220, 65535
    %v222 = vshrl.u32 %v220, 16
    %v223 = vcvt.s32.f32 %v221
    %v224 = vcvt.s32.f32 %v222
    %225 = vadd.xlane.f32.xlu0 %v223
    %v226 = vpop.xlane.xlu0 %225
    %227 = vadd.xlane.f32.xlu0 %v224
    %v228 = vpop.xlane.xlu0 %227
    %v229 = vcvt.f32.s32 %v226
    %v230 = vcvt.f32.s32 %v228
    %v231 = vshll.u32 %v230, 16
    %v232 = vadd.s32 %v231, %v229
    %v233 = vadd.s32 %v193, %v206
    %v234 = vadd.s32 %v219, %v232
    %v235 = vadd.s32 %v233, %v234
    %v236 = vrot.slane %v235, 4
    %v237 = vadd.s32 %v235, %v236
    %v238 = vrot.slane %v237, 2
    %v239 = vadd.s32 %v237, %v238
    %v240 = vrot.slane %v239, 1
    %v241 = vadd.s32 %v239, %v240
    %vm242 = vcmp.ge.s32.totalorder %v241, 77
    %v243 = vsel %vm242, 0, 2147483648
    %v244 = vor.u32 %v243, 1073741824
    %vm245 = vcmp.ge.s32.totalorder %v168, %v244
    %vm246 = vcmp.ge.s32.totalorder %v169, %v244
    %vm247 = vcmp.ge.s32.totalorder %v170, %v244
    %vm248 = vcmp.ge.s32.totalorder %v171, %v244
    %v249 = vsel %vm245, 1, 0
    %v250 = vsel %vm246, 1, 0
    %v251 = vsel %vm247, 1, 0
    %v252 = vsel %vm248, 1, 0
    %v253 = vsel %vm180, %v249, 0
    %v254 = vand.u32 %v253, 65535
    %v255 = vshrl.u32 %v253, 16
    %v256 = vcvt.s32.f32 %v254
    %v257 = vcvt.s32.f32 %v255
    %258 = vadd.xlane.f32.xlu0 %v256
    %v259 = vpop.xlane.xlu0 %258
    %260 = vadd.xlane.f32.xlu0 %v257
    %v261 = vpop.xlane.xlu0 %260
    %v262 = vcvt.f32.s32 %v259
    %v263 = vcvt.f32.s32 %v261
    %v264 = vshll.u32 %v263, 16
    %v265 = vadd.s32 %v264, %v262
    %v266 = vsel %vm180, %v250, 0
    %v267 = vand.u32 %v266, 65535
    %v268 = vshrl.u32 %v266, 16
    %v269 = vcvt.s32.f32 %v267
    %v270 = vcvt.s32.f32 %v268
    %271 = vadd.xlane.f32.xlu0 %v269
    %v272 = vpop.xlane.xlu0 %271
    %273 = vadd.xlane.f32.xlu0 %v270
    %v274 = vpop.xlane.xlu0 %273
    %v275 = vcvt.f32.s32 %v272
    %v276 = vcvt.f32.s32 %v274
    %v277 = vshll.u32 %v276, 16
    %v278 = vadd.s32 %v277, %v275
    %v279 = vsel %vm180, %v251, 0
    %v280 = vand.u32 %v279, 65535
    %v281 = vshrl.u32 %v279, 16
    %v282 = vcvt.s32.f32 %v280
    %v283 = vcvt.s32.f32 %v281
    %284 = vadd.xlane.f32.xlu0 %v282
    %v285 = vpop.xlane.xlu0 %284
    %286 = vadd.xlane.f32.xlu0 %v283
    %v287 = vpop.xlane.xlu0 %286
    %v288 = vcvt.f32.s32 %v285
    %v289 = vcvt.f32.s32 %v287
    %v290 = vshll.u32 %v289, 16
    %v291 = vadd.s32 %v290, %v288
    %v292 = vsel %vm180, %v252, 0
    %v293 = vand.u32 %v292, 65535
    %v294 = vshrl.u32 %v292, 16
    %v295 = vcvt.s32.f32 %v293
    %v296 = vcvt.s32.f32 %v294
    %297 = vadd.xlane.f32.xlu0 %v295
    %v298 = vpop.xlane.xlu0 %297
    %299 = vadd.xlane.f32.xlu0 %v296
    %v300 = vpop.xlane.xlu0 %299
    %v301 = vcvt.f32.s32 %v298
    %v302 = vcvt.f32.s32 %v300
    %v303 = vshll.u32 %v302, 16
    %v304 = vadd.s32 %v303, %v301
    %v305 = vadd.s32 %v265, %v278
    %v306 = vadd.s32 %v291, %v304
    %v307 = vadd.s32 %v305, %v306
    %v308 = vrot.slane %v307, 4
    %v309 = vadd.s32 %v307, %v308
    %v310 = vrot.slane %v309, 2
    %v311 = vadd.s32 %v309, %v310
    %v312 = vrot.slane %v311, 1
    %v313 = vadd.s32 %v311, %v312
    %vm314 = vcmp.ge.s32.totalorder %v313, 77
    %v315 = vsel %vm314, %v244, %v243
    %v316 = vor.u32 %v315, 536870912
    %vm317 = vcmp.ge.s32.totalorder %v168, %v316
    %vm318 = vcmp.ge.s32.totalorder %v169, %v316
    %vm319 = vcmp.ge.s32.totalorder %v170, %v316
    %vm320 = vcmp.ge.s32.totalorder %v171, %v316
    %v321 = vsel %vm317, 1, 0
    %v322 = vsel %vm318, 1, 0
    %v323 = vsel %vm319, 1, 0
    %v324 = vsel %vm320, 1, 0
    %v325 = vsel %vm180, %v321, 0
    %v326 = vand.u32 %v325, 65535
    %v327 = vshrl.u32 %v325, 16
    %v328 = vcvt.s32.f32 %v326
    %v329 = vcvt.s32.f32 %v327
    %330 = vadd.xlane.f32.xlu0 %v328
    %v331 = vpop.xlane.xlu0 %330
    %332 = vadd.xlane.f32.xlu0 %v329
    %v333 = vpop.xlane.xlu0 %332
    %v334 = vcvt.f32.s32 %v331
    %v335 = vcvt.f32.s32 %v333
    %v336 = vshll.u32 %v335, 16
    %v337 = vadd.s32 %v336, %v334
    %v338 = vsel %vm180, %v322, 0
    %v339 = vand.u32 %v338, 65535
    %v340 = vshrl.u32 %v338, 16
    %v341 = vcvt.s32.f32 %v339
    %v342 = vcvt.s32.f32 %v340
    %343 = vadd.xlane.f32.xlu0 %v341
    %v344 = vpop.xlane.xlu0 %343
    %345 = vadd.xlane.f32.xlu0 %v342
    %v346 = vpop.xlane.xlu0 %345
    %v347 = vcvt.f32.s32 %v344
    %v348 = vcvt.f32.s32 %v346
    %v349 = vshll.u32 %v348, 16
    %v350 = vadd.s32 %v349, %v347
    %v351 = vsel %vm180, %v323, 0
    %v352 = vand.u32 %v351, 65535
    %v353 = vshrl.u32 %v351, 16
    %v354 = vcvt.s32.f32 %v352
    %v355 = vcvt.s32.f32 %v353
    %356 = vadd.xlane.f32.xlu0 %v354
    %v357 = vpop.xlane.xlu0 %356
    %358 = vadd.xlane.f32.xlu0 %v355
    %v359 = vpop.xlane.xlu0 %358
    %v360 = vcvt.f32.s32 %v357
    %v361 = vcvt.f32.s32 %v359
    %v362 = vshll.u32 %v361, 16
    %v363 = vadd.s32 %v362, %v360
    %v364 = vsel %vm180, %v324, 0
    %v365 = vand.u32 %v364, 65535
    %v366 = vshrl.u32 %v364, 16
    %v367 = vcvt.s32.f32 %v365
    %v368 = vcvt.s32.f32 %v366
    %369 = vadd.xlane.f32.xlu0 %v367
    %v370 = vpop.xlane.xlu0 %369
    %371 = vadd.xlane.f32.xlu0 %v368
    %v372 = vpop.xlane.xlu0 %371
    %v373 = vcvt.f32.s32 %v370
    %v374 = vcvt.f32.s32 %v372
    %v375 = vshll.u32 %v374, 16
    %v376 = vadd.s32 %v375, %v373
    %v377 = vadd.s32 %v337, %v350
    %v378 = vadd.s32 %v363, %v376
    %v379 = vadd.s32 %v377, %v378
    %v380 = vrot.slane %v379, 4
    %v381 = vadd.s32 %v379, %v380
    %v382 = vrot.slane %v381, 2
    %v383 = vadd.s32 %v381, %v382
    %v384 = vrot.slane %v383, 1
    %v385 = vadd.s32 %v383, %v384
    %vm386 = vcmp.ge.s32.totalorder %v385, 77
    %v387 = vsel %vm386, %v316, %v315
    %v388 = vor.u32 %v387, 268435456
    %vm389 = vcmp.ge.s32.totalorder %v168, %v388
    %vm390 = vcmp.ge.s32.totalorder %v169, %v388
    %vm391 = vcmp.ge.s32.totalorder %v170, %v388
    %vm392 = vcmp.ge.s32.totalorder %v171, %v388
    %v393 = vsel %vm389, 1, 0
    %v394 = vsel %vm390, 1, 0
    %v395 = vsel %vm391, 1, 0
    %v396 = vsel %vm392, 1, 0
    %v397 = vsel %vm180, %v393, 0
    %v398 = vand.u32 %v397, 65535
    %v399 = vshrl.u32 %v397, 16
    %v400 = vcvt.s32.f32 %v398
    %v401 = vcvt.s32.f32 %v399
    %402 = vadd.xlane.f32.xlu0 %v400
    %v403 = vpop.xlane.xlu0 %402
    %404 = vadd.xlane.f32.xlu0 %v401
    %v405 = vpop.xlane.xlu0 %404
    %v406 = vcvt.f32.s32 %v403
    %v407 = vcvt.f32.s32 %v405
    %v408 = vshll.u32 %v407, 16
    %v409 = vadd.s32 %v408, %v406
    %v410 = vsel %vm180, %v394, 0
    %v411 = vand.u32 %v410, 65535
    %v412 = vshrl.u32 %v410, 16
    %v413 = vcvt.s32.f32 %v411
    %v414 = vcvt.s32.f32 %v412
    %415 = vadd.xlane.f32.xlu0 %v413
    %v416 = vpop.xlane.xlu0 %415
    %417 = vadd.xlane.f32.xlu0 %v414
    %v418 = vpop.xlane.xlu0 %417
    %v419 = vcvt.f32.s32 %v416
    %v420 = vcvt.f32.s32 %v418
    %v421 = vshll.u32 %v420, 16
    %v422 = vadd.s32 %v421, %v419
    %v423 = vsel %vm180, %v395, 0
    %v424 = vand.u32 %v423, 65535
    %v425 = vshrl.u32 %v423, 16
    %v426 = vcvt.s32.f32 %v424
    %v427 = vcvt.s32.f32 %v425
    %428 = vadd.xlane.f32.xlu0 %v426
    %v429 = vpop.xlane.xlu0 %428
    %430 = vadd.xlane.f32.xlu0 %v427
    %v431 = vpop.xlane.xlu0 %430
    %v432 = vcvt.f32.s32 %v429
    %v433 = vcvt.f32.s32 %v431
    %v434 = vshll.u32 %v433, 16
    %v435 = vadd.s32 %v434, %v432
    %v436 = vsel %vm180, %v396, 0
    %v437 = vand.u32 %v436, 65535
    %v438 = vshrl.u32 %v436, 16
    %v439 = vcvt.s32.f32 %v437
    %v440 = vcvt.s32.f32 %v438
    %441 = vadd.xlane.f32.xlu0 %v439
    %v442 = vpop.xlane.xlu0 %441
    %443 = vadd.xlane.f32.xlu0 %v440
    %v444 = vpop.xlane.xlu0 %443
    %v445 = vcvt.f32.s32 %v442
    %v446 = vcvt.f32.s32 %v444
    %v447 = vshll.u32 %v446, 16
    %v448 = vadd.s32 %v447, %v445
    %v449 = vadd.s32 %v409, %v422
    %v450 = vadd.s32 %v435, %v448
    %v451 = vadd.s32 %v449, %v450
    %v452 = vrot.slane %v451, 4
    %v453 = vadd.s32 %v451, %v452
    %v454 = vrot.slane %v453, 2
    %v455 = vadd.s32 %v453, %v454
    %v456 = vrot.slane %v455, 1
    %v457 = vadd.s32 %v455, %v456
    %vm458 = vcmp.ge.s32.totalorder %v457, 77
    %v459 = vsel %vm458, %v388, %v387
    %v460 = vor.u32 %v459, 134217728
    %vm461 = vcmp.ge.s32.totalorder %v168, %v460
    %vm462 = vcmp.ge.s32.totalorder %v169, %v460
    %vm463 = vcmp.ge.s32.totalorder %v170, %v460
    %vm464 = vcmp.ge.s32.totalorder %v171, %v460
    %v465 = vsel %vm461, 1, 0
    %v466 = vsel %vm462, 1, 0
    %v467 = vsel %vm463, 1, 0
    %v468 = vsel %vm464, 1, 0
    %v469 = vsel %vm180, %v465, 0
    %v470 = vand.u32 %v469, 65535
    %v471 = vshrl.u32 %v469, 16
    %v472 = vcvt.s32.f32 %v470
    %v473 = vcvt.s32.f32 %v471
    %474 = vadd.xlane.f32.xlu0 %v472
    %v475 = vpop.xlane.xlu0 %474
    %476 = vadd.xlane.f32.xlu0 %v473
    %v477 = vpop.xlane.xlu0 %476
    %v478 = vcvt.f32.s32 %v475
    %v479 = vcvt.f32.s32 %v477
    %v480 = vshll.u32 %v479, 16
    %v481 = vadd.s32 %v480, %v478
    %v482 = vsel %vm180, %v466, 0
    %v483 = vand.u32 %v482, 65535
    %v484 = vshrl.u32 %v482, 16
    %v485 = vcvt.s32.f32 %v483
    %v486 = vcvt.s32.f32 %v484
    %487 = vadd.xlane.f32.xlu0 %v485
    %v488 = vpop.xlane.xlu0 %487
    %489 = vadd.xlane.f32.xlu0 %v486
    %v490 = vpop.xlane.xlu0 %489
    %v491 = vcvt.f32.s32 %v488
    %v492 = vcvt.f32.s32 %v490
    %v493 = vshll.u32 %v492, 16
    %v494 = vadd.s32 %v493, %v491
    %v495 = vsel %vm180, %v467, 0
    %v496 = vand.u32 %v495, 65535
    %v497 = vshrl.u32 %v495, 16
    %v498 = vcvt.s32.f32 %v496
    %v499 = vcvt.s32.f32 %v497
    %500 = vadd.xlane.f32.xlu0 %v498
    %v501 = vpop.xlane.xlu0 %500
    %502 = vadd.xlane.f32.xlu0 %v499
    %v503 = vpop.xlane.xlu0 %502
    %v504 = vcvt.f32.s32 %v501
    %v505 = vcvt.f32.s32 %v503
    %v506 = vshll.u32 %v505, 16
    %v507 = vadd.s32 %v506, %v504
    %v508 = vsel %vm180, %v468, 0
    %v509 = vand.u32 %v508, 65535
    %v510 = vshrl.u32 %v508, 16
    %v511 = vcvt.s32.f32 %v509
    %v512 = vcvt.s32.f32 %v510
    %513 = vadd.xlane.f32.xlu0 %v511
    %v514 = vpop.xlane.xlu0 %513
    %515 = vadd.xlane.f32.xlu0 %v512
    %v516 = vpop.xlane.xlu0 %515
    %v517 = vcvt.f32.s32 %v514
    %v518 = vcvt.f32.s32 %v516
    %v519 = vshll.u32 %v518, 16
    %v520 = vadd.s32 %v519, %v517
    %v521 = vadd.s32 %v481, %v494
    %v522 = vadd.s32 %v507, %v520
    %v523 = vadd.s32 %v521, %v522
    %v524 = vrot.slane %v523, 4
    %v525 = vadd.s32 %v523, %v524
    %v526 = vrot.slane %v525, 2
    %v527 = vadd.s32 %v525, %v526
    %v528 = vrot.slane %v527, 1
    %v529 = vadd.s32 %v527, %v528
    %vm530 = vcmp.ge.s32.totalorder %v529, 77
    %v531 = vsel %vm530, %v460, %v459
    %v532 = vor.u32 %v531, 67108864
    %vm533 = vcmp.ge.s32.totalorder %v168, %v532
    %vm534 = vcmp.ge.s32.totalorder %v169, %v532
    %vm535 = vcmp.ge.s32.totalorder %v170, %v532
    %vm536 = vcmp.ge.s32.totalorder %v171, %v532
    %v537 = vsel %vm533, 1, 0
    %v538 = vsel %vm534, 1, 0
    %v539 = vsel %vm535, 1, 0
    %v540 = vsel %vm536, 1, 0
    %v541 = vsel %vm180, %v537, 0
    %v542 = vand.u32 %v541, 65535
    %v543 = vshrl.u32 %v541, 16
    %v544 = vcvt.s32.f32 %v542
    %v545 = vcvt.s32.f32 %v543
    %546 = vadd.xlane.f32.xlu0 %v544
    %v547 = vpop.xlane.xlu0 %546
    %548 = vadd.xlane.f32.xlu0 %v545
    %v549 = vpop.xlane.xlu0 %548
    %v550 = vcvt.f32.s32 %v547
    %v551 = vcvt.f32.s32 %v549
    %v552 = vshll.u32 %v551, 16
    %v553 = vadd.s32 %v552, %v550
    %v554 = vsel %vm180, %v538, 0
    %v555 = vand.u32 %v554, 65535
    %v556 = vshrl.u32 %v554, 16
    %v557 = vcvt.s32.f32 %v555
    %v558 = vcvt.s32.f32 %v556
    %559 = vadd.xlane.f32.xlu0 %v557
    %v560 = vpop.xlane.xlu0 %559
    %561 = vadd.xlane.f32.xlu0 %v558
    %v562 = vpop.xlane.xlu0 %561
    %v563 = vcvt.f32.s32 %v560
    %v564 = vcvt.f32.s32 %v562
    %v565 = vshll.u32 %v564, 16
    %v566 = vadd.s32 %v565, %v563
    %v567 = vsel %vm180, %v539, 0
    %v568 = vand.u32 %v567, 65535
    %v569 = vshrl.u32 %v567, 16
    %v570 = vcvt.s32.f32 %v568
    %v571 = vcvt.s32.f32 %v569
    %572 = vadd.xlane.f32.xlu0 %v570
    %v573 = vpop.xlane.xlu0 %572
    %574 = vadd.xlane.f32.xlu0 %v571
    %v575 = vpop.xlane.xlu0 %574
    %v576 = vcvt.f32.s32 %v573
    %v577 = vcvt.f32.s32 %v575
    %v578 = vshll.u32 %v577, 16
    %v579 = vadd.s32 %v578, %v576
    %v580 = vsel %vm180, %v540, 0
    %v581 = vand.u32 %v580, 65535
    %v582 = vshrl.u32 %v580, 16
    %v583 = vcvt.s32.f32 %v581
    %v584 = vcvt.s32.f32 %v582
    %585 = vadd.xlane.f32.xlu0 %v583
    %v586 = vpop.xlane.xlu0 %585
    %587 = vadd.xlane.f32.xlu0 %v584
    %v588 = vpop.xlane.xlu0 %587
    %v589 = vcvt.f32.s32 %v586
    %v590 = vcvt.f32.s32 %v588
    %v591 = vshll.u32 %v590, 16
    %v592 = vadd.s32 %v591, %v589
    %v593 = vadd.s32 %v553, %v566
    %v594 = vadd.s32 %v579, %v592
    %v595 = vadd.s32 %v593, %v594
    %v596 = vrot.slane %v595, 4
    %v597 = vadd.s32 %v595, %v596
    %v598 = vrot.slane %v597, 2
    %v599 = vadd.s32 %v597, %v598
    %v600 = vrot.slane %v599, 1
    %v601 = vadd.s32 %v599, %v600
    %vm602 = vcmp.ge.s32.totalorder %v601, 77
    %v603 = vsel %vm602, %v532, %v531
    %v604 = vor.u32 %v603, 33554432
    %vm605 = vcmp.ge.s32.totalorder %v168, %v604
    %vm606 = vcmp.ge.s32.totalorder %v169, %v604
    %vm607 = vcmp.ge.s32.totalorder %v170, %v604
    %vm608 = vcmp.ge.s32.totalorder %v171, %v604
    %v609 = vsel %vm605, 1, 0
    %v610 = vsel %vm606, 1, 0
    %v611 = vsel %vm607, 1, 0
    %v612 = vsel %vm608, 1, 0
    %v613 = vsel %vm180, %v609, 0
    %v614 = vand.u32 %v613, 65535
    %v615 = vshrl.u32 %v613, 16
    %v616 = vcvt.s32.f32 %v614
    %v617 = vcvt.s32.f32 %v615
    %618 = vadd.xlane.f32.xlu0 %v616
    %v619 = vpop.xlane.xlu0 %618
    %620 = vadd.xlane.f32.xlu0 %v617
    %v621 = vpop.xlane.xlu0 %620
    %v622 = vcvt.f32.s32 %v619
    %v623 = vcvt.f32.s32 %v621
    %v624 = vshll.u32 %v623, 16
    %v625 = vadd.s32 %v624, %v622
    %v626 = vsel %vm180, %v610, 0
    %v627 = vand.u32 %v626, 65535
    %v628 = vshrl.u32 %v626, 16
    %v629 = vcvt.s32.f32 %v627
    %v630 = vcvt.s32.f32 %v628
    %631 = vadd.xlane.f32.xlu0 %v629
    %v632 = vpop.xlane.xlu0 %631
    %633 = vadd.xlane.f32.xlu0 %v630
    %v634 = vpop.xlane.xlu0 %633
    %v635 = vcvt.f32.s32 %v632
    %v636 = vcvt.f32.s32 %v634
    %v637 = vshll.u32 %v636, 16
    %v638 = vadd.s32 %v637, %v635
    %v639 = vsel %vm180, %v611, 0
    %v640 = vand.u32 %v639, 65535
    %v641 = vshrl.u32 %v639, 16
    %v642 = vcvt.s32.f32 %v640
    %v643 = vcvt.s32.f32 %v641
    %644 = vadd.xlane.f32.xlu0 %v642
    %v645 = vpop.xlane.xlu0 %644
    %646 = vadd.xlane.f32.xlu0 %v643
    %v647 = vpop.xlane.xlu0 %646
    %v648 = vcvt.f32.s32 %v645
    %v649 = vcvt.f32.s32 %v647
    %v650 = vshll.u32 %v649, 16
    %v651 = vadd.s32 %v650, %v648
    %v652 = vsel %vm180, %v612, 0
    %v653 = vand.u32 %v652, 65535
    %v654 = vshrl.u32 %v652, 16
    %v655 = vcvt.s32.f32 %v653
    %v656 = vcvt.s32.f32 %v654
    %657 = vadd.xlane.f32.xlu0 %v655
    %v658 = vpop.xlane.xlu0 %657
    %659 = vadd.xlane.f32.xlu0 %v656
    %v660 = vpop.xlane.xlu0 %659
    %v661 = vcvt.f32.s32 %v658
    %v662 = vcvt.f32.s32 %v660
    %v663 = vshll.u32 %v662, 16
    %v664 = vadd.s32 %v663, %v661
    %v665 = vadd.s32 %v625, %v638
    %v666 = vadd.s32 %v651, %v664
    %v667 = vadd.s32 %v665, %v666
    %v668 = vrot.slane %v667, 4
    %v669 = vadd.s32 %v667, %v668
    %v670 = vrot.slane %v669, 2
    %v671 = vadd.s32 %v669, %v670
    %v672 = vrot.slane %v671, 1
    %v673 = vadd.s32 %v671, %v672
    %vm674 = vcmp.ge.s32.totalorder %v673, 77
    %v675 = vsel %vm674, %v604, %v603
    %v676 = vor.u32 %v675, 16777216
    %vm677 = vcmp.ge.s32.totalorder %v168, %v676
    %vm678 = vcmp.ge.s32.totalorder %v169, %v676
    %vm679 = vcmp.ge.s32.totalorder %v170, %v676
    %vm680 = vcmp.ge.s32.totalorder %v171, %v676
    %v681 = vsel %vm677, 1, 0
    %v682 = vsel %vm678, 1, 0
    %v683 = vsel %vm679, 1, 0
    %v684 = vsel %vm680, 1, 0
    %v685 = vsel %vm180, %v681, 0
    %v686 = vand.u32 %v685, 65535
    %v687 = vshrl.u32 %v685, 16
    %v688 = vcvt.s32.f32 %v686
    %v689 = vcvt.s32.f32 %v687
    %690 = vadd.xlane.f32.xlu0 %v688
    %v691 = vpop.xlane.xlu0 %690
    %692 = vadd.xlane.f32.xlu0 %v689
    %v693 = vpop.xlane.xlu0 %692
    %v694 = vcvt.f32.s32 %v691
    %v695 = vcvt.f32.s32 %v693
    %v696 = vshll.u32 %v695, 16
    %v697 = vadd.s32 %v696, %v694
    %v698 = vsel %vm180, %v682, 0
    %v699 = vand.u32 %v698, 65535
    %v700 = vshrl.u32 %v698, 16
    %v701 = vcvt.s32.f32 %v699
    %v702 = vcvt.s32.f32 %v700
    %703 = vadd.xlane.f32.xlu0 %v701
    %v704 = vpop.xlane.xlu0 %703
    %705 = vadd.xlane.f32.xlu0 %v702
    %v706 = vpop.xlane.xlu0 %705
    %v707 = vcvt.f32.s32 %v704
    %v708 = vcvt.f32.s32 %v706
    %v709 = vshll.u32 %v708, 16
    %v710 = vadd.s32 %v709, %v707
    %v711 = vsel %vm180, %v683, 0
    %v712 = vand.u32 %v711, 65535
    %v713 = vshrl.u32 %v711, 16
    %v714 = vcvt.s32.f32 %v712
    %v715 = vcvt.s32.f32 %v713
    %716 = vadd.xlane.f32.xlu0 %v714
    %v717 = vpop.xlane.xlu0 %716
    %718 = vadd.xlane.f32.xlu0 %v715
    %v719 = vpop.xlane.xlu0 %718
    %v720 = vcvt.f32.s32 %v717
    %v721 = vcvt.f32.s32 %v719
    %v722 = vshll.u32 %v721, 16
    %v723 = vadd.s32 %v722, %v720
    %v724 = vsel %vm180, %v684, 0
    %v725 = vand.u32 %v724, 65535
    %v726 = vshrl.u32 %v724, 16
    %v727 = vcvt.s32.f32 %v725
    %v728 = vcvt.s32.f32 %v726
    %729 = vadd.xlane.f32.xlu0 %v727
    %v730 = vpop.xlane.xlu0 %729
    %731 = vadd.xlane.f32.xlu0 %v728
    %v732 = vpop.xlane.xlu0 %731
    %v733 = vcvt.f32.s32 %v730
    %v734 = vcvt.f32.s32 %v732
    %v735 = vshll.u32 %v734, 16
    %v736 = vadd.s32 %v735, %v733
    %v737 = vadd.s32 %v697, %v710
    %v738 = vadd.s32 %v723, %v736
    %v739 = vadd.s32 %v737, %v738
    %v740 = vrot.slane %v739, 4
    %v741 = vadd.s32 %v739, %v740
    %v742 = vrot.slane %v741, 2
    %v743 = vadd.s32 %v741, %v742
    %v744 = vrot.slane %v743, 1
    %v745 = vadd.s32 %v743, %v744
    %vm746 = vcmp.ge.s32.totalorder %v745, 77
    %v747 = vsel %vm746, %v676, %v675
    %v748 = vor.u32 %v747, 8388608
    %vm749 = vcmp.ge.s32.totalorder %v168, %v748
    %vm750 = vcmp.ge.s32.totalorder %v169, %v748
    %vm751 = vcmp.ge.s32.totalorder %v170, %v748
    %vm752 = vcmp.ge.s32.totalorder %v171, %v748
    %v753 = vsel %vm749, 1, 0
    %v754 = vsel %vm750, 1, 0
    %v755 = vsel %vm751, 1, 0
    %v756 = vsel %vm752, 1, 0
    %v757 = vsel %vm180, %v753, 0
    %v758 = vand.u32 %v757, 65535
    %v759 = vshrl.u32 %v757, 16
    %v760 = vcvt.s32.f32 %v758
    %v761 = vcvt.s32.f32 %v759
    %762 = vadd.xlane.f32.xlu0 %v760
    %v763 = vpop.xlane.xlu0 %762
    %764 = vadd.xlane.f32.xlu0 %v761
    %v765 = vpop.xlane.xlu0 %764
    %v766 = vcvt.f32.s32 %v763
    %v767 = vcvt.f32.s32 %v765
    %v768 = vshll.u32 %v767, 16
    %v769 = vadd.s32 %v768, %v766
    %v770 = vsel %vm180, %v754, 0
    %v771 = vand.u32 %v770, 65535
    %v772 = vshrl.u32 %v770, 16
    %v773 = vcvt.s32.f32 %v771
    %v774 = vcvt.s32.f32 %v772
    %775 = vadd.xlane.f32.xlu0 %v773
    %v776 = vpop.xlane.xlu0 %775
    %777 = vadd.xlane.f32.xlu0 %v774
    %v778 = vpop.xlane.xlu0 %777
    %v779 = vcvt.f32.s32 %v776
    %v780 = vcvt.f32.s32 %v778
    %v781 = vshll.u32 %v780, 16
    %v782 = vadd.s32 %v781, %v779
    %v783 = vsel %vm180, %v755, 0
    %v784 = vand.u32 %v783, 65535
    %v785 = vshrl.u32 %v783, 16
    %v786 = vcvt.s32.f32 %v784
    %v787 = vcvt.s32.f32 %v785
    %788 = vadd.xlane.f32.xlu0 %v786
    %v789 = vpop.xlane.xlu0 %788
    %790 = vadd.xlane.f32.xlu0 %v787
    %v791 = vpop.xlane.xlu0 %790
    %v792 = vcvt.f32.s32 %v789
    %v793 = vcvt.f32.s32 %v791
    %v794 = vshll.u32 %v793, 16
    %v795 = vadd.s32 %v794, %v792
    %v796 = vsel %vm180, %v756, 0
    %v797 = vand.u32 %v796, 65535
    %v798 = vshrl.u32 %v796, 16
    %v799 = vcvt.s32.f32 %v797
    %v800 = vcvt.s32.f32 %v798
    %801 = vadd.xlane.f32.xlu0 %v799
    %v802 = vpop.xlane.xlu0 %801
    %803 = vadd.xlane.f32.xlu0 %v800
    %v804 = vpop.xlane.xlu0 %803
    %v805 = vcvt.f32.s32 %v802
    %v806 = vcvt.f32.s32 %v804
    %v807 = vshll.u32 %v806, 16
    %v808 = vadd.s32 %v807, %v805
    %v809 = vadd.s32 %v769, %v782
    %v810 = vadd.s32 %v795, %v808
    %v811 = vadd.s32 %v809, %v810
    %v812 = vrot.slane %v811, 4
    %v813 = vadd.s32 %v811, %v812
    %v814 = vrot.slane %v813, 2
    %v815 = vadd.s32 %v813, %v814
    %v816 = vrot.slane %v815, 1
    %v817 = vadd.s32 %v815, %v816
    %vm818 = vcmp.ge.s32.totalorder %v817, 77
    %v819 = vsel %vm818, %v748, %v747
    %v820 = vor.u32 %v819, 4194304
    %vm821 = vcmp.ge.s32.totalorder %v168, %v820
    %vm822 = vcmp.ge.s32.totalorder %v169, %v820
    %vm823 = vcmp.ge.s32.totalorder %v170, %v820
    %vm824 = vcmp.ge.s32.totalorder %v171, %v820
    %v825 = vsel %vm821, 1, 0
    %v826 = vsel %vm822, 1, 0
    %v827 = vsel %vm823, 1, 0
    %v828 = vsel %vm824, 1, 0
    %v829 = vsel %vm180, %v825, 0
    %v830 = vand.u32 %v829, 65535
    %v831 = vshrl.u32 %v829, 16
    %v832 = vcvt.s32.f32 %v830
    %v833 = vcvt.s32.f32 %v831
    %834 = vadd.xlane.f32.xlu0 %v832
    %v835 = vpop.xlane.xlu0 %834
    %836 = vadd.xlane.f32.xlu0 %v833
    %v837 = vpop.xlane.xlu0 %836
    %v838 = vcvt.f32.s32 %v835
    %v839 = vcvt.f32.s32 %v837
    %v840 = vshll.u32 %v839, 16
    %v841 = vadd.s32 %v840, %v838
    %v842 = vsel %vm180, %v826, 0
    %v843 = vand.u32 %v842, 65535
    %v844 = vshrl.u32 %v842, 16
    %v845 = vcvt.s32.f32 %v843
    %v846 = vcvt.s32.f32 %v844
    %847 = vadd.xlane.f32.xlu0 %v845
    %v848 = vpop.xlane.xlu0 %847
    %849 = vadd.xlane.f32.xlu0 %v846
    %v850 = vpop.xlane.xlu0 %849
    %v851 = vcvt.f32.s32 %v848
    %v852 = vcvt.f32.s32 %v850
    %v853 = vshll.u32 %v852, 16
    %v854 = vadd.s32 %v853, %v851
    %v855 = vsel %vm180, %v827, 0
    %v856 = vand.u32 %v855, 65535
    %v857 = vshrl.u32 %v855, 16
    %v858 = vcvt.s32.f32 %v856
    %v859 = vcvt.s32.f32 %v857
    %860 = vadd.xlane.f32.xlu0 %v858
    %v861 = vpop.xlane.xlu0 %860
    %862 = vadd.xlane.f32.xlu0 %v859
    %v863 = vpop.xlane.xlu0 %862
    %v864 = vcvt.f32.s32 %v861
    %v865 = vcvt.f32.s32 %v863
    %v866 = vshll.u32 %v865, 16
    %v867 = vadd.s32 %v866, %v864
    %v868 = vsel %vm180, %v828, 0
    %v869 = vand.u32 %v868, 65535
    %v870 = vshrl.u32 %v868, 16
    %v871 = vcvt.s32.f32 %v869
    %v872 = vcvt.s32.f32 %v870
    %873 = vadd.xlane.f32.xlu0 %v871
    %v874 = vpop.xlane.xlu0 %873
    %875 = vadd.xlane.f32.xlu0 %v872
    %v876 = vpop.xlane.xlu0 %875
    %v877 = vcvt.f32.s32 %v874
    %v878 = vcvt.f32.s32 %v876
    %v879 = vshll.u32 %v878, 16
    %v880 = vadd.s32 %v879, %v877
    %v881 = vadd.s32 %v841, %v854
    %v882 = vadd.s32 %v867, %v880
    %v883 = vadd.s32 %v881, %v882
    %v884 = vrot.slane %v883, 4
    %v885 = vadd.s32 %v883, %v884
    %v886 = vrot.slane %v885, 2
    %v887 = vadd.s32 %v885, %v886
    %v888 = vrot.slane %v887, 1
    %v889 = vadd.s32 %v887, %v888
    %vm890 = vcmp.ge.s32.totalorder %v889, 77
    %v891 = vsel %vm890, %v820, %v819
    %v892 = vor.u32 %v891, 2097152
    %vm893 = vcmp.ge.s32.totalorder %v168, %v892
    %vm894 = vcmp.ge.s32.totalorder %v169, %v892
    %vm895 = vcmp.ge.s32.totalorder %v170, %v892
    %vm896 = vcmp.ge.s32.totalorder %v171, %v892
    %v897 = vsel %vm893, 1, 0
    %v898 = vsel %vm894, 1, 0
    %v899 = vsel %vm895, 1, 0
    %v900 = vsel %vm896, 1, 0
    %v901 = vsel %vm180, %v897, 0
    %v902 = vand.u32 %v901, 65535
    %v903 = vshrl.u32 %v901, 16
    %v904 = vcvt.s32.f32 %v902
    %v905 = vcvt.s32.f32 %v903
    %906 = vadd.xlane.f32.xlu0 %v904
    %v907 = vpop.xlane.xlu0 %906
    %908 = vadd.xlane.f32.xlu0 %v905
    %v909 = vpop.xlane.xlu0 %908
    %v910 = vcvt.f32.s32 %v907
    %v911 = vcvt.f32.s32 %v909
    %v912 = vshll.u32 %v911, 16
    %v913 = vadd.s32 %v912, %v910
    %v914 = vsel %vm180, %v898, 0
    %v915 = vand.u32 %v914, 65535
    %v916 = vshrl.u32 %v914, 16
    %v917 = vcvt.s32.f32 %v915
    %v918 = vcvt.s32.f32 %v916
    %919 = vadd.xlane.f32.xlu0 %v917
    %v920 = vpop.xlane.xlu0 %919
    %921 = vadd.xlane.f32.xlu0 %v918
    %v922 = vpop.xlane.xlu0 %921
    %v923 = vcvt.f32.s32 %v920
    %v924 = vcvt.f32.s32 %v922
    %v925 = vshll.u32 %v924, 16
    %v926 = vadd.s32 %v925, %v923
    %v927 = vsel %vm180, %v899, 0
    %v928 = vand.u32 %v927, 65535
    %v929 = vshrl.u32 %v927, 16
    %v930 = vcvt.s32.f32 %v928
    %v931 = vcvt.s32.f32 %v929
    %932 = vadd.xlane.f32.xlu0 %v930
    %v933 = vpop.xlane.xlu0 %932
    %934 = vadd.xlane.f32.xlu0 %v931
    %v935 = vpop.xlane.xlu0 %934
    %v936 = vcvt.f32.s32 %v933
    %v937 = vcvt.f32.s32 %v935
    %v938 = vshll.u32 %v937, 16
    %v939 = vadd.s32 %v938, %v936
    %v940 = vsel %vm180, %v900, 0
    %v941 = vand.u32 %v940, 65535
    %v942 = vshrl.u32 %v940, 16
    %v943 = vcvt.s32.f32 %v941
    %v944 = vcvt.s32.f32 %v942
    %945 = vadd.xlane.f32.xlu0 %v943
    %v946 = vpop.xlane.xlu0 %945
    %947 = vadd.xlane.f32.xlu0 %v944
    %v948 = vpop.xlane.xlu0 %947
    %v949 = vcvt.f32.s32 %v946
    %v950 = vcvt.f32.s32 %v948
    %v951 = vshll.u32 %v950, 16
    %v952 = vadd.s32 %v951, %v949
    %v953 = vadd.s32 %v913, %v926
    %v954 = vadd.s32 %v939, %v952
    %v955 = vadd.s32 %v953, %v954
    %v956 = vrot.slane %v955, 4
    %v957 = vadd.s32 %v955, %v956
    %v958 = vrot.slane %v957, 2
    %v959 = vadd.s32 %v957, %v958
    %v960 = vrot.slane %v959, 1
    %v961 = vadd.s32 %v959, %v960
    %vm962 = vcmp.ge.s32.totalorder %v961, 77
    %v963 = vsel %vm962, %v892, %v891
    %v964 = vor.u32 %v963, 1048576
    %vm965 = vcmp.ge.s32.totalorder %v168, %v964
    %vm966 = vcmp.ge.s32.totalorder %v169, %v964
    %vm967 = vcmp.ge.s32.totalorder %v170, %v964
    %vm968 = vcmp.ge.s32.totalorder %v171, %v964
    %v969 = vsel %vm965, 1, 0
    %v970 = vsel %vm966, 1, 0
    %v971 = vsel %vm967, 1, 0
    %v972 = vsel %vm968, 1, 0
    %v973 = vsel %vm180, %v969, 0
    %v974 = vand.u32 %v973, 65535
    %v975 = vshrl.u32 %v973, 16
    %v976 = vcvt.s32.f32 %v974
    %v977 = vcvt.s32.f32 %v975
    %978 = vadd.xlane.f32.xlu0 %v976
    %v979 = vpop.xlane.xlu0 %978
    %980 = vadd.xlane.f32.xlu0 %v977
    %v981 = vpop.xlane.xlu0 %980
    %v982 = vcvt.f32.s32 %v979
    %v983 = vcvt.f32.s32 %v981
    %v984 = vshll.u32 %v983, 16
    %v985 = vadd.s32 %v984, %v982
    %v986 = vsel %vm180, %v970, 0
    %v987 = vand.u32 %v986, 65535
    %v988 = vshrl.u32 %v986, 16
    %v989 = vcvt.s32.f32 %v987
    %v990 = vcvt.s32.f32 %v988
    %991 = vadd.xlane.f32.xlu0 %v989
    %v992 = vpop.xlane.xlu0 %991
    %993 = vadd.xlane.f32.xlu0 %v990
    %v994 = vpop.xlane.xlu0 %993
    %v995 = vcvt.f32.s32 %v992
    %v996 = vcvt.f32.s32 %v994
    %v997 = vshll.u32 %v996, 16
    %v998 = vadd.s32 %v997, %v995
    %v999 = vsel %vm180, %v971, 0
    %v1000 = vand.u32 %v999, 65535
    %v1001 = vshrl.u32 %v999, 16
    %v1002 = vcvt.s32.f32 %v1000
    %v1003 = vcvt.s32.f32 %v1001
    %1004 = vadd.xlane.f32.xlu0 %v1002
    %v1005 = vpop.xlane.xlu0 %1004
    %1006 = vadd.xlane.f32.xlu0 %v1003
    %v1007 = vpop.xlane.xlu0 %1006
    %v1008 = vcvt.f32.s32 %v1005
    %v1009 = vcvt.f32.s32 %v1007
    %v1010 = vshll.u32 %v1009, 16
    %v1011 = vadd.s32 %v1010, %v1008
    %v1012 = vsel %vm180, %v972, 0
    %v1013 = vand.u32 %v1012, 65535
    %v1014 = vshrl.u32 %v1012, 16
    %v1015 = vcvt.s32.f32 %v1013
    %v1016 = vcvt.s32.f32 %v1014
    %1017 = vadd.xlane.f32.xlu0 %v1015
    %v1018 = vpop.xlane.xlu0 %1017
    %1019 = vadd.xlane.f32.xlu0 %v1016
    %v1020 = vpop.xlane.xlu0 %1019
    %v1021 = vcvt.f32.s32 %v1018
    %v1022 = vcvt.f32.s32 %v1020
    %v1023 = vshll.u32 %v1022, 16
    %v1024 = vadd.s32 %v1023, %v1021
    %v1025 = vadd.s32 %v985, %v998
    %v1026 = vadd.s32 %v1011, %v1024
    %v1027 = vadd.s32 %v1025, %v1026
    %v1028 = vrot.slane %v1027, 4
    %v1029 = vadd.s32 %v1027, %v1028
    %v1030 = vrot.slane %v1029, 2
    %v1031 = vadd.s32 %v1029, %v1030
    %v1032 = vrot.slane %v1031, 1
    %v1033 = vadd.s32 %v1031, %v1032
    %vm1034 = vcmp.ge.s32.totalorder %v1033, 77
    %v1035 = vsel %vm1034, %v964, %v963
    %v1036 = vor.u32 %v1035, 524288
    %vm1037 = vcmp.ge.s32.totalorder %v168, %v1036
    %vm1038 = vcmp.ge.s32.totalorder %v169, %v1036
    %vm1039 = vcmp.ge.s32.totalorder %v170, %v1036
    %vm1040 = vcmp.ge.s32.totalorder %v171, %v1036
    %v1041 = vsel %vm1037, 1, 0
    %v1042 = vsel %vm1038, 1, 0
    %v1043 = vsel %vm1039, 1, 0
    %v1044 = vsel %vm1040, 1, 0
    %v1045 = vsel %vm180, %v1041, 0
    %v1046 = vand.u32 %v1045, 65535
    %v1047 = vshrl.u32 %v1045, 16
    %v1048 = vcvt.s32.f32 %v1046
    %v1049 = vcvt.s32.f32 %v1047
    %1050 = vadd.xlane.f32.xlu0 %v1048
    %v1051 = vpop.xlane.xlu0 %1050
    %1052 = vadd.xlane.f32.xlu0 %v1049
    %v1053 = vpop.xlane.xlu0 %1052
    %v1054 = vcvt.f32.s32 %v1051
    %v1055 = vcvt.f32.s32 %v1053
    %v1056 = vshll.u32 %v1055, 16
    %v1057 = vadd.s32 %v1056, %v1054
    %v1058 = vsel %vm180, %v1042, 0
    %v1059 = vand.u32 %v1058, 65535
    %v1060 = vshrl.u32 %v1058, 16
    %v1061 = vcvt.s32.f32 %v1059
    %v1062 = vcvt.s32.f32 %v1060
    %1063 = vadd.xlane.f32.xlu0 %v1061
    %v1064 = vpop.xlane.xlu0 %1063
    %1065 = vadd.xlane.f32.xlu0 %v1062
    %v1066 = vpop.xlane.xlu0 %1065
    %v1067 = vcvt.f32.s32 %v1064
    %v1068 = vcvt.f32.s32 %v1066
    %v1069 = vshll.u32 %v1068, 16
    %v1070 = vadd.s32 %v1069, %v1067
    %v1071 = vsel %vm180, %v1043, 0
    %v1072 = vand.u32 %v1071, 65535
    %v1073 = vshrl.u32 %v1071, 16
    %v1074 = vcvt.s32.f32 %v1072
    %v1075 = vcvt.s32.f32 %v1073
    %1076 = vadd.xlane.f32.xlu0 %v1074
    %v1077 = vpop.xlane.xlu0 %1076
    %1078 = vadd.xlane.f32.xlu0 %v1075
    %v1079 = vpop.xlane.xlu0 %1078
    %v1080 = vcvt.f32.s32 %v1077
    %v1081 = vcvt.f32.s32 %v1079
    %v1082 = vshll.u32 %v1081, 16
    %v1083 = vadd.s32 %v1082, %v1080
    %v1084 = vsel %vm180, %v1044, 0
    %v1085 = vand.u32 %v1084, 65535
    %v1086 = vshrl.u32 %v1084, 16
    %v1087 = vcvt.s32.f32 %v1085
    %v1088 = vcvt.s32.f32 %v1086
    %1089 = vadd.xlane.f32.xlu0 %v1087
    %v1090 = vpop.xlane.xlu0 %1089
    %1091 = vadd.xlane.f32.xlu0 %v1088
    %v1092 = vpop.xlane.xlu0 %1091
    %v1093 = vcvt.f32.s32 %v1090
    %v1094 = vcvt.f32.s32 %v1092
    %v1095 = vshll.u32 %v1094, 16
    %v1096 = vadd.s32 %v1095, %v1093
    %v1097 = vadd.s32 %v1057, %v1070
    %v1098 = vadd.s32 %v1083, %v1096
    %v1099 = vadd.s32 %v1097, %v1098
    %v1100 = vrot.slane %v1099, 4
    %v1101 = vadd.s32 %v1099, %v1100
    %v1102 = vrot.slane %v1101, 2
    %v1103 = vadd.s32 %v1101, %v1102
    %v1104 = vrot.slane %v1103, 1
    %v1105 = vadd.s32 %v1103, %v1104
    %vm1106 = vcmp.ge.s32.totalorder %v1105, 77
    %v1107 = vsel %vm1106, %v1036, %v1035
    %v1108 = vor.u32 %v1107, 262144
    %vm1109 = vcmp.ge.s32.totalorder %v168, %v1108
    %vm1110 = vcmp.ge.s32.totalorder %v169, %v1108
    %vm1111 = vcmp.ge.s32.totalorder %v170, %v1108
    %vm1112 = vcmp.ge.s32.totalorder %v171, %v1108
    %v1113 = vsel %vm1109, 1, 0
    %v1114 = vsel %vm1110, 1, 0
    %v1115 = vsel %vm1111, 1, 0
    %v1116 = vsel %vm1112, 1, 0
    %v1117 = vsel %vm180, %v1113, 0
    %v1118 = vand.u32 %v1117, 65535
    %v1119 = vshrl.u32 %v1117, 16
    %v1120 = vcvt.s32.f32 %v1118
    %v1121 = vcvt.s32.f32 %v1119
    %1122 = vadd.xlane.f32.xlu0 %v1120
    %v1123 = vpop.xlane.xlu0 %1122
    %1124 = vadd.xlane.f32.xlu0 %v1121
    %v1125 = vpop.xlane.xlu0 %1124
    %v1126 = vcvt.f32.s32 %v1123
    %v1127 = vcvt.f32.s32 %v1125
    %v1128 = vshll.u32 %v1127, 16
    %v1129 = vadd.s32 %v1128, %v1126
    %v1130 = vsel %vm180, %v1114, 0
    %v1131 = vand.u32 %v1130, 65535
    %v1132 = vshrl.u32 %v1130, 16
    %v1133 = vcvt.s32.f32 %v1131
    %v1134 = vcvt.s32.f32 %v1132
    %1135 = vadd.xlane.f32.xlu0 %v1133
    %v1136 = vpop.xlane.xlu0 %1135
    %1137 = vadd.xlane.f32.xlu0 %v1134
    %v1138 = vpop.xlane.xlu0 %1137
    %v1139 = vcvt.f32.s32 %v1136
    %v1140 = vcvt.f32.s32 %v1138
    %v1141 = vshll.u32 %v1140, 16
    %v1142 = vadd.s32 %v1141, %v1139
    %v1143 = vsel %vm180, %v1115, 0
    %v1144 = vand.u32 %v1143, 65535
    %v1145 = vshrl.u32 %v1143, 16
    %v1146 = vcvt.s32.f32 %v1144
    %v1147 = vcvt.s32.f32 %v1145
    %1148 = vadd.xlane.f32.xlu0 %v1146
    %v1149 = vpop.xlane.xlu0 %1148
    %1150 = vadd.xlane.f32.xlu0 %v1147
    %v1151 = vpop.xlane.xlu0 %1150
    %v1152 = vcvt.f32.s32 %v1149
    %v1153 = vcvt.f32.s32 %v1151
    %v1154 = vshll.u32 %v1153, 16
    %v1155 = vadd.s32 %v1154, %v1152
    %v1156 = vsel %vm180, %v1116, 0
    %v1157 = vand.u32 %v1156, 65535
    %v1158 = vshrl.u32 %v1156, 16
    %v1159 = vcvt.s32.f32 %v1157
    %v1160 = vcvt.s32.f32 %v1158
    %1161 = vadd.xlane.f32.xlu0 %v1159
    %v1162 = vpop.xlane.xlu0 %1161
    %1163 = vadd.xlane.f32.xlu0 %v1160
    %v1164 = vpop.xlane.xlu0 %1163
    %v1165 = vcvt.f32.s32 %v1162
    %v1166 = vcvt.f32.s32 %v1164
    %v1167 = vshll.u32 %v1166, 16
    %v1168 = vadd.s32 %v1167, %v1165
    %v1169 = vadd.s32 %v1129, %v1142
    %v1170 = vadd.s32 %v1155, %v1168
    %v1171 = vadd.s32 %v1169, %v1170
    %v1172 = vrot.slane %v1171, 4
    %v1173 = vadd.s32 %v1171, %v1172
    %v1174 = vrot.slane %v1173, 2
    %v1175 = vadd.s32 %v1173, %v1174
    %v1176 = vrot.slane %v1175, 1
    %v1177 = vadd.s32 %v1175, %v1176
    %vm1178 = vcmp.ge.s32.totalorder %v1177, 77
    %v1179 = vsel %vm1178, %v1108, %v1107
    %v1180 = vor.u32 %v1179, 131072
    %vm1181 = vcmp.ge.s32.totalorder %v168, %v1180
    %vm1182 = vcmp.ge.s32.totalorder %v169, %v1180
    %vm1183 = vcmp.ge.s32.totalorder %v170, %v1180
    %vm1184 = vcmp.ge.s32.totalorder %v171, %v1180
    %v1185 = vsel %vm1181, 1, 0
    %v1186 = vsel %vm1182, 1, 0
    %v1187 = vsel %vm1183, 1, 0
    %v1188 = vsel %vm1184, 1, 0
    %v1189 = vsel %vm180, %v1185, 0
    %v1190 = vand.u32 %v1189, 65535
    %v1191 = vshrl.u32 %v1189, 16
    %v1192 = vcvt.s32.f32 %v1190
    %v1193 = vcvt.s32.f32 %v1191
    %1194 = vadd.xlane.f32.xlu0 %v1192
    %v1195 = vpop.xlane.xlu0 %1194
    %1196 = vadd.xlane.f32.xlu0 %v1193
    %v1197 = vpop.xlane.xlu0 %1196
    %v1198 = vcvt.f32.s32 %v1195
    %v1199 = vcvt.f32.s32 %v1197
    %v1200 = vshll.u32 %v1199, 16
    %v1201 = vadd.s32 %v1200, %v1198
    %v1202 = vsel %vm180, %v1186, 0
    %v1203 = vand.u32 %v1202, 65535
    %v1204 = vshrl.u32 %v1202, 16
    %v1205 = vcvt.s32.f32 %v1203
    %v1206 = vcvt.s32.f32 %v1204
    %1207 = vadd.xlane.f32.xlu0 %v1205
    %v1208 = vpop.xlane.xlu0 %1207
    %1209 = vadd.xlane.f32.xlu0 %v1206
    %v1210 = vpop.xlane.xlu0 %1209
    %v1211 = vcvt.f32.s32 %v1208
    %v1212 = vcvt.f32.s32 %v1210
    %v1213 = vshll.u32 %v1212, 16
    %v1214 = vadd.s32 %v1213, %v1211
    %v1215 = vsel %vm180, %v1187, 0
    %v1216 = vand.u32 %v1215, 65535
    %v1217 = vshrl.u32 %v1215, 16
    %v1218 = vcvt.s32.f32 %v1216
    %v1219 = vcvt.s32.f32 %v1217
    %1220 = vadd.xlane.f32.xlu0 %v1218
    %v1221 = vpop.xlane.xlu0 %1220
    %1222 = vadd.xlane.f32.xlu0 %v1219
    %v1223 = vpop.xlane.xlu0 %1222
    %v1224 = vcvt.f32.s32 %v1221
    %v1225 = vcvt.f32.s32 %v1223
    %v1226 = vshll.u32 %v1225, 16
    %v1227 = vadd.s32 %v1226, %v1224
    %v1228 = vsel %vm180, %v1188, 0
    %v1229 = vand.u32 %v1228, 65535
    %v1230 = vshrl.u32 %v1228, 16
    %v1231 = vcvt.s32.f32 %v1229
    %v1232 = vcvt.s32.f32 %v1230
    %1233 = vadd.xlane.f32.xlu0 %v1231
    %v1234 = vpop.xlane.xlu0 %1233
    %1235 = vadd.xlane.f32.xlu0 %v1232
    %v1236 = vpop.xlane.xlu0 %1235
    %v1237 = vcvt.f32.s32 %v1234
    %v1238 = vcvt.f32.s32 %v1236
    %v1239 = vshll.u32 %v1238, 16
    %v1240 = vadd.s32 %v1239, %v1237
    %v1241 = vadd.s32 %v1201, %v1214
    %v1242 = vadd.s32 %v1227, %v1240
    %v1243 = vadd.s32 %v1241, %v1242
    %v1244 = vrot.slane %v1243, 4
    %v1245 = vadd.s32 %v1243, %v1244
    %v1246 = vrot.slane %v1245, 2
    %v1247 = vadd.s32 %v1245, %v1246
    %v1248 = vrot.slane %v1247, 1
    %v1249 = vadd.s32 %v1247, %v1248
    %vm1250 = vcmp.ge.s32.totalorder %v1249, 77
    %v1251 = vsel %vm1250, %v1180, %v1179
    %v1252 = vor.u32 %v1251, 65536
    %vm1253 = vcmp.ge.s32.totalorder %v168, %v1252
    %vm1254 = vcmp.ge.s32.totalorder %v169, %v1252
    %vm1255 = vcmp.ge.s32.totalorder %v170, %v1252
    %vm1256 = vcmp.ge.s32.totalorder %v171, %v1252
    %v1257 = vsel %vm1253, 1, 0
    %v1258 = vsel %vm1254, 1, 0
    %v1259 = vsel %vm1255, 1, 0
    %v1260 = vsel %vm1256, 1, 0
    %v1261 = vsel %vm180, %v1257, 0
    %v1262 = vand.u32 %v1261, 65535
    %v1263 = vshrl.u32 %v1261, 16
    %v1264 = vcvt.s32.f32 %v1262
    %v1265 = vcvt.s32.f32 %v1263
    %1266 = vadd.xlane.f32.xlu0 %v1264
    %v1267 = vpop.xlane.xlu0 %1266
    %1268 = vadd.xlane.f32.xlu0 %v1265
    %v1269 = vpop.xlane.xlu0 %1268
    %v1270 = vcvt.f32.s32 %v1267
    %v1271 = vcvt.f32.s32 %v1269
    %v1272 = vshll.u32 %v1271, 16
    %v1273 = vadd.s32 %v1272, %v1270
    %v1274 = vsel %vm180, %v1258, 0
    %v1275 = vand.u32 %v1274, 65535
    %v1276 = vshrl.u32 %v1274, 16
    %v1277 = vcvt.s32.f32 %v1275
    %v1278 = vcvt.s32.f32 %v1276
    %1279 = vadd.xlane.f32.xlu0 %v1277
    %v1280 = vpop.xlane.xlu0 %1279
    %1281 = vadd.xlane.f32.xlu0 %v1278
    %v1282 = vpop.xlane.xlu0 %1281
    %v1283 = vcvt.f32.s32 %v1280
    %v1284 = vcvt.f32.s32 %v1282
    %v1285 = vshll.u32 %v1284, 16
    %v1286 = vadd.s32 %v1285, %v1283
    %v1287 = vsel %vm180, %v1259, 0
    %v1288 = vand.u32 %v1287, 65535
    %v1289 = vshrl.u32 %v1287, 16
    %v1290 = vcvt.s32.f32 %v1288
    %v1291 = vcvt.s32.f32 %v1289
    %1292 = vadd.xlane.f32.xlu0 %v1290
    %v1293 = vpop.xlane.xlu0 %1292
    %1294 = vadd.xlane.f32.xlu0 %v1291
    %v1295 = vpop.xlane.xlu0 %1294
    %v1296 = vcvt.f32.s32 %v1293
    %v1297 = vcvt.f32.s32 %v1295
    %v1298 = vshll.u32 %v1297, 16
    %v1299 = vadd.s32 %v1298, %v1296
    %v1300 = vsel %vm180, %v1260, 0
    %v1301 = vand.u32 %v1300, 65535
    %v1302 = vshrl.u32 %v1300, 16
    %v1303 = vcvt.s32.f32 %v1301
    %v1304 = vcvt.s32.f32 %v1302
    %1305 = vadd.xlane.f32.xlu0 %v1303
    %v1306 = vpop.xlane.xlu0 %1305
    %1307 = vadd.xlane.f32.xlu0 %v1304
    %v1308 = vpop.xlane.xlu0 %1307
    %v1309 = vcvt.f32.s32 %v1306
    %v1310 = vcvt.f32.s32 %v1308
    %v1311 = vshll.u32 %v1310, 16
    %v1312 = vadd.s32 %v1311, %v1309
    %v1313 = vadd.s32 %v1273, %v1286
    %v1314 = vadd.s32 %v1299, %v1312
    %v1315 = vadd.s32 %v1313, %v1314
    %v1316 = vrot.slane %v1315, 4
    %v1317 = vadd.s32 %v1315, %v1316
    %v1318 = vrot.slane %v1317, 2
    %v1319 = vadd.s32 %v1317, %v1318
    %v1320 = vrot.slane %v1319, 1
    %v1321 = vadd.s32 %v1319, %v1320
    %vm1322 = vcmp.ge.s32.totalorder %v1321, 77
    %v1323 = vsel %vm1322, %v1252, %v1251
    %v1324 = vor.u32 %v1323, 32768
    %vm1325 = vcmp.ge.s32.totalorder %v168, %v1324
    %vm1326 = vcmp.ge.s32.totalorder %v169, %v1324
    %vm1327 = vcmp.ge.s32.totalorder %v170, %v1324
    %vm1328 = vcmp.ge.s32.totalorder %v171, %v1324
    %v1329 = vsel %vm1325, 1, 0
    %v1330 = vsel %vm1326, 1, 0
    %v1331 = vsel %vm1327, 1, 0
    %v1332 = vsel %vm1328, 1, 0
    %v1333 = vsel %vm180, %v1329, 0
    %v1334 = vand.u32 %v1333, 65535
    %v1335 = vshrl.u32 %v1333, 16
    %v1336 = vcvt.s32.f32 %v1334
    %v1337 = vcvt.s32.f32 %v1335
    %1338 = vadd.xlane.f32.xlu0 %v1336
    %v1339 = vpop.xlane.xlu0 %1338
    %1340 = vadd.xlane.f32.xlu0 %v1337
    %v1341 = vpop.xlane.xlu0 %1340
    %v1342 = vcvt.f32.s32 %v1339
    %v1343 = vcvt.f32.s32 %v1341
    %v1344 = vshll.u32 %v1343, 16
    %v1345 = vadd.s32 %v1344, %v1342
    %v1346 = vsel %vm180, %v1330, 0
    %v1347 = vand.u32 %v1346, 65535
    %v1348 = vshrl.u32 %v1346, 16
    %v1349 = vcvt.s32.f32 %v1347
    %v1350 = vcvt.s32.f32 %v1348
    %1351 = vadd.xlane.f32.xlu0 %v1349
    %v1352 = vpop.xlane.xlu0 %1351
    %1353 = vadd.xlane.f32.xlu0 %v1350
    %v1354 = vpop.xlane.xlu0 %1353
    %v1355 = vcvt.f32.s32 %v1352
    %v1356 = vcvt.f32.s32 %v1354
    %v1357 = vshll.u32 %v1356, 16
    %v1358 = vadd.s32 %v1357, %v1355
    %v1359 = vsel %vm180, %v1331, 0
    %v1360 = vand.u32 %v1359, 65535
    %v1361 = vshrl.u32 %v1359, 16
    %v1362 = vcvt.s32.f32 %v1360
    %v1363 = vcvt.s32.f32 %v1361
    %1364 = vadd.xlane.f32.xlu0 %v1362
    %v1365 = vpop.xlane.xlu0 %1364
    %1366 = vadd.xlane.f32.xlu0 %v1363
    %v1367 = vpop.xlane.xlu0 %1366
    %v1368 = vcvt.f32.s32 %v1365
    %v1369 = vcvt.f32.s32 %v1367
    %v1370 = vshll.u32 %v1369, 16
    %v1371 = vadd.s32 %v1370, %v1368
    %v1372 = vsel %vm180, %v1332, 0
    %v1373 = vand.u32 %v1372, 65535
    %v1374 = vshrl.u32 %v1372, 16
    %v1375 = vcvt.s32.f32 %v1373
    %v1376 = vcvt.s32.f32 %v1374
    %1377 = vadd.xlane.f32.xlu0 %v1375
    %v1378 = vpop.xlane.xlu0 %1377
    %1379 = vadd.xlane.f32.xlu0 %v1376
    %v1380 = vpop.xlane.xlu0 %1379
    %v1381 = vcvt.f32.s32 %v1378
    %v1382 = vcvt.f32.s32 %v1380
    %v1383 = vshll.u32 %v1382, 16
    %v1384 = vadd.s32 %v1383, %v1381
    %v1385 = vadd.s32 %v1345, %v1358
    %v1386 = vadd.s32 %v1371, %v1384
    %v1387 = vadd.s32 %v1385, %v1386
    %v1388 = vrot.slane %v1387, 4
    %v1389 = vadd.s32 %v1387, %v1388
    %v1390 = vrot.slane %v1389, 2
    %v1391 = vadd.s32 %v1389, %v1390
    %v1392 = vrot.slane %v1391, 1
    %v1393 = vadd.s32 %v1391, %v1392
    %vm1394 = vcmp.ge.s32.totalorder %v1393, 77
    %v1395 = vsel %vm1394, %v1324, %v1323
    %v1396 = vor.u32 %v1395, 16384
    %vm1397 = vcmp.ge.s32.totalorder %v168, %v1396
    %vm1398 = vcmp.ge.s32.totalorder %v169, %v1396
    %vm1399 = vcmp.ge.s32.totalorder %v170, %v1396
    %vm1400 = vcmp.ge.s32.totalorder %v171, %v1396
    %v1401 = vsel %vm1397, 1, 0
    %v1402 = vsel %vm1398, 1, 0
    %v1403 = vsel %vm1399, 1, 0
    %v1404 = vsel %vm1400, 1, 0
    %v1405 = vsel %vm180, %v1401, 0
    %v1406 = vand.u32 %v1405, 65535
    %v1407 = vshrl.u32 %v1405, 16
    %v1408 = vcvt.s32.f32 %v1406
    %v1409 = vcvt.s32.f32 %v1407
    %1410 = vadd.xlane.f32.xlu0 %v1408
    %v1411 = vpop.xlane.xlu0 %1410
    %1412 = vadd.xlane.f32.xlu0 %v1409
    %v1413 = vpop.xlane.xlu0 %1412
    %v1414 = vcvt.f32.s32 %v1411
    %v1415 = vcvt.f32.s32 %v1413
    %v1416 = vshll.u32 %v1415, 16
    %v1417 = vadd.s32 %v1416, %v1414
    %v1418 = vsel %vm180, %v1402, 0
    %v1419 = vand.u32 %v1418, 65535
    %v1420 = vshrl.u32 %v1418, 16
    %v1421 = vcvt.s32.f32 %v1419
    %v1422 = vcvt.s32.f32 %v1420
    %1423 = vadd.xlane.f32.xlu0 %v1421
    %v1424 = vpop.xlane.xlu0 %1423
    %1425 = vadd.xlane.f32.xlu0 %v1422
    %v1426 = vpop.xlane.xlu0 %1425
    %v1427 = vcvt.f32.s32 %v1424
    %v1428 = vcvt.f32.s32 %v1426
    %v1429 = vshll.u32 %v1428, 16
    %v1430 = vadd.s32 %v1429, %v1427
    %v1431 = vsel %vm180, %v1403, 0
    %v1432 = vand.u32 %v1431, 65535
    %v1433 = vshrl.u32 %v1431, 16
    %v1434 = vcvt.s32.f32 %v1432
    %v1435 = vcvt.s32.f32 %v1433
    %1436 = vadd.xlane.f32.xlu0 %v1434
    %v1437 = vpop.xlane.xlu0 %1436
    %1438 = vadd.xlane.f32.xlu0 %v1435
    %v1439 = vpop.xlane.xlu0 %1438
    %v1440 = vcvt.f32.s32 %v1437
    %v1441 = vcvt.f32.s32 %v1439
    %v1442 = vshll.u32 %v1441, 16
    %v1443 = vadd.s32 %v1442, %v1440
    %v1444 = vsel %vm180, %v1404, 0
    %v1445 = vand.u32 %v1444, 65535
    %v1446 = vshrl.u32 %v1444, 16
    %v1447 = vcvt.s32.f32 %v1445
    %v1448 = vcvt.s32.f32 %v1446
    %1449 = vadd.xlane.f32.xlu0 %v1447
    %v1450 = vpop.xlane.xlu0 %1449
    %1451 = vadd.xlane.f32.xlu0 %v1448
    %v1452 = vpop.xlane.xlu0 %1451
    %v1453 = vcvt.f32.s32 %v1450
    %v1454 = vcvt.f32.s32 %v1452
    %v1455 = vshll.u32 %v1454, 16
    %v1456 = vadd.s32 %v1455, %v1453
    %v1457 = vadd.s32 %v1417, %v1430
    %v1458 = vadd.s32 %v1443, %v1456
    %v1459 = vadd.s32 %v1457, %v1458
    %v1460 = vrot.slane %v1459, 4
    %v1461 = vadd.s32 %v1459, %v1460
    %v1462 = vrot.slane %v1461, 2
    %v1463 = vadd.s32 %v1461, %v1462
    %v1464 = vrot.slane %v1463, 1
    %v1465 = vadd.s32 %v1463, %v1464
    %vm1466 = vcmp.ge.s32.totalorder %v1465, 77
    %v1467 = vsel %vm1466, %v1396, %v1395
    %v1468 = vor.u32 %v1467, 8192
    %vm1469 = vcmp.ge.s32.totalorder %v168, %v1468
    %vm1470 = vcmp.ge.s32.totalorder %v169, %v1468
    %vm1471 = vcmp.ge.s32.totalorder %v170, %v1468
    %vm1472 = vcmp.ge.s32.totalorder %v171, %v1468
    %v1473 = vsel %vm1469, 1, 0
    %v1474 = vsel %vm1470, 1, 0
    %v1475 = vsel %vm1471, 1, 0
    %v1476 = vsel %vm1472, 1, 0
    %v1477 = vsel %vm180, %v1473, 0
    %v1478 = vand.u32 %v1477, 65535
    %v1479 = vshrl.u32 %v1477, 16
    %v1480 = vcvt.s32.f32 %v1478
    %v1481 = vcvt.s32.f32 %v1479
    %1482 = vadd.xlane.f32.xlu0 %v1480
    %v1483 = vpop.xlane.xlu0 %1482
    %1484 = vadd.xlane.f32.xlu0 %v1481
    %v1485 = vpop.xlane.xlu0 %1484
    %v1486 = vcvt.f32.s32 %v1483
    %v1487 = vcvt.f32.s32 %v1485
    %v1488 = vshll.u32 %v1487, 16
    %v1489 = vadd.s32 %v1488, %v1486
    %v1490 = vsel %vm180, %v1474, 0
    %v1491 = vand.u32 %v1490, 65535
    %v1492 = vshrl.u32 %v1490, 16
    %v1493 = vcvt.s32.f32 %v1491
    %v1494 = vcvt.s32.f32 %v1492
    %1495 = vadd.xlane.f32.xlu0 %v1493
    %v1496 = vpop.xlane.xlu0 %1495
    %1497 = vadd.xlane.f32.xlu0 %v1494
    %v1498 = vpop.xlane.xlu0 %1497
    %v1499 = vcvt.f32.s32 %v1496
    %v1500 = vcvt.f32.s32 %v1498
    %v1501 = vshll.u32 %v1500, 16
    %v1502 = vadd.s32 %v1501, %v1499
    %v1503 = vsel %vm180, %v1475, 0
    %v1504 = vand.u32 %v1503, 65535
    %v1505 = vshrl.u32 %v1503, 16
    %v1506 = vcvt.s32.f32 %v1504
    %v1507 = vcvt.s32.f32 %v1505
    %1508 = vadd.xlane.f32.xlu0 %v1506
    %v1509 = vpop.xlane.xlu0 %1508
    %1510 = vadd.xlane.f32.xlu0 %v1507
    %v1511 = vpop.xlane.xlu0 %1510
    %v1512 = vcvt.f32.s32 %v1509
    %v1513 = vcvt.f32.s32 %v1511
    %v1514 = vshll.u32 %v1513, 16
    %v1515 = vadd.s32 %v1514, %v1512
    %v1516 = vsel %vm180, %v1476, 0
    %v1517 = vand.u32 %v1516, 65535
    %v1518 = vshrl.u32 %v1516, 16
    %v1519 = vcvt.s32.f32 %v1517
    %v1520 = vcvt.s32.f32 %v1518
    %1521 = vadd.xlane.f32.xlu0 %v1519
    %v1522 = vpop.xlane.xlu0 %1521
    %1523 = vadd.xlane.f32.xlu0 %v1520
    %v1524 = vpop.xlane.xlu0 %1523
    %v1525 = vcvt.f32.s32 %v1522
    %v1526 = vcvt.f32.s32 %v1524
    %v1527 = vshll.u32 %v1526, 16
    %v1528 = vadd.s32 %v1527, %v1525
    %v1529 = vadd.s32 %v1489, %v1502
    %v1530 = vadd.s32 %v1515, %v1528
    %v1531 = vadd.s32 %v1529, %v1530
    %v1532 = vrot.slane %v1531, 4
    %v1533 = vadd.s32 %v1531, %v1532
    %v1534 = vrot.slane %v1533, 2
    %v1535 = vadd.s32 %v1533, %v1534
    %v1536 = vrot.slane %v1535, 1
    %v1537 = vadd.s32 %v1535, %v1536
    %vm1538 = vcmp.ge.s32.totalorder %v1537, 77
    %v1539 = vsel %vm1538, %v1468, %v1467
    %v1540 = vor.u32 %v1539, 4096
    %vm1541 = vcmp.ge.s32.totalorder %v168, %v1540
    %vm1542 = vcmp.ge.s32.totalorder %v169, %v1540
    %vm1543 = vcmp.ge.s32.totalorder %v170, %v1540
    %vm1544 = vcmp.ge.s32.totalorder %v171, %v1540
    %v1545 = vsel %vm1541, 1, 0
    %v1546 = vsel %vm1542, 1, 0
    %v1547 = vsel %vm1543, 1, 0
    %v1548 = vsel %vm1544, 1, 0
    %v1549 = vsel %vm180, %v1545, 0
    %v1550 = vand.u32 %v1549, 65535
    %v1551 = vshrl.u32 %v1549, 16
    %v1552 = vcvt.s32.f32 %v1550
    %v1553 = vcvt.s32.f32 %v1551
    %1554 = vadd.xlane.f32.xlu0 %v1552
    %v1555 = vpop.xlane.xlu0 %1554
    %1556 = vadd.xlane.f32.xlu0 %v1553
    %v1557 = vpop.xlane.xlu0 %1556
    %v1558 = vcvt.f32.s32 %v1555
    %v1559 = vcvt.f32.s32 %v1557
    %v1560 = vshll.u32 %v1559, 16
    %v1561 = vadd.s32 %v1560, %v1558
    %v1562 = vsel %vm180, %v1546, 0
    %v1563 = vand.u32 %v1562, 65535
    %v1564 = vshrl.u32 %v1562, 16
    %v1565 = vcvt.s32.f32 %v1563
    %v1566 = vcvt.s32.f32 %v1564
    %1567 = vadd.xlane.f32.xlu0 %v1565
    %v1568 = vpop.xlane.xlu0 %1567
    %1569 = vadd.xlane.f32.xlu0 %v1566
    %v1570 = vpop.xlane.xlu0 %1569
    %v1571 = vcvt.f32.s32 %v1568
    %v1572 = vcvt.f32.s32 %v1570
    %v1573 = vshll.u32 %v1572, 16
    %v1574 = vadd.s32 %v1573, %v1571
    %v1575 = vsel %vm180, %v1547, 0
    %v1576 = vand.u32 %v1575, 65535
    %v1577 = vshrl.u32 %v1575, 16
    %v1578 = vcvt.s32.f32 %v1576
    %v1579 = vcvt.s32.f32 %v1577
    %1580 = vadd.xlane.f32.xlu0 %v1578
    %v1581 = vpop.xlane.xlu0 %1580
    %1582 = vadd.xlane.f32.xlu0 %v1579
    %v1583 = vpop.xlane.xlu0 %1582
    %v1584 = vcvt.f32.s32 %v1581
    %v1585 = vcvt.f32.s32 %v1583
    %v1586 = vshll.u32 %v1585, 16
    %v1587 = vadd.s32 %v1586, %v1584
    %v1588 = vsel %vm180, %v1548, 0
    %v1589 = vand.u32 %v1588, 65535
    %v1590 = vshrl.u32 %v1588, 16
    %v1591 = vcvt.s32.f32 %v1589
    %v1592 = vcvt.s32.f32 %v1590
    %1593 = vadd.xlane.f32.xlu0 %v1591
    %v1594 = vpop.xlane.xlu0 %1593
    %1595 = vadd.xlane.f32.xlu0 %v1592
    %v1596 = vpop.xlane.xlu0 %1595
    %v1597 = vcvt.f32.s32 %v1594
    %v1598 = vcvt.f32.s32 %v1596
    %v1599 = vshll.u32 %v1598, 16
    %v1600 = vadd.s32 %v1599, %v1597
    %v1601 = vadd.s32 %v1561, %v1574
    %v1602 = vadd.s32 %v1587, %v1600
    %v1603 = vadd.s32 %v1601, %v1602
    %v1604 = vrot.slane %v1603, 4
    %v1605 = vadd.s32 %v1603, %v1604
    %v1606 = vrot.slane %v1605, 2
    %v1607 = vadd.s32 %v1605, %v1606
    %v1608 = vrot.slane %v1607, 1
    %v1609 = vadd.s32 %v1607, %v1608
    %vm1610 = vcmp.ge.s32.totalorder %v1609, 77
    %v1611 = vsel %vm1610, %v1540, %v1539
    %v1612 = vor.u32 %v1611, 2048
    %vm1613 = vcmp.ge.s32.totalorder %v168, %v1612
    %vm1614 = vcmp.ge.s32.totalorder %v169, %v1612
    %vm1615 = vcmp.ge.s32.totalorder %v170, %v1612
    %vm1616 = vcmp.ge.s32.totalorder %v171, %v1612
    %v1617 = vsel %vm1613, 1, 0
    %v1618 = vsel %vm1614, 1, 0
    %v1619 = vsel %vm1615, 1, 0
    %v1620 = vsel %vm1616, 1, 0
    %v1621 = vsel %vm180, %v1617, 0
    %v1622 = vand.u32 %v1621, 65535
    %v1623 = vshrl.u32 %v1621, 16
    %v1624 = vcvt.s32.f32 %v1622
    %v1625 = vcvt.s32.f32 %v1623
    %1626 = vadd.xlane.f32.xlu0 %v1624
    %v1627 = vpop.xlane.xlu0 %1626
    %1628 = vadd.xlane.f32.xlu0 %v1625
    %v1629 = vpop.xlane.xlu0 %1628
    %v1630 = vcvt.f32.s32 %v1627
    %v1631 = vcvt.f32.s32 %v1629
    %v1632 = vshll.u32 %v1631, 16
    %v1633 = vadd.s32 %v1632, %v1630
    %v1634 = vsel %vm180, %v1618, 0
    %v1635 = vand.u32 %v1634, 65535
    %v1636 = vshrl.u32 %v1634, 16
    %v1637 = vcvt.s32.f32 %v1635
    %v1638 = vcvt.s32.f32 %v1636
    %1639 = vadd.xlane.f32.xlu0 %v1637
    %v1640 = vpop.xlane.xlu0 %1639
    %1641 = vadd.xlane.f32.xlu0 %v1638
    %v1642 = vpop.xlane.xlu0 %1641
    %v1643 = vcvt.f32.s32 %v1640
    %v1644 = vcvt.f32.s32 %v1642
    %v1645 = vshll.u32 %v1644, 16
    %v1646 = vadd.s32 %v1645, %v1643
    %v1647 = vsel %vm180, %v1619, 0
    %v1648 = vand.u32 %v1647, 65535
    %v1649 = vshrl.u32 %v1647, 16
    %v1650 = vcvt.s32.f32 %v1648
    %v1651 = vcvt.s32.f32 %v1649
    %1652 = vadd.xlane.f32.xlu0 %v1650
    %v1653 = vpop.xlane.xlu0 %1652
    %1654 = vadd.xlane.f32.xlu0 %v1651
    %v1655 = vpop.xlane.xlu0 %1654
    %v1656 = vcvt.f32.s32 %v1653
    %v1657 = vcvt.f32.s32 %v1655
    %v1658 = vshll.u32 %v1657, 16
    %v1659 = vadd.s32 %v1658, %v1656
    %v1660 = vsel %vm180, %v1620, 0
    %v1661 = vand.u32 %v1660, 65535
    %v1662 = vshrl.u32 %v1660, 16
    %v1663 = vcvt.s32.f32 %v1661
    %v1664 = vcvt.s32.f32 %v1662
    %1665 = vadd.xlane.f32.xlu0 %v1663
    %v1666 = vpop.xlane.xlu0 %1665
    %1667 = vadd.xlane.f32.xlu0 %v1664
    %v1668 = vpop.xlane.xlu0 %1667
    %v1669 = vcvt.f32.s32 %v1666
    %v1670 = vcvt.f32.s32 %v1668
    %v1671 = vshll.u32 %v1670, 16
    %v1672 = vadd.s32 %v1671, %v1669
    %v1673 = vadd.s32 %v1633, %v1646
    %v1674 = vadd.s32 %v1659, %v1672
    %v1675 = vadd.s32 %v1673, %v1674
    %v1676 = vrot.slane %v1675, 4
    %v1677 = vadd.s32 %v1675, %v1676
    %v1678 = vrot.slane %v1677, 2
    %v1679 = vadd.s32 %v1677, %v1678
    %v1680 = vrot.slane %v1679, 1
    %v1681 = vadd.s32 %v1679, %v1680
    %vm1682 = vcmp.ge.s32.totalorder %v1681, 77
    %v1683 = vsel %vm1682, %v1612, %v1611
    %v1684 = vor.u32 %v1683, 1024
    %vm1685 = vcmp.ge.s32.totalorder %v168, %v1684
    %vm1686 = vcmp.ge.s32.totalorder %v169, %v1684
    %vm1687 = vcmp.ge.s32.totalorder %v170, %v1684
    %vm1688 = vcmp.ge.s32.totalorder %v171, %v1684
    %v1689 = vsel %vm1685, 1, 0
    %v1690 = vsel %vm1686, 1, 0
    %v1691 = vsel %vm1687, 1, 0
    %v1692 = vsel %vm1688, 1, 0
    %v1693 = vsel %vm180, %v1689, 0
    %v1694 = vand.u32 %v1693, 65535
    %v1695 = vshrl.u32 %v1693, 16
    %v1696 = vcvt.s32.f32 %v1694
    %v1697 = vcvt.s32.f32 %v1695
    %1698 = vadd.xlane.f32.xlu0 %v1696
    %v1699 = vpop.xlane.xlu0 %1698
    %1700 = vadd.xlane.f32.xlu0 %v1697
    %v1701 = vpop.xlane.xlu0 %1700
    %v1702 = vcvt.f32.s32 %v1699
    %v1703 = vcvt.f32.s32 %v1701
    %v1704 = vshll.u32 %v1703, 16
    %v1705 = vadd.s32 %v1704, %v1702
    %v1706 = vsel %vm180, %v1690, 0
    %v1707 = vand.u32 %v1706, 65535
    %v1708 = vshrl.u32 %v1706, 16
    %v1709 = vcvt.s32.f32 %v1707
    %v1710 = vcvt.s32.f32 %v1708
    %1711 = vadd.xlane.f32.xlu0 %v1709
    %v1712 = vpop.xlane.xlu0 %1711
    %1713 = vadd.xlane.f32.xlu0 %v1710
    %v1714 = vpop.xlane.xlu0 %1713
    %v1715 = vcvt.f32.s32 %v1712
    %v1716 = vcvt.f32.s32 %v1714
    %v1717 = vshll.u32 %v1716, 16
    %v1718 = vadd.s32 %v1717, %v1715
    %v1719 = vsel %vm180, %v1691, 0
    %v1720 = vand.u32 %v1719, 65535
    %v1721 = vshrl.u32 %v1719, 16
    %v1722 = vcvt.s32.f32 %v1720
    %v1723 = vcvt.s32.f32 %v1721
    %1724 = vadd.xlane.f32.xlu0 %v1722
    %v1725 = vpop.xlane.xlu0 %1724
    %1726 = vadd.xlane.f32.xlu0 %v1723
    %v1727 = vpop.xlane.xlu0 %1726
    %v1728 = vcvt.f32.s32 %v1725
    %v1729 = vcvt.f32.s32 %v1727
    %v1730 = vshll.u32 %v1729, 16
    %v1731 = vadd.s32 %v1730, %v1728
    %v1732 = vsel %vm180, %v1692, 0
    %v1733 = vand.u32 %v1732, 65535
    %v1734 = vshrl.u32 %v1732, 16
    %v1735 = vcvt.s32.f32 %v1733
    %v1736 = vcvt.s32.f32 %v1734
    %1737 = vadd.xlane.f32.xlu0 %v1735
    %v1738 = vpop.xlane.xlu0 %1737
    %1739 = vadd.xlane.f32.xlu0 %v1736
    %v1740 = vpop.xlane.xlu0 %1739
    %v1741 = vcvt.f32.s32 %v1738
    %v1742 = vcvt.f32.s32 %v1740
    %v1743 = vshll.u32 %v1742, 16
    %v1744 = vadd.s32 %v1743, %v1741
    %v1745 = vadd.s32 %v1705, %v1718
    %v1746 = vadd.s32 %v1731, %v1744
    %v1747 = vadd.s32 %v1745, %v1746
    %v1748 = vrot.slane %v1747, 4
    %v1749 = vadd.s32 %v1747, %v1748
    %v1750 = vrot.slane %v1749, 2
    %v1751 = vadd.s32 %v1749, %v1750
    %v1752 = vrot.slane %v1751, 1
    %v1753 = vadd.s32 %v1751, %v1752
    %vm1754 = vcmp.ge.s32.totalorder %v1753, 77
    %v1755 = vsel %vm1754, %v1684, %v1683
    %v1756 = vor.u32 %v1755, 512
    %vm1757 = vcmp.ge.s32.totalorder %v168, %v1756
    %vm1758 = vcmp.ge.s32.totalorder %v169, %v1756
    %vm1759 = vcmp.ge.s32.totalorder %v170, %v1756
    %vm1760 = vcmp.ge.s32.totalorder %v171, %v1756
    %v1761 = vsel %vm1757, 1, 0
    %v1762 = vsel %vm1758, 1, 0
    %v1763 = vsel %vm1759, 1, 0
    %v1764 = vsel %vm1760, 1, 0
    %v1765 = vsel %vm180, %v1761, 0
    %v1766 = vand.u32 %v1765, 65535
    %v1767 = vshrl.u32 %v1765, 16
    %v1768 = vcvt.s32.f32 %v1766
    %v1769 = vcvt.s32.f32 %v1767
    %1770 = vadd.xlane.f32.xlu0 %v1768
    %v1771 = vpop.xlane.xlu0 %1770
    %1772 = vadd.xlane.f32.xlu0 %v1769
    %v1773 = vpop.xlane.xlu0 %1772
    %v1774 = vcvt.f32.s32 %v1771
    %v1775 = vcvt.f32.s32 %v1773
    %v1776 = vshll.u32 %v1775, 16
    %v1777 = vadd.s32 %v1776, %v1774
    %v1778 = vsel %vm180, %v1762, 0
    %v1779 = vand.u32 %v1778, 65535
    %v1780 = vshrl.u32 %v1778, 16
    %v1781 = vcvt.s32.f32 %v1779
    %v1782 = vcvt.s32.f32 %v1780
    %1783 = vadd.xlane.f32.xlu0 %v1781
    %v1784 = vpop.xlane.xlu0 %1783
    %1785 = vadd.xlane.f32.xlu0 %v1782
    %v1786 = vpop.xlane.xlu0 %1785
    %v1787 = vcvt.f32.s32 %v1784
    %v1788 = vcvt.f32.s32 %v1786
    %v1789 = vshll.u32 %v1788, 16
    %v1790 = vadd.s32 %v1789, %v1787
    %v1791 = vsel %vm180, %v1763, 0
    %v1792 = vand.u32 %v1791, 65535
    %v1793 = vshrl.u32 %v1791, 16
    %v1794 = vcvt.s32.f32 %v1792
    %v1795 = vcvt.s32.f32 %v1793
    %1796 = vadd.xlane.f32.xlu0 %v1794
    %v1797 = vpop.xlane.xlu0 %1796
    %1798 = vadd.xlane.f32.xlu0 %v1795
    %v1799 = vpop.xlane.xlu0 %1798
    %v1800 = vcvt.f32.s32 %v1797
    %v1801 = vcvt.f32.s32 %v1799
    %v1802 = vshll.u32 %v1801, 16
    %v1803 = vadd.s32 %v1802, %v1800
    %v1804 = vsel %vm180, %v1764, 0
    %v1805 = vand.u32 %v1804, 65535
    %v1806 = vshrl.u32 %v1804, 16
    %v1807 = vcvt.s32.f32 %v1805
    %v1808 = vcvt.s32.f32 %v1806
    %1809 = vadd.xlane.f32.xlu0 %v1807
    %v1810 = vpop.xlane.xlu0 %1809
    %1811 = vadd.xlane.f32.xlu0 %v1808
    %v1812 = vpop.xlane.xlu0 %1811
    %v1813 = vcvt.f32.s32 %v1810
    %v1814 = vcvt.f32.s32 %v1812
    %v1815 = vshll.u32 %v1814, 16
    %v1816 = vadd.s32 %v1815, %v1813
    %v1817 = vadd.s32 %v1777, %v1790
    %v1818 = vadd.s32 %v1803, %v1816
    %v1819 = vadd.s32 %v1817, %v1818
    %v1820 = vrot.slane %v1819, 4
    %v1821 = vadd.s32 %v1819, %v1820
    %v1822 = vrot.slane %v1821, 2
    %v1823 = vadd.s32 %v1821, %v1822
    %v1824 = vrot.slane %v1823, 1
    %v1825 = vadd.s32 %v1823, %v1824
    %vm1826 = vcmp.ge.s32.totalorder %v1825, 77
    %v1827 = vsel %vm1826, %v1756, %v1755
    %v1828 = vor.u32 %v1827, 256
    %vm1829 = vcmp.ge.s32.totalorder %v168, %v1828
    %vm1830 = vcmp.ge.s32.totalorder %v169, %v1828
    %vm1831 = vcmp.ge.s32.totalorder %v170, %v1828
    %vm1832 = vcmp.ge.s32.totalorder %v171, %v1828
    %v1833 = vsel %vm1829, 1, 0
    %v1834 = vsel %vm1830, 1, 0
    %v1835 = vsel %vm1831, 1, 0
    %v1836 = vsel %vm1832, 1, 0
    %v1837 = vsel %vm180, %v1833, 0
    %v1838 = vand.u32 %v1837, 65535
    %v1839 = vshrl.u32 %v1837, 16
    %v1840 = vcvt.s32.f32 %v1838
    %v1841 = vcvt.s32.f32 %v1839
    %1842 = vadd.xlane.f32.xlu0 %v1840
    %v1843 = vpop.xlane.xlu0 %1842
    %1844 = vadd.xlane.f32.xlu0 %v1841
    %v1845 = vpop.xlane.xlu0 %1844
    %v1846 = vcvt.f32.s32 %v1843
    %v1847 = vcvt.f32.s32 %v1845
    %v1848 = vshll.u32 %v1847, 16
    %v1849 = vadd.s32 %v1848, %v1846
    %v1850 = vsel %vm180, %v1834, 0
    %v1851 = vand.u32 %v1850, 65535
    %v1852 = vshrl.u32 %v1850, 16
    %v1853 = vcvt.s32.f32 %v1851
    %v1854 = vcvt.s32.f32 %v1852
    %1855 = vadd.xlane.f32.xlu0 %v1853
    %v1856 = vpop.xlane.xlu0 %1855
    %1857 = vadd.xlane.f32.xlu0 %v1854
    %v1858 = vpop.xlane.xlu0 %1857
    %v1859 = vcvt.f32.s32 %v1856
    %v1860 = vcvt.f32.s32 %v1858
    %v1861 = vshll.u32 %v1860, 16
    %v1862 = vadd.s32 %v1861, %v1859
    %v1863 = vsel %vm180, %v1835, 0
    %v1864 = vand.u32 %v1863, 65535
    %v1865 = vshrl.u32 %v1863, 16
    %v1866 = vcvt.s32.f32 %v1864
    %v1867 = vcvt.s32.f32 %v1865
    %1868 = vadd.xlane.f32.xlu0 %v1866
    %v1869 = vpop.xlane.xlu0 %1868
    %1870 = vadd.xlane.f32.xlu0 %v1867
    %v1871 = vpop.xlane.xlu0 %1870
    %v1872 = vcvt.f32.s32 %v1869
    %v1873 = vcvt.f32.s32 %v1871
    %v1874 = vshll.u32 %v1873, 16
    %v1875 = vadd.s32 %v1874, %v1872
    %v1876 = vsel %vm180, %v1836, 0
    %v1877 = vand.u32 %v1876, 65535
    %v1878 = vshrl.u32 %v1876, 16
    %v1879 = vcvt.s32.f32 %v1877
    %v1880 = vcvt.s32.f32 %v1878
    %1881 = vadd.xlane.f32.xlu0 %v1879
    %v1882 = vpop.xlane.xlu0 %1881
    %1883 = vadd.xlane.f32.xlu0 %v1880
    %v1884 = vpop.xlane.xlu0 %1883
    %v1885 = vcvt.f32.s32 %v1882
    %v1886 = vcvt.f32.s32 %v1884
    %v1887 = vshll.u32 %v1886, 16
    %v1888 = vadd.s32 %v1887, %v1885
    %v1889 = vadd.s32 %v1849, %v1862
    %v1890 = vadd.s32 %v1875, %v1888
    %v1891 = vadd.s32 %v1889, %v1890
    %v1892 = vrot.slane %v1891, 4
    %v1893 = vadd.s32 %v1891, %v1892
    %v1894 = vrot.slane %v1893, 2
    %v1895 = vadd.s32 %v1893, %v1894
    %v1896 = vrot.slane %v1895, 1
    %v1897 = vadd.s32 %v1895, %v1896
    %vm1898 = vcmp.ge.s32.totalorder %v1897, 77
    %v1899 = vsel %vm1898, %v1828, %v1827
    %v1900 = vor.u32 %v1899, 128
    %vm1901 = vcmp.ge.s32.totalorder %v168, %v1900
    %vm1902 = vcmp.ge.s32.totalorder %v169, %v1900
    %vm1903 = vcmp.ge.s32.totalorder %v170, %v1900
    %vm1904 = vcmp.ge.s32.totalorder %v171, %v1900
    %v1905 = vsel %vm1901, 1, 0
    %v1906 = vsel %vm1902, 1, 0
    %v1907 = vsel %vm1903, 1, 0
    %v1908 = vsel %vm1904, 1, 0
    %v1909 = vsel %vm180, %v1905, 0
    %v1910 = vand.u32 %v1909, 65535
    %v1911 = vshrl.u32 %v1909, 16
    %v1912 = vcvt.s32.f32 %v1910
    %v1913 = vcvt.s32.f32 %v1911
    %1914 = vadd.xlane.f32.xlu0 %v1912
    %v1915 = vpop.xlane.xlu0 %1914
    %1916 = vadd.xlane.f32.xlu0 %v1913
    %v1917 = vpop.xlane.xlu0 %1916
    %v1918 = vcvt.f32.s32 %v1915
    %v1919 = vcvt.f32.s32 %v1917
    %v1920 = vshll.u32 %v1919, 16
    %v1921 = vadd.s32 %v1920, %v1918
    %v1922 = vsel %vm180, %v1906, 0
    %v1923 = vand.u32 %v1922, 65535
    %v1924 = vshrl.u32 %v1922, 16
    %v1925 = vcvt.s32.f32 %v1923
    %v1926 = vcvt.s32.f32 %v1924
    %1927 = vadd.xlane.f32.xlu0 %v1925
    %v1928 = vpop.xlane.xlu0 %1927
    %1929 = vadd.xlane.f32.xlu0 %v1926
    %v1930 = vpop.xlane.xlu0 %1929
    %v1931 = vcvt.f32.s32 %v1928
    %v1932 = vcvt.f32.s32 %v1930
    %v1933 = vshll.u32 %v1932, 16
    %v1934 = vadd.s32 %v1933, %v1931
    %v1935 = vsel %vm180, %v1907, 0
    %v1936 = vand.u32 %v1935, 65535
    %v1937 = vshrl.u32 %v1935, 16
    %v1938 = vcvt.s32.f32 %v1936
    %v1939 = vcvt.s32.f32 %v1937
    %1940 = vadd.xlane.f32.xlu0 %v1938
    %v1941 = vpop.xlane.xlu0 %1940
    %1942 = vadd.xlane.f32.xlu0 %v1939
    %v1943 = vpop.xlane.xlu0 %1942
    %v1944 = vcvt.f32.s32 %v1941
    %v1945 = vcvt.f32.s32 %v1943
    %v1946 = vshll.u32 %v1945, 16
    %v1947 = vadd.s32 %v1946, %v1944
    %v1948 = vsel %vm180, %v1908, 0
    %v1949 = vand.u32 %v1948, 65535
    %v1950 = vshrl.u32 %v1948, 16
    %v1951 = vcvt.s32.f32 %v1949
    %v1952 = vcvt.s32.f32 %v1950
    %1953 = vadd.xlane.f32.xlu0 %v1951
    %v1954 = vpop.xlane.xlu0 %1953
    %1955 = vadd.xlane.f32.xlu0 %v1952
    %v1956 = vpop.xlane.xlu0 %1955
    %v1957 = vcvt.f32.s32 %v1954
    %v1958 = vcvt.f32.s32 %v1956
    %v1959 = vshll.u32 %v1958, 16
    %v1960 = vadd.s32 %v1959, %v1957
    %v1961 = vadd.s32 %v1921, %v1934
    %v1962 = vadd.s32 %v1947, %v1960
    %v1963 = vadd.s32 %v1961, %v1962
    %v1964 = vrot.slane %v1963, 4
    %v1965 = vadd.s32 %v1963, %v1964
    %v1966 = vrot.slane %v1965, 2
    %v1967 = vadd.s32 %v1965, %v1966
    %v1968 = vrot.slane %v1967, 1
    %v1969 = vadd.s32 %v1967, %v1968
    %vm1970 = vcmp.ge.s32.totalorder %v1969, 77
    %v1971 = vsel %vm1970, %v1900, %v1899
    %v1972 = vor.u32 %v1971, 64
    %vm1973 = vcmp.ge.s32.totalorder %v168, %v1972
    %vm1974 = vcmp.ge.s32.totalorder %v169, %v1972
    %vm1975 = vcmp.ge.s32.totalorder %v170, %v1972
    %vm1976 = vcmp.ge.s32.totalorder %v171, %v1972
    %v1977 = vsel %vm1973, 1, 0
    %v1978 = vsel %vm1974, 1, 0
    %v1979 = vsel %vm1975, 1, 0
    %v1980 = vsel %vm1976, 1, 0
    %v1981 = vsel %vm180, %v1977, 0
    %v1982 = vand.u32 %v1981, 65535
    %v1983 = vshrl.u32 %v1981, 16
    %v1984 = vcvt.s32.f32 %v1982
    %v1985 = vcvt.s32.f32 %v1983
    %1986 = vadd.xlane.f32.xlu0 %v1984
    %v1987 = vpop.xlane.xlu0 %1986
    %1988 = vadd.xlane.f32.xlu0 %v1985
    %v1989 = vpop.xlane.xlu0 %1988
    %v1990 = vcvt.f32.s32 %v1987
    %v1991 = vcvt.f32.s32 %v1989
    %v1992 = vshll.u32 %v1991, 16
    %v1993 = vadd.s32 %v1992, %v1990
    %v1994 = vsel %vm180, %v1978, 0
    %v1995 = vand.u32 %v1994, 65535
    %v1996 = vshrl.u32 %v1994, 16
    %v1997 = vcvt.s32.f32 %v1995
    %v1998 = vcvt.s32.f32 %v1996
    %1999 = vadd.xlane.f32.xlu0 %v1997
    %v2000 = vpop.xlane.xlu0 %1999
    %2001 = vadd.xlane.f32.xlu0 %v1998
    %v2002 = vpop.xlane.xlu0 %2001
    %v2003 = vcvt.f32.s32 %v2000
    %v2004 = vcvt.f32.s32 %v2002
    %v2005 = vshll.u32 %v2004, 16
    %v2006 = vadd.s32 %v2005, %v2003
    %v2007 = vsel %vm180, %v1979, 0
    %v2008 = vand.u32 %v2007, 65535
    %v2009 = vshrl.u32 %v2007, 16
    %v2010 = vcvt.s32.f32 %v2008
    %v2011 = vcvt.s32.f32 %v2009
    %2012 = vadd.xlane.f32.xlu0 %v2010
    %v2013 = vpop.xlane.xlu0 %2012
    %2014 = vadd.xlane.f32.xlu0 %v2011
    %v2015 = vpop.xlane.xlu0 %2014
    %v2016 = vcvt.f32.s32 %v2013
    %v2017 = vcvt.f32.s32 %v2015
    %v2018 = vshll.u32 %v2017, 16
    %v2019 = vadd.s32 %v2018, %v2016
    %v2020 = vsel %vm180, %v1980, 0
    %v2021 = vand.u32 %v2020, 65535
    %v2022 = vshrl.u32 %v2020, 16
    %v2023 = vcvt.s32.f32 %v2021
    %v2024 = vcvt.s32.f32 %v2022
    %2025 = vadd.xlane.f32.xlu0 %v2023
    %v2026 = vpop.xlane.xlu0 %2025
    %2027 = vadd.xlane.f32.xlu0 %v2024
    %v2028 = vpop.xlane.xlu0 %2027
    %v2029 = vcvt.f32.s32 %v2026
    %v2030 = vcvt.f32.s32 %v2028
    %v2031 = vshll.u32 %v2030, 16
    %v2032 = vadd.s32 %v2031, %v2029
    %v2033 = vadd.s32 %v1993, %v2006
    %v2034 = vadd.s32 %v2019, %v2032
    %v2035 = vadd.s32 %v2033, %v2034
    %v2036 = vrot.slane %v2035, 4
    %v2037 = vadd.s32 %v2035, %v2036
    %v2038 = vrot.slane %v2037, 2
    %v2039 = vadd.s32 %v2037, %v2038
    %v2040 = vrot.slane %v2039, 1
    %v2041 = vadd.s32 %v2039, %v2040
    %vm2042 = vcmp.ge.s32.totalorder %v2041, 77
    %v2043 = vsel %vm2042, %v1972, %v1971
    %v2044 = vor.u32 %v2043, 32
    %vm2045 = vcmp.ge.s32.totalorder %v168, %v2044
    %vm2046 = vcmp.ge.s32.totalorder %v169, %v2044
    %vm2047 = vcmp.ge.s32.totalorder %v170, %v2044
    %vm2048 = vcmp.ge.s32.totalorder %v171, %v2044
    %v2049 = vsel %vm2045, 1, 0
    %v2050 = vsel %vm2046, 1, 0
    %v2051 = vsel %vm2047, 1, 0
    %v2052 = vsel %vm2048, 1, 0
    %v2053 = vsel %vm180, %v2049, 0
    %v2054 = vand.u32 %v2053, 65535
    %v2055 = vshrl.u32 %v2053, 16
    %v2056 = vcvt.s32.f32 %v2054
    %v2057 = vcvt.s32.f32 %v2055
    %2058 = vadd.xlane.f32.xlu0 %v2056
    %v2059 = vpop.xlane.xlu0 %2058
    %2060 = vadd.xlane.f32.xlu0 %v2057
    %v2061 = vpop.xlane.xlu0 %2060
    %v2062 = vcvt.f32.s32 %v2059
    %v2063 = vcvt.f32.s32 %v2061
    %v2064 = vshll.u32 %v2063, 16
    %v2065 = vadd.s32 %v2064, %v2062
    %v2066 = vsel %vm180, %v2050, 0
    %v2067 = vand.u32 %v2066, 65535
    %v2068 = vshrl.u32 %v2066, 16
    %v2069 = vcvt.s32.f32 %v2067
    %v2070 = vcvt.s32.f32 %v2068
    %2071 = vadd.xlane.f32.xlu0 %v2069
    %v2072 = vpop.xlane.xlu0 %2071
    %2073 = vadd.xlane.f32.xlu0 %v2070
    %v2074 = vpop.xlane.xlu0 %2073
    %v2075 = vcvt.f32.s32 %v2072
    %v2076 = vcvt.f32.s32 %v2074
    %v2077 = vshll.u32 %v2076, 16
    %v2078 = vadd.s32 %v2077, %v2075
    %v2079 = vsel %vm180, %v2051, 0
    %v2080 = vand.u32 %v2079, 65535
    %v2081 = vshrl.u32 %v2079, 16
    %v2082 = vcvt.s32.f32 %v2080
    %v2083 = vcvt.s32.f32 %v2081
    %2084 = vadd.xlane.f32.xlu0 %v2082
    %v2085 = vpop.xlane.xlu0 %2084
    %2086 = vadd.xlane.f32.xlu0 %v2083
    %v2087 = vpop.xlane.xlu0 %2086
    %v2088 = vcvt.f32.s32 %v2085
    %v2089 = vcvt.f32.s32 %v2087
    %v2090 = vshll.u32 %v2089, 16
    %v2091 = vadd.s32 %v2090, %v2088
    %v2092 = vsel %vm180, %v2052, 0
    %v2093 = vand.u32 %v2092, 65535
    %v2094 = vshrl.u32 %v2092, 16
    %v2095 = vcvt.s32.f32 %v2093
    %v2096 = vcvt.s32.f32 %v2094
    %2097 = vadd.xlane.f32.xlu0 %v2095
    %v2098 = vpop.xlane.xlu0 %2097
    %2099 = vadd.xlane.f32.xlu0 %v2096
    %v2100 = vpop.xlane.xlu0 %2099
    %v2101 = vcvt.f32.s32 %v2098
    %v2102 = vcvt.f32.s32 %v2100
    %v2103 = vshll.u32 %v2102, 16
    %v2104 = vadd.s32 %v2103, %v2101
    %v2105 = vadd.s32 %v2065, %v2078
    %v2106 = vadd.s32 %v2091, %v2104
    %v2107 = vadd.s32 %v2105, %v2106
    %v2108 = vrot.slane %v2107, 4
    %v2109 = vadd.s32 %v2107, %v2108
    %v2110 = vrot.slane %v2109, 2
    %v2111 = vadd.s32 %v2109, %v2110
    %v2112 = vrot.slane %v2111, 1
    %v2113 = vadd.s32 %v2111, %v2112
    %vm2114 = vcmp.ge.s32.totalorder %v2113, 77
    %v2115 = vsel %vm2114, %v2044, %v2043
    %v2116 = vor.u32 %v2115, 16
    %vm2117 = vcmp.ge.s32.totalorder %v168, %v2116
    %vm2118 = vcmp.ge.s32.totalorder %v169, %v2116
    %vm2119 = vcmp.ge.s32.totalorder %v170, %v2116
    %vm2120 = vcmp.ge.s32.totalorder %v171, %v2116
    %v2121 = vsel %vm2117, 1, 0
    %v2122 = vsel %vm2118, 1, 0
    %v2123 = vsel %vm2119, 1, 0
    %v2124 = vsel %vm2120, 1, 0
    %v2125 = vsel %vm180, %v2121, 0
    %v2126 = vand.u32 %v2125, 65535
    %v2127 = vshrl.u32 %v2125, 16
    %v2128 = vcvt.s32.f32 %v2126
    %v2129 = vcvt.s32.f32 %v2127
    %2130 = vadd.xlane.f32.xlu0 %v2128
    %v2131 = vpop.xlane.xlu0 %2130
    %2132 = vadd.xlane.f32.xlu0 %v2129
    %v2133 = vpop.xlane.xlu0 %2132
    %v2134 = vcvt.f32.s32 %v2131
    %v2135 = vcvt.f32.s32 %v2133
    %v2136 = vshll.u32 %v2135, 16
    %v2137 = vadd.s32 %v2136, %v2134
    %v2138 = vsel %vm180, %v2122, 0
    %v2139 = vand.u32 %v2138, 65535
    %v2140 = vshrl.u32 %v2138, 16
    %v2141 = vcvt.s32.f32 %v2139
    %v2142 = vcvt.s32.f32 %v2140
    %2143 = vadd.xlane.f32.xlu0 %v2141
    %v2144 = vpop.xlane.xlu0 %2143
    %2145 = vadd.xlane.f32.xlu0 %v2142
    %v2146 = vpop.xlane.xlu0 %2145
    %v2147 = vcvt.f32.s32 %v2144
    %v2148 = vcvt.f32.s32 %v2146
    %v2149 = vshll.u32 %v2148, 16
    %v2150 = vadd.s32 %v2149, %v2147
    %v2151 = vsel %vm180, %v2123, 0
    %v2152 = vand.u32 %v2151, 65535
    %v2153 = vshrl.u32 %v2151, 16
    %v2154 = vcvt.s32.f32 %v2152
    %v2155 = vcvt.s32.f32 %v2153
    %2156 = vadd.xlane.f32.xlu0 %v2154
    %v2157 = vpop.xlane.xlu0 %2156
    %2158 = vadd.xlane.f32.xlu0 %v2155
    %v2159 = vpop.xlane.xlu0 %2158
    %v2160 = vcvt.f32.s32 %v2157
    %v2161 = vcvt.f32.s32 %v2159
    %v2162 = vshll.u32 %v2161, 16
    %v2163 = vadd.s32 %v2162, %v2160
    %v2164 = vsel %vm180, %v2124, 0
    %v2165 = vand.u32 %v2164, 65535
    %v2166 = vshrl.u32 %v2164, 16
    %v2167 = vcvt.s32.f32 %v2165
    %v2168 = vcvt.s32.f32 %v2166
    %2169 = vadd.xlane.f32.xlu0 %v2167
    %v2170 = vpop.xlane.xlu0 %2169
    %2171 = vadd.xlane.f32.xlu0 %v2168
    %v2172 = vpop.xlane.xlu0 %2171
    %v2173 = vcvt.f32.s32 %v2170
    %v2174 = vcvt.f32.s32 %v2172
    %v2175 = vshll.u32 %v2174, 16
    %v2176 = vadd.s32 %v2175, %v2173
    %v2177 = vadd.s32 %v2137, %v2150
    %v2178 = vadd.s32 %v2163, %v2176
    %v2179 = vadd.s32 %v2177, %v2178
    %v2180 = vrot.slane %v2179, 4
    %v2181 = vadd.s32 %v2179, %v2180
    %v2182 = vrot.slane %v2181, 2
    %v2183 = vadd.s32 %v2181, %v2182
    %v2184 = vrot.slane %v2183, 1
    %v2185 = vadd.s32 %v2183, %v2184
    %vm2186 = vcmp.ge.s32.totalorder %v2185, 77
    %v2187 = vsel %vm2186, %v2116, %v2115
    %v2188 = vor.u32 %v2187, 8
    %vm2189 = vcmp.ge.s32.totalorder %v168, %v2188
    %vm2190 = vcmp.ge.s32.totalorder %v169, %v2188
    %vm2191 = vcmp.ge.s32.totalorder %v170, %v2188
    %vm2192 = vcmp.ge.s32.totalorder %v171, %v2188
    %v2193 = vsel %vm2189, 1, 0
    %v2194 = vsel %vm2190, 1, 0
    %v2195 = vsel %vm2191, 1, 0
    %v2196 = vsel %vm2192, 1, 0
    %v2197 = vsel %vm180, %v2193, 0
    %v2198 = vand.u32 %v2197, 65535
    %v2199 = vshrl.u32 %v2197, 16
    %v2200 = vcvt.s32.f32 %v2198
    %v2201 = vcvt.s32.f32 %v2199
    %2202 = vadd.xlane.f32.xlu0 %v2200
    %v2203 = vpop.xlane.xlu0 %2202
    %2204 = vadd.xlane.f32.xlu0 %v2201
    %v2205 = vpop.xlane.xlu0 %2204
    %v2206 = vcvt.f32.s32 %v2203
    %v2207 = vcvt.f32.s32 %v2205
    %v2208 = vshll.u32 %v2207, 16
    %v2209 = vadd.s32 %v2208, %v2206
    %v2210 = vsel %vm180, %v2194, 0
    %v2211 = vand.u32 %v2210, 65535
    %v2212 = vshrl.u32 %v2210, 16
    %v2213 = vcvt.s32.f32 %v2211
    %v2214 = vcvt.s32.f32 %v2212
    %2215 = vadd.xlane.f32.xlu0 %v2213
    %v2216 = vpop.xlane.xlu0 %2215
    %2217 = vadd.xlane.f32.xlu0 %v2214
    %v2218 = vpop.xlane.xlu0 %2217
    %v2219 = vcvt.f32.s32 %v2216
    %v2220 = vcvt.f32.s32 %v2218
    %v2221 = vshll.u32 %v2220, 16
    %v2222 = vadd.s32 %v2221, %v2219
    %v2223 = vsel %vm180, %v2195, 0
    %v2224 = vand.u32 %v2223, 65535
    %v2225 = vshrl.u32 %v2223, 16
    %v2226 = vcvt.s32.f32 %v2224
    %v2227 = vcvt.s32.f32 %v2225
    %2228 = vadd.xlane.f32.xlu0 %v2226
    %v2229 = vpop.xlane.xlu0 %2228
    %2230 = vadd.xlane.f32.xlu0 %v2227
    %v2231 = vpop.xlane.xlu0 %2230
    %v2232 = vcvt.f32.s32 %v2229
    %v2233 = vcvt.f32.s32 %v2231
    %v2234 = vshll.u32 %v2233, 16
    %v2235 = vadd.s32 %v2234, %v2232
    %v2236 = vsel %vm180, %v2196, 0
    %v2237 = vand.u32 %v2236, 65535
    %v2238 = vshrl.u32 %v2236, 16
    %v2239 = vcvt.s32.f32 %v2237
    %v2240 = vcvt.s32.f32 %v2238
    %2241 = vadd.xlane.f32.xlu0 %v2239
    %v2242 = vpop.xlane.xlu0 %2241
    %2243 = vadd.xlane.f32.xlu0 %v2240
    %v2244 = vpop.xlane.xlu0 %2243
    %v2245 = vcvt.f32.s32 %v2242
    %v2246 = vcvt.f32.s32 %v2244
    %v2247 = vshll.u32 %v2246, 16
    %v2248 = vadd.s32 %v2247, %v2245
    %v2249 = vadd.s32 %v2209, %v2222
    %v2250 = vadd.s32 %v2235, %v2248
    %v2251 = vadd.s32 %v2249, %v2250
    %v2252 = vrot.slane %v2251, 4
    %v2253 = vadd.s32 %v2251, %v2252
    %v2254 = vrot.slane %v2253, 2
    %v2255 = vadd.s32 %v2253, %v2254
    %v2256 = vrot.slane %v2255, 1
    %v2257 = vadd.s32 %v2255, %v2256
    %vm2258 = vcmp.ge.s32.totalorder %v2257, 77
    %v2259 = vsel %vm2258, %v2188, %v2187
    %v2260 = vor.u32 %v2259, 4
    %vm2261 = vcmp.ge.s32.totalorder %v168, %v2260
    %vm2262 = vcmp.ge.s32.totalorder %v169, %v2260
    %vm2263 = vcmp.ge.s32.totalorder %v170, %v2260
    %vm2264 = vcmp.ge.s32.totalorder %v171, %v2260
    %v2265 = vsel %vm2261, 1, 0
    %v2266 = vsel %vm2262, 1, 0
    %v2267 = vsel %vm2263, 1, 0
    %v2268 = vsel %vm2264, 1, 0
    %v2269 = vsel %vm180, %v2265, 0
    %v2270 = vand.u32 %v2269, 65535
    %v2271 = vshrl.u32 %v2269, 16
    %v2272 = vcvt.s32.f32 %v2270
    %v2273 = vcvt.s32.f32 %v2271
    %2274 = vadd.xlane.f32.xlu0 %v2272
    %v2275 = vpop.xlane.xlu0 %2274
    %2276 = vadd.xlane.f32.xlu0 %v2273
    %v2277 = vpop.xlane.xlu0 %2276
    %v2278 = vcvt.f32.s32 %v2275
    %v2279 = vcvt.f32.s32 %v2277
    %v2280 = vshll.u32 %v2279, 16
    %v2281 = vadd.s32 %v2280, %v2278
    %v2282 = vsel %vm180, %v2266, 0
    %v2283 = vand.u32 %v2282, 65535
    %v2284 = vshrl.u32 %v2282, 16
    %v2285 = vcvt.s32.f32 %v2283
    %v2286 = vcvt.s32.f32 %v2284
    %2287 = vadd.xlane.f32.xlu0 %v2285
    %v2288 = vpop.xlane.xlu0 %2287
    %2289 = vadd.xlane.f32.xlu0 %v2286
    %v2290 = vpop.xlane.xlu0 %2289
    %v2291 = vcvt.f32.s32 %v2288
    %v2292 = vcvt.f32.s32 %v2290
    %v2293 = vshll.u32 %v2292, 16
    %v2294 = vadd.s32 %v2293, %v2291
    %v2295 = vsel %vm180, %v2267, 0
    %v2296 = vand.u32 %v2295, 65535
    %v2297 = vshrl.u32 %v2295, 16
    %v2298 = vcvt.s32.f32 %v2296
    %v2299 = vcvt.s32.f32 %v2297
    %2300 = vadd.xlane.f32.xlu0 %v2298
    %v2301 = vpop.xlane.xlu0 %2300
    %2302 = vadd.xlane.f32.xlu0 %v2299
    %v2303 = vpop.xlane.xlu0 %2302
    %v2304 = vcvt.f32.s32 %v2301
    %v2305 = vcvt.f32.s32 %v2303
    %v2306 = vshll.u32 %v2305, 16
    %v2307 = vadd.s32 %v2306, %v2304
    %v2308 = vsel %vm180, %v2268, 0
    %v2309 = vand.u32 %v2308, 65535
    %v2310 = vshrl.u32 %v2308, 16
    %v2311 = vcvt.s32.f32 %v2309
    %v2312 = vcvt.s32.f32 %v2310
    %2313 = vadd.xlane.f32.xlu0 %v2311
    %v2314 = vpop.xlane.xlu0 %2313
    %2315 = vadd.xlane.f32.xlu0 %v2312
    %v2316 = vpop.xlane.xlu0 %2315
    %v2317 = vcvt.f32.s32 %v2314
    %v2318 = vcvt.f32.s32 %v2316
    %v2319 = vshll.u32 %v2318, 16
    %v2320 = vadd.s32 %v2319, %v2317
    %v2321 = vadd.s32 %v2281, %v2294
    %v2322 = vadd.s32 %v2307, %v2320
    %v2323 = vadd.s32 %v2321, %v2322
    %v2324 = vrot.slane %v2323, 4
    %v2325 = vadd.s32 %v2323, %v2324
    %v2326 = vrot.slane %v2325, 2
    %v2327 = vadd.s32 %v2325, %v2326
    %v2328 = vrot.slane %v2327, 1
    %v2329 = vadd.s32 %v2327, %v2328
    %vm2330 = vcmp.ge.s32.totalorder %v2329, 77
    %v2331 = vsel %vm2330, %v2260, %v2259
    %v2332 = vor.u32 %v2331, 2
    %vm2333 = vcmp.ge.s32.totalorder %v168, %v2332
    %vm2334 = vcmp.ge.s32.totalorder %v169, %v2332
    %vm2335 = vcmp.ge.s32.totalorder %v170, %v2332
    %vm2336 = vcmp.ge.s32.totalorder %v171, %v2332
    %v2337 = vsel %vm2333, 1, 0
    %v2338 = vsel %vm2334, 1, 0
    %v2339 = vsel %vm2335, 1, 0
    %v2340 = vsel %vm2336, 1, 0
    %v2341 = vsel %vm180, %v2337, 0
    %v2342 = vand.u32 %v2341, 65535
    %v2343 = vshrl.u32 %v2341, 16
    %v2344 = vcvt.s32.f32 %v2342
    %v2345 = vcvt.s32.f32 %v2343
    %2346 = vadd.xlane.f32.xlu0 %v2344
    %v2347 = vpop.xlane.xlu0 %2346
    %2348 = vadd.xlane.f32.xlu0 %v2345
    %v2349 = vpop.xlane.xlu0 %2348
    %v2350 = vcvt.f32.s32 %v2347
    %v2351 = vcvt.f32.s32 %v2349
    %v2352 = vshll.u32 %v2351, 16
    %v2353 = vadd.s32 %v2352, %v2350
    %v2354 = vsel %vm180, %v2338, 0
    %v2355 = vand.u32 %v2354, 65535
    %v2356 = vshrl.u32 %v2354, 16
    %v2357 = vcvt.s32.f32 %v2355
    %v2358 = vcvt.s32.f32 %v2356
    %2359 = vadd.xlane.f32.xlu0 %v2357
    %v2360 = vpop.xlane.xlu0 %2359
    %2361 = vadd.xlane.f32.xlu0 %v2358
    %v2362 = vpop.xlane.xlu0 %2361
    %v2363 = vcvt.f32.s32 %v2360
    %v2364 = vcvt.f32.s32 %v2362
    %v2365 = vshll.u32 %v2364, 16
    %v2366 = vadd.s32 %v2365, %v2363
    %v2367 = vsel %vm180, %v2339, 0
    %v2368 = vand.u32 %v2367, 65535
    %v2369 = vshrl.u32 %v2367, 16
    %v2370 = vcvt.s32.f32 %v2368
    %v2371 = vcvt.s32.f32 %v2369
    %2372 = vadd.xlane.f32.xlu0 %v2370
    %v2373 = vpop.xlane.xlu0 %2372
    %2374 = vadd.xlane.f32.xlu0 %v2371
    %v2375 = vpop.xlane.xlu0 %2374
    %v2376 = vcvt.f32.s32 %v2373
    %v2377 = vcvt.f32.s32 %v2375
    %v2378 = vshll.u32 %v2377, 16
    %v2379 = vadd.s32 %v2378, %v2376
    %v2380 = vsel %vm180, %v2340, 0
    %v2381 = vand.u32 %v2380, 65535
    %v2382 = vshrl.u32 %v2380, 16
    %v2383 = vcvt.s32.f32 %v2381
    %v2384 = vcvt.s32.f32 %v2382
    %2385 = vadd.xlane.f32.xlu0 %v2383
    %v2386 = vpop.xlane.xlu0 %2385
    %2387 = vadd.xlane.f32.xlu0 %v2384
    %v2388 = vpop.xlane.xlu0 %2387
    %v2389 = vcvt.f32.s32 %v2386
    %v2390 = vcvt.f32.s32 %v2388
    %v2391 = vshll.u32 %v2390, 16
    %v2392 = vadd.s32 %v2391, %v2389
    %v2393 = vadd.s32 %v2353, %v2366
    %v2394 = vadd.s32 %v2379, %v2392
    %v2395 = vadd.s32 %v2393, %v2394
    %v2396 = vrot.slane %v2395, 4
    %v2397 = vadd.s32 %v2395, %v2396
    %v2398 = vrot.slane %v2397, 2
    %v2399 = vadd.s32 %v2397, %v2398
    %v2400 = vrot.slane %v2399, 1
    %v2401 = vadd.s32 %v2399, %v2400
    %vm2402 = vcmp.ge.s32.totalorder %v2401, 77
    %v2403 = vsel %vm2402, %v2332, %v2331
    %v2404 = vor.u32 %v2403, 1
    %vm2405 = vcmp.ge.s32.totalorder %v168, %v2404
    %vm2406 = vcmp.ge.s32.totalorder %v169, %v2404
    %vm2407 = vcmp.ge.s32.totalorder %v170, %v2404
    %vm2408 = vcmp.ge.s32.totalorder %v171, %v2404
    %v2409 = vsel %vm2405, 1, 0
    %v2410 = vsel %vm2406, 1, 0
    %v2411 = vsel %vm2407, 1, 0
    %v2412 = vsel %vm2408, 1, 0
    %v2413 = vsel %vm180, %v2409, 0
    %v2414 = vand.u32 %v2413, 65535
    %v2415 = vshrl.u32 %v2413, 16
    %v2416 = vcvt.s32.f32 %v2414
    %v2417 = vcvt.s32.f32 %v2415
    %2418 = vadd.xlane.f32.xlu0 %v2416
    %v2419 = vpop.xlane.xlu0 %2418
    %2420 = vadd.xlane.f32.xlu0 %v2417
    %v2421 = vpop.xlane.xlu0 %2420
    %v2422 = vcvt.f32.s32 %v2419
    %v2423 = vcvt.f32.s32 %v2421
    %v2424 = vshll.u32 %v2423, 16
    %v2425 = vadd.s32 %v2424, %v2422
    %v2426 = vsel %vm180, %v2410, 0
    %v2427 = vand.u32 %v2426, 65535
    %v2428 = vshrl.u32 %v2426, 16
    %v2429 = vcvt.s32.f32 %v2427
    %v2430 = vcvt.s32.f32 %v2428
    %2431 = vadd.xlane.f32.xlu0 %v2429
    %v2432 = vpop.xlane.xlu0 %2431
    %2433 = vadd.xlane.f32.xlu0 %v2430
    %v2434 = vpop.xlane.xlu0 %2433
    %v2435 = vcvt.f32.s32 %v2432
    %v2436 = vcvt.f32.s32 %v2434
    %v2437 = vshll.u32 %v2436, 16
    %v2438 = vadd.s32 %v2437, %v2435
    %v2439 = vsel %vm180, %v2411, 0
    %v2440 = vand.u32 %v2439, 65535
    %v2441 = vshrl.u32 %v2439, 16
    %v2442 = vcvt.s32.f32 %v2440
    %v2443 = vcvt.s32.f32 %v2441
    %2444 = vadd.xlane.f32.xlu0 %v2442
    %v2445 = vpop.xlane.xlu0 %2444
    %2446 = vadd.xlane.f32.xlu0 %v2443
    %v2447 = vpop.xlane.xlu0 %2446
    %v2448 = vcvt.f32.s32 %v2445
    %v2449 = vcvt.f32.s32 %v2447
    %v2450 = vshll.u32 %v2449, 16
    %v2451 = vadd.s32 %v2450, %v2448
    %v2452 = vsel %vm180, %v2412, 0
    %v2453 = vand.u32 %v2452, 65535
    %v2454 = vshrl.u32 %v2452, 16
    %v2455 = vcvt.s32.f32 %v2453
    %v2456 = vcvt.s32.f32 %v2454
    %2457 = vadd.xlane.f32.xlu0 %v2455
    %v2458 = vpop.xlane.xlu0 %2457
    %2459 = vadd.xlane.f32.xlu0 %v2456
    %v2460 = vpop.xlane.xlu0 %2459
    %v2461 = vcvt.f32.s32 %v2458
    %v2462 = vcvt.f32.s32 %v2460
    %v2463 = vshll.u32 %v2462, 16
    %v2464 = vadd.s32 %v2463, %v2461
    %v2465 = vadd.s32 %v2425, %v2438
    %v2466 = vadd.s32 %v2451, %v2464
    %v2467 = vadd.s32 %v2465, %v2466
    %v2468 = vrot.slane %v2467, 4
    %v2469 = vadd.s32 %v2467, %v2468
    %v2470 = vrot.slane %v2469, 2
    %v2471 = vadd.s32 %v2469, %v2470
    %v2472 = vrot.slane %v2471, 1
    %v2473 = vadd.s32 %v2471, %v2472
    %vm2474 = vcmp.ge.s32.totalorder %v2473, 77
    %v2475 = vsel %vm2474, %v2404, %v2403
    %vm2476 = vcmp.ge.s32.totalorder %v168, %v2475
    %vm2477 = vcmp.ge.s32.totalorder %v169, %v2475
    %vm2478 = vcmp.ge.s32.totalorder %v170, %v2475
    %vm2479 = vcmp.ge.s32.totalorder %v171, %v2475
    %v2480 = vsel %vm2476, %v152, 0.0
    %v2481 = vsel %vm2477, %v153, 0.0
    %v2482 = vsel %vm2478, %v154, 0.0
    %v2483 = vsel %vm2479, %v155, 0.0
    %v2484 = vld [vmem:[%s3] sm:$0xff]
    %v2485 = vld [vmem:[%s4] sm:$0x1]
    %v2487 = vlaneseq
    %v2488 = vshrl.u32 %v2487, 7
    %v2489 = vsub.s32 0, %v2488
    %v2490 = vrot.slane %v2485, %v2489
    %v2493 = vsel %vm180, %v2480, 0
    %v2496 = vsel %vm180, %v2481, 0
    %v2499 = vsel %vm180, %v2482, 0
    %v2502 = vsel %vm180, %v2483, 0
    %2504 = vmatprep.subr.mxu0 0.0
    %2505 = vmatpush1.msra.mxu0 %v2484
    %2506 = vmatprep.subr.mxu0 0.0
    %2507 = vmatpush1.msra.mxu0 0.0
    %2508 = vmatprep.subr.mxu0 0.0
    %2509 = vmatpush1.msra.mxu0 0.0
    %2510 = vmatprep.subr.mxu0 0.0
    %2511 = vmatpush1.msra.mxu0 0.0
    %2512 = vmatprep.subr.mxu0 0.0
    %2513 = vmatpush1.msra.mxu0 0.0
    %2514 = vmatprep.subr.mxu0 0.0
    %2515 = vmatpush1.msra.mxu0 0.0
    %2516 = vmatprep.subr.mxu0 0.0
    %2517 = vmatpush1.msra.mxu0 0.0
    %2518 = vmatprep.subr.mxu0 0.0
    %2519 = vmatpush1.msra.mxu0 0.0
    %2520 = vmatprep.subr.mxu0 0.0
    %2521 = vmatpush1.msra.mxu0 0.0
    %2522 = vmatprep.subr.mxu0 0.0
    %2523 = vmatpush1.msra.mxu0 0.0
    %2524 = vmatprep.subr.mxu0 0.0
    %2525 = vmatpush1.msra.mxu0 0.0
    %2526 = vmatprep.subr.mxu0 0.0
    %2527 = vmatpush1.msra.mxu0 0.0
    %2528 = vmatprep.subr.mxu0 0.0
    %2529 = vmatpush1.msra.mxu0 0.0
    %2530 = vmatprep.subr.mxu0 0.0
    %2531 = vmatpush1.msra.mxu0 0.0
    %2532 = vmatprep.subr.mxu0 0.0
    %2533 = vmatpush1.msra.mxu0 0.0
    %2534 = vmatprep.subr.mxu0 0.0
    %2535 = vmatpush1.msra.mxu0 0.0
    %2536 = vmatprep.subr.mxu0 0.0
    %2537 = vmatpush1.msra.mxu0 0.0
    %2538 = vmatprep.subr.mxu0 0.0
    %2539 = vmatpush1.msra.mxu0 0.0
    %2540 = vmatprep.subr.mxu0 0.0
    %2541 = vmatpush1.msra.mxu0 0.0
    %2542 = vmatprep.subr.mxu0 0.0
    %2543 = vmatpush1.msra.mxu0 0.0
    %2544 = vmatprep.subr.mxu0 0.0
    %2545 = vmatpush1.msra.mxu0 0.0
    %2546 = vmatprep.subr.mxu0 0.0
    %2547 = vmatpush1.msra.mxu0 0.0
    %2548 = vmatprep.subr.mxu0 0.0
    %2549 = vmatpush1.msra.mxu0 0.0
    %2550 = vmatprep.subr.mxu0 0.0
    %2551 = vmatpush1.msra.mxu0 0.0
    %2552 = vmatprep.subr.mxu0 0.0
    %2553 = vmatpush1.msra.mxu0 0.0
    %2554 = vmatprep.subr.mxu0 0.0
    %2555 = vmatpush1.msra.mxu0 0.0
    %2556 = vmatprep.subr.mxu0 0.0
    %2557 = vmatpush1.msra.mxu0 0.0
    %2558 = vmatprep.subr.mxu0 0.0
    %2559 = vmatpush1.msra.mxu0 0.0
    %2560 = vmatprep.subr.mxu0 0.0
    %2561 = vmatpush1.msra.mxu0 0.0
    %2562 = vmatprep.subr.mxu0 0.0
    %2563 = vmatpush1.msra.mxu0 0.0
    %2564 = vmatprep.subr.mxu0 0.0
    %2565 = vmatpush1.msra.mxu0 0.0
    %2566 = vmatprep.subr.mxu0 0.0
    %2567 = vmatpush1.msra.mxu0 0.0
    %2568 = vmatprep.mubr.f32.mxu0 0.0
    %2569 = vmatmul.mubr.f32.gmra.mrb[0].mxu0 %v2493
    %v2570 = vpop.f32.mrb[0].mxu0
    %v2571 = vadd.f32 %v2490, %v2570
    %v2572 = vpop.f32.mrb[0].mxu0
    %2573 = vmatprep.mubr.f32.mxu0 0.0
    %2574 = vmatmul.mubr.f32.gmra.mrb[0].mxu0 %v2496
    %v2575 = vpop.f32.mrb[0].mxu0
    %v2576 = vadd.f32 %v2490, %v2575
    %v2577 = vpop.f32.mrb[0].mxu0
    %2578 = vmatprep.mubr.f32.mxu0 0.0
    %2579 = vmatmul.mubr.f32.gmra.mrb[0].mxu0 %v2499
    %v2580 = vpop.f32.mrb[0].mxu0
    %v2581 = vadd.f32 %v2490, %v2580
    %v2582 = vpop.f32.mrb[0].mxu0
    %2583 = vmatprep.mubr.f32.mxu0 0.0
    %2584 = vmatmul.mubr.f32.gmra.mrb[0].mxu0 %v2502
    %v2585 = vpop.f32.mrb[0].mxu0
    %v2586 = vadd.f32 %v2490, %v2585
    %v2587 = vpop.f32.mrb[0].mxu0
    %2588 = vdwg.mxu0
    %vm2593 = vcmp.lt.s32.totalorder %v2571, 0
    %vm2594 = vcmp.lt.s32.totalorder %v2576, 0
    %vm2595 = vcmp.lt.s32.totalorder %v2581, 0
    %vm2596 = vcmp.lt.s32.totalorder %v2586, 0
    %v2597 = vsel %vm2593, 2147483647, 0
    %v2598 = vsel %vm2594, 2147483647, 0
    %v2599 = vsel %vm2595, 2147483647, 0
    %v2600 = vsel %vm2596, 2147483647, 0
    %v2601 = vxor.u32 %v2571, %v2597
    %v2602 = vxor.u32 %v2576, %v2598
    %v2603 = vxor.u32 %v2581, %v2599
    %v2604 = vxor.u32 %v2586, %v2600
    %vm2605 = vcmp.ge.s32.totalorder %v2601, 0
    %vm2606 = vcmp.ge.s32.totalorder %v2602, 0
    %vm2607 = vcmp.ge.s32.totalorder %v2603, 0
    %vm2608 = vcmp.ge.s32.totalorder %v2604, 0
    %v2609 = vsel %vm2605, 1, 0
    %v2610 = vsel %vm2606, 1, 0
    %v2611 = vsel %vm2607, 1, 0
    %v2612 = vsel %vm2608, 1, 0
    %vm2613 = vcmask 130048
    %v2614 = vsel %vm2613, %v2609, 0
    %v2615 = vand.u32 %v2614, 65535
    %v2616 = vshrl.u32 %v2614, 16
    %v2617 = vcvt.s32.f32 %v2615
    %v2618 = vcvt.s32.f32 %v2616
    %2619 = vadd.xlane.f32.xlu0 %v2617
    %v2620 = vpop.xlane.xlu0 %2619
    %2621 = vadd.xlane.f32.xlu0 %v2618
    %v2622 = vpop.xlane.xlu0 %2621
    %v2623 = vcvt.f32.s32 %v2620
    %v2624 = vcvt.f32.s32 %v2622
    %v2625 = vshll.u32 %v2624, 16
    %v2626 = vadd.s32 %v2625, %v2623
    %v2627 = vsel %vm2613, %v2610, 0
    %v2628 = vand.u32 %v2627, 65535
    %v2629 = vshrl.u32 %v2627, 16
    %v2630 = vcvt.s32.f32 %v2628
    %v2631 = vcvt.s32.f32 %v2629
    %2632 = vadd.xlane.f32.xlu0 %v2630
    %v2633 = vpop.xlane.xlu0 %2632
    %2634 = vadd.xlane.f32.xlu0 %v2631
    %v2635 = vpop.xlane.xlu0 %2634
    %v2636 = vcvt.f32.s32 %v2633
    %v2637 = vcvt.f32.s32 %v2635
    %v2638 = vshll.u32 %v2637, 16
    %v2639 = vadd.s32 %v2638, %v2636
    %v2640 = vsel %vm2613, %v2611, 0
    %v2641 = vand.u32 %v2640, 65535
    %v2642 = vshrl.u32 %v2640, 16
    %v2643 = vcvt.s32.f32 %v2641
    %v2644 = vcvt.s32.f32 %v2642
    %2645 = vadd.xlane.f32.xlu0 %v2643
    %v2646 = vpop.xlane.xlu0 %2645
    %2647 = vadd.xlane.f32.xlu0 %v2644
    %v2648 = vpop.xlane.xlu0 %2647
    %v2649 = vcvt.f32.s32 %v2646
    %v2650 = vcvt.f32.s32 %v2648
    %v2651 = vshll.u32 %v2650, 16
    %v2652 = vadd.s32 %v2651, %v2649
    %v2653 = vsel %vm2613, %v2612, 0
    %v2654 = vand.u32 %v2653, 65535
    %v2655 = vshrl.u32 %v2653, 16
    %v2656 = vcvt.s32.f32 %v2654
    %v2657 = vcvt.s32.f32 %v2655
    %2658 = vadd.xlane.f32.xlu0 %v2656
    %v2659 = vpop.xlane.xlu0 %2658
    %2660 = vadd.xlane.f32.xlu0 %v2657
    %v2661 = vpop.xlane.xlu0 %2660
    %v2662 = vcvt.f32.s32 %v2659
    %v2663 = vcvt.f32.s32 %v2661
    %v2664 = vshll.u32 %v2663, 16
    %v2665 = vadd.s32 %v2664, %v2662
    %vm2666 = vcmp.ge.s32.totalorder %v2626, 5
    %vm2667 = vcmp.ge.s32.totalorder %v2639, 5
    %vm2668 = vcmp.ge.s32.totalorder %v2652, 5
    %vm2669 = vcmp.ge.s32.totalorder %v2665, 5
    %v2670 = vsel %vm2666, 0, 2147483648
    %v2671 = vsel %vm2667, 0, 2147483648
    %v2672 = vsel %vm2668, 0, 2147483648
    %v2673 = vsel %vm2669, 0, 2147483648
    %v2674 = vor.u32 %v2670, 1073741824
    %v2675 = vor.u32 %v2671, 1073741824
    %v2676 = vor.u32 %v2672, 1073741824
    %v2677 = vor.u32 %v2673, 1073741824
    %vm2678 = vcmp.ge.s32.totalorder %v2601, %v2674
    %vm2679 = vcmp.ge.s32.totalorder %v2602, %v2675
    %vm2680 = vcmp.ge.s32.totalorder %v2603, %v2676
    %vm2681 = vcmp.ge.s32.totalorder %v2604, %v2677
    %v2682 = vsel %vm2678, 1, 0
    %v2683 = vsel %vm2679, 1, 0
    %v2684 = vsel %vm2680, 1, 0
    %v2685 = vsel %vm2681, 1, 0
    %v2686 = vsel %vm2613, %v2682, 0
    %v2687 = vand.u32 %v2686, 65535
    %v2688 = vshrl.u32 %v2686, 16
    %v2689 = vcvt.s32.f32 %v2687
    %v2690 = vcvt.s32.f32 %v2688
    %2691 = vadd.xlane.f32.xlu0 %v2689
    %v2692 = vpop.xlane.xlu0 %2691
    %2693 = vadd.xlane.f32.xlu0 %v2690
    %v2694 = vpop.xlane.xlu0 %2693
    %v2695 = vcvt.f32.s32 %v2692
    %v2696 = vcvt.f32.s32 %v2694
    %v2697 = vshll.u32 %v2696, 16
    %v2698 = vadd.s32 %v2697, %v2695
    %v2699 = vsel %vm2613, %v2683, 0
    %v2700 = vand.u32 %v2699, 65535
    %v2701 = vshrl.u32 %v2699, 16
    %v2702 = vcvt.s32.f32 %v2700
    %v2703 = vcvt.s32.f32 %v2701
    %2704 = vadd.xlane.f32.xlu0 %v2702
    %v2705 = vpop.xlane.xlu0 %2704
    %2706 = vadd.xlane.f32.xlu0 %v2703
    %v2707 = vpop.xlane.xlu0 %2706
    %v2708 = vcvt.f32.s32 %v2705
    %v2709 = vcvt.f32.s32 %v2707
    %v2710 = vshll.u32 %v2709, 16
    %v2711 = vadd.s32 %v2710, %v2708
    %v2712 = vsel %vm2613, %v2684, 0
    %v2713 = vand.u32 %v2712, 65535
    %v2714 = vshrl.u32 %v2712, 16
    %v2715 = vcvt.s32.f32 %v2713
    %v2716 = vcvt.s32.f32 %v2714
    %2717 = vadd.xlane.f32.xlu0 %v2715
    %v2718 = vpop.xlane.xlu0 %2717
    %2719 = vadd.xlane.f32.xlu0 %v2716
    %v2720 = vpop.xlane.xlu0 %2719
    %v2721 = vcvt.f32.s32 %v2718
    %v2722 = vcvt.f32.s32 %v2720
    %v2723 = vshll.u32 %v2722, 16
    %v2724 = vadd.s32 %v2723, %v2721
    %v2725 = vsel %vm2613, %v2685, 0
    %v2726 = vand.u32 %v2725, 65535
    %v2727 = vshrl.u32 %v2725, 16
    %v2728 = vcvt.s32.f32 %v2726
    %v2729 = vcvt.s32.f32 %v2727
    %2730 = vadd.xlane.f32.xlu0 %v2728
    %v2731 = vpop.xlane.xlu0 %2730
    %2732 = vadd.xlane.f32.xlu0 %v2729
    %v2733 = vpop.xlane.xlu0 %2732
    %v2734 = vcvt.f32.s32 %v2731
    %v2735 = vcvt.f32.s32 %v2733
    %v2736 = vshll.u32 %v2735, 16
    %v2737 = vadd.s32 %v2736, %v2734
    %vm2738 = vcmp.ge.s32.totalorder %v2698, 5
    %vm2739 = vcmp.ge.s32.totalorder %v2711, 5
    %vm2740 = vcmp.ge.s32.totalorder %v2724, 5
    %vm2741 = vcmp.ge.s32.totalorder %v2737, 5
    %v2742 = vsel %vm2738, %v2674, %v2670
    %v2743 = vsel %vm2739, %v2675, %v2671
    %v2744 = vsel %vm2740, %v2676, %v2672
    %v2745 = vsel %vm2741, %v2677, %v2673
    %v2746 = vor.u32 %v2742, 536870912
    %v2747 = vor.u32 %v2743, 536870912
    %v2748 = vor.u32 %v2744, 536870912
    %v2749 = vor.u32 %v2745, 536870912
    %vm2750 = vcmp.ge.s32.totalorder %v2601, %v2746
    %vm2751 = vcmp.ge.s32.totalorder %v2602, %v2747
    %vm2752 = vcmp.ge.s32.totalorder %v2603, %v2748
    %vm2753 = vcmp.ge.s32.totalorder %v2604, %v2749
    %v2754 = vsel %vm2750, 1, 0
    %v2755 = vsel %vm2751, 1, 0
    %v2756 = vsel %vm2752, 1, 0
    %v2757 = vsel %vm2753, 1, 0
    %v2758 = vsel %vm2613, %v2754, 0
    %v2759 = vand.u32 %v2758, 65535
    %v2760 = vshrl.u32 %v2758, 16
    %v2761 = vcvt.s32.f32 %v2759
    %v2762 = vcvt.s32.f32 %v2760
    %2763 = vadd.xlane.f32.xlu0 %v2761
    %v2764 = vpop.xlane.xlu0 %2763
    %2765 = vadd.xlane.f32.xlu0 %v2762
    %v2766 = vpop.xlane.xlu0 %2765
    %v2767 = vcvt.f32.s32 %v2764
    %v2768 = vcvt.f32.s32 %v2766
    %v2769 = vshll.u32 %v2768, 16
    %v2770 = vadd.s32 %v2769, %v2767
    %v2771 = vsel %vm2613, %v2755, 0
    %v2772 = vand.u32 %v2771, 65535
    %v2773 = vshrl.u32 %v2771, 16
    %v2774 = vcvt.s32.f32 %v2772
    %v2775 = vcvt.s32.f32 %v2773
    %2776 = vadd.xlane.f32.xlu0 %v2774
    %v2777 = vpop.xlane.xlu0 %2776
    %2778 = vadd.xlane.f32.xlu0 %v2775
    %v2779 = vpop.xlane.xlu0 %2778
    %v2780 = vcvt.f32.s32 %v2777
    %v2781 = vcvt.f32.s32 %v2779
    %v2782 = vshll.u32 %v2781, 16
    %v2783 = vadd.s32 %v2782, %v2780
    %v2784 = vsel %vm2613, %v2756, 0
    %v2785 = vand.u32 %v2784, 65535
    %v2786 = vshrl.u32 %v2784, 16
    %v2787 = vcvt.s32.f32 %v2785
    %v2788 = vcvt.s32.f32 %v2786
    %2789 = vadd.xlane.f32.xlu0 %v2787
    %v2790 = vpop.xlane.xlu0 %2789
    %2791 = vadd.xlane.f32.xlu0 %v2788
    %v2792 = vpop.xlane.xlu0 %2791
    %v2793 = vcvt.f32.s32 %v2790
    %v2794 = vcvt.f32.s32 %v2792
    %v2795 = vshll.u32 %v2794, 16
    %v2796 = vadd.s32 %v2795, %v2793
    %v2797 = vsel %vm2613, %v2757, 0
    %v2798 = vand.u32 %v2797, 65535
    %v2799 = vshrl.u32 %v2797, 16
    %v2800 = vcvt.s32.f32 %v2798
    %v2801 = vcvt.s32.f32 %v2799
    %2802 = vadd.xlane.f32.xlu0 %v2800
    %v2803 = vpop.xlane.xlu0 %2802
    %2804 = vadd.xlane.f32.xlu0 %v2801
    %v2805 = vpop.xlane.xlu0 %2804
    %v2806 = vcvt.f32.s32 %v2803
    %v2807 = vcvt.f32.s32 %v2805
    %v2808 = vshll.u32 %v2807, 16
    %v2809 = vadd.s32 %v2808, %v2806
    %vm2810 = vcmp.ge.s32.totalorder %v2770, 5
    %vm2811 = vcmp.ge.s32.totalorder %v2783, 5
    %vm2812 = vcmp.ge.s32.totalorder %v2796, 5
    %vm2813 = vcmp.ge.s32.totalorder %v2809, 5
    %v2814 = vsel %vm2810, %v2746, %v2742
    %v2815 = vsel %vm2811, %v2747, %v2743
    %v2816 = vsel %vm2812, %v2748, %v2744
    %v2817 = vsel %vm2813, %v2749, %v2745
    %v2818 = vor.u32 %v2814, 268435456
    %v2819 = vor.u32 %v2815, 268435456
    %v2820 = vor.u32 %v2816, 268435456
    %v2821 = vor.u32 %v2817, 268435456
    %vm2822 = vcmp.ge.s32.totalorder %v2601, %v2818
    %vm2823 = vcmp.ge.s32.totalorder %v2602, %v2819
    %vm2824 = vcmp.ge.s32.totalorder %v2603, %v2820
    %vm2825 = vcmp.ge.s32.totalorder %v2604, %v2821
    %v2826 = vsel %vm2822, 1, 0
    %v2827 = vsel %vm2823, 1, 0
    %v2828 = vsel %vm2824, 1, 0
    %v2829 = vsel %vm2825, 1, 0
    %v2830 = vsel %vm2613, %v2826, 0
    %v2831 = vand.u32 %v2830, 65535
    %v2832 = vshrl.u32 %v2830, 16
    %v2833 = vcvt.s32.f32 %v2831
    %v2834 = vcvt.s32.f32 %v2832
    %2835 = vadd.xlane.f32.xlu0 %v2833
    %v2836 = vpop.xlane.xlu0 %2835
    %2837 = vadd.xlane.f32.xlu0 %v2834
    %v2838 = vpop.xlane.xlu0 %2837
    %v2839 = vcvt.f32.s32 %v2836
    %v2840 = vcvt.f32.s32 %v2838
    %v2841 = vshll.u32 %v2840, 16
    %v2842 = vadd.s32 %v2841, %v2839
    %v2843 = vsel %vm2613, %v2827, 0
    %v2844 = vand.u32 %v2843, 65535
    %v2845 = vshrl.u32 %v2843, 16
    %v2846 = vcvt.s32.f32 %v2844
    %v2847 = vcvt.s32.f32 %v2845
    %2848 = vadd.xlane.f32.xlu0 %v2846
    %v2849 = vpop.xlane.xlu0 %2848
    %2850 = vadd.xlane.f32.xlu0 %v2847
    %v2851 = vpop.xlane.xlu0 %2850
    %v2852 = vcvt.f32.s32 %v2849
    %v2853 = vcvt.f32.s32 %v2851
    %v2854 = vshll.u32 %v2853, 16
    %v2855 = vadd.s32 %v2854, %v2852
    %v2856 = vsel %vm2613, %v2828, 0
    %v2857 = vand.u32 %v2856, 65535
    %v2858 = vshrl.u32 %v2856, 16
    %v2859 = vcvt.s32.f32 %v2857
    %v2860 = vcvt.s32.f32 %v2858
    %2861 = vadd.xlane.f32.xlu0 %v2859
    %v2862 = vpop.xlane.xlu0 %2861
    %2863 = vadd.xlane.f32.xlu0 %v2860
    %v2864 = vpop.xlane.xlu0 %2863
    %v2865 = vcvt.f32.s32 %v2862
    %v2866 = vcvt.f32.s32 %v2864
    %v2867 = vshll.u32 %v2866, 16
    %v2868 = vadd.s32 %v2867, %v2865
    %v2869 = vsel %vm2613, %v2829, 0
    %v2870 = vand.u32 %v2869, 65535
    %v2871 = vshrl.u32 %v2869, 16
    %v2872 = vcvt.s32.f32 %v2870
    %v2873 = vcvt.s32.f32 %v2871
    %2874 = vadd.xlane.f32.xlu0 %v2872
    %v2875 = vpop.xlane.xlu0 %2874
    %2876 = vadd.xlane.f32.xlu0 %v2873
    %v2877 = vpop.xlane.xlu0 %2876
    %v2878 = vcvt.f32.s32 %v2875
    %v2879 = vcvt.f32.s32 %v2877
    %v2880 = vshll.u32 %v2879, 16
    %v2881 = vadd.s32 %v2880, %v2878
    %vm2882 = vcmp.ge.s32.totalorder %v2842, 5
    %vm2883 = vcmp.ge.s32.totalorder %v2855, 5
    %vm2884 = vcmp.ge.s32.totalorder %v2868, 5
    %vm2885 = vcmp.ge.s32.totalorder %v2881, 5
    %v2886 = vsel %vm2882, %v2818, %v2814
    %v2887 = vsel %vm2883, %v2819, %v2815
    %v2888 = vsel %vm2884, %v2820, %v2816
    %v2889 = vsel %vm2885, %v2821, %v2817
    %v2890 = vor.u32 %v2886, 134217728
    %v2891 = vor.u32 %v2887, 134217728
    %v2892 = vor.u32 %v2888, 134217728
    %v2893 = vor.u32 %v2889, 134217728
    %vm2894 = vcmp.ge.s32.totalorder %v2601, %v2890
    %vm2895 = vcmp.ge.s32.totalorder %v2602, %v2891
    %vm2896 = vcmp.ge.s32.totalorder %v2603, %v2892
    %vm2897 = vcmp.ge.s32.totalorder %v2604, %v2893
    %v2898 = vsel %vm2894, 1, 0
    %v2899 = vsel %vm2895, 1, 0
    %v2900 = vsel %vm2896, 1, 0
    %v2901 = vsel %vm2897, 1, 0
    %v2902 = vsel %vm2613, %v2898, 0
    %v2903 = vand.u32 %v2902, 65535
    %v2904 = vshrl.u32 %v2902, 16
    %v2905 = vcvt.s32.f32 %v2903
    %v2906 = vcvt.s32.f32 %v2904
    %2907 = vadd.xlane.f32.xlu0 %v2905
    %v2908 = vpop.xlane.xlu0 %2907
    %2909 = vadd.xlane.f32.xlu0 %v2906
    %v2910 = vpop.xlane.xlu0 %2909
    %v2911 = vcvt.f32.s32 %v2908
    %v2912 = vcvt.f32.s32 %v2910
    %v2913 = vshll.u32 %v2912, 16
    %v2914 = vadd.s32 %v2913, %v2911
    %v2915 = vsel %vm2613, %v2899, 0
    %v2916 = vand.u32 %v2915, 65535
    %v2917 = vshrl.u32 %v2915, 16
    %v2918 = vcvt.s32.f32 %v2916
    %v2919 = vcvt.s32.f32 %v2917
    %2920 = vadd.xlane.f32.xlu0 %v2918
    %v2921 = vpop.xlane.xlu0 %2920
    %2922 = vadd.xlane.f32.xlu0 %v2919
    %v2923 = vpop.xlane.xlu0 %2922
    %v2924 = vcvt.f32.s32 %v2921
    %v2925 = vcvt.f32.s32 %v2923
    %v2926 = vshll.u32 %v2925, 16
    %v2927 = vadd.s32 %v2926, %v2924
    %v2928 = vsel %vm2613, %v2900, 0
    %v2929 = vand.u32 %v2928, 65535
    %v2930 = vshrl.u32 %v2928, 16
    %v2931 = vcvt.s32.f32 %v2929
    %v2932 = vcvt.s32.f32 %v2930
    %2933 = vadd.xlane.f32.xlu0 %v2931
    %v2934 = vpop.xlane.xlu0 %2933
    %2935 = vadd.xlane.f32.xlu0 %v2932
    %v2936 = vpop.xlane.xlu0 %2935
    %v2937 = vcvt.f32.s32 %v2934
    %v2938 = vcvt.f32.s32 %v2936
    %v2939 = vshll.u32 %v2938, 16
    %v2940 = vadd.s32 %v2939, %v2937
    %v2941 = vsel %vm2613, %v2901, 0
    %v2942 = vand.u32 %v2941, 65535
    %v2943 = vshrl.u32 %v2941, 16
    %v2944 = vcvt.s32.f32 %v2942
    %v2945 = vcvt.s32.f32 %v2943
    %2946 = vadd.xlane.f32.xlu0 %v2944
    %v2947 = vpop.xlane.xlu0 %2946
    %2948 = vadd.xlane.f32.xlu0 %v2945
    %v2949 = vpop.xlane.xlu0 %2948
    %v2950 = vcvt.f32.s32 %v2947
    %v2951 = vcvt.f32.s32 %v2949
    %v2952 = vshll.u32 %v2951, 16
    %v2953 = vadd.s32 %v2952, %v2950
    %vm2954 = vcmp.ge.s32.totalorder %v2914, 5
    %vm2955 = vcmp.ge.s32.totalorder %v2927, 5
    %vm2956 = vcmp.ge.s32.totalorder %v2940, 5
    %vm2957 = vcmp.ge.s32.totalorder %v2953, 5
    %v2958 = vsel %vm2954, %v2890, %v2886
    %v2959 = vsel %vm2955, %v2891, %v2887
    %v2960 = vsel %vm2956, %v2892, %v2888
    %v2961 = vsel %vm2957, %v2893, %v2889
    %v2962 = vor.u32 %v2958, 67108864
    %v2963 = vor.u32 %v2959, 67108864
    %v2964 = vor.u32 %v2960, 67108864
    %v2965 = vor.u32 %v2961, 67108864
    %vm2966 = vcmp.ge.s32.totalorder %v2601, %v2962
    %vm2967 = vcmp.ge.s32.totalorder %v2602, %v2963
    %vm2968 = vcmp.ge.s32.totalorder %v2603, %v2964
    %vm2969 = vcmp.ge.s32.totalorder %v2604, %v2965
    %v2970 = vsel %vm2966, 1, 0
    %v2971 = vsel %vm2967, 1, 0
    %v2972 = vsel %vm2968, 1, 0
    %v2973 = vsel %vm2969, 1, 0
    %v2974 = vsel %vm2613, %v2970, 0
    %v2975 = vand.u32 %v2974, 65535
    %v2976 = vshrl.u32 %v2974, 16
    %v2977 = vcvt.s32.f32 %v2975
    %v2978 = vcvt.s32.f32 %v2976
    %2979 = vadd.xlane.f32.xlu0 %v2977
    %v2980 = vpop.xlane.xlu0 %2979
    %2981 = vadd.xlane.f32.xlu0 %v2978
    %v2982 = vpop.xlane.xlu0 %2981
    %v2983 = vcvt.f32.s32 %v2980
    %v2984 = vcvt.f32.s32 %v2982
    %v2985 = vshll.u32 %v2984, 16
    %v2986 = vadd.s32 %v2985, %v2983
    %v2987 = vsel %vm2613, %v2971, 0
    %v2988 = vand.u32 %v2987, 65535
    %v2989 = vshrl.u32 %v2987, 16
    %v2990 = vcvt.s32.f32 %v2988
    %v2991 = vcvt.s32.f32 %v2989
    %2992 = vadd.xlane.f32.xlu0 %v2990
    %v2993 = vpop.xlane.xlu0 %2992
    %2994 = vadd.xlane.f32.xlu0 %v2991
    %v2995 = vpop.xlane.xlu0 %2994
    %v2996 = vcvt.f32.s32 %v2993
    %v2997 = vcvt.f32.s32 %v2995
    %v2998 = vshll.u32 %v2997, 16
    %v2999 = vadd.s32 %v2998, %v2996
    %v3000 = vsel %vm2613, %v2972, 0
    %v3001 = vand.u32 %v3000, 65535
    %v3002 = vshrl.u32 %v3000, 16
    %v3003 = vcvt.s32.f32 %v3001
    %v3004 = vcvt.s32.f32 %v3002
    %3005 = vadd.xlane.f32.xlu0 %v3003
    %v3006 = vpop.xlane.xlu0 %3005
    %3007 = vadd.xlane.f32.xlu0 %v3004
    %v3008 = vpop.xlane.xlu0 %3007
    %v3009 = vcvt.f32.s32 %v3006
    %v3010 = vcvt.f32.s32 %v3008
    %v3011 = vshll.u32 %v3010, 16
    %v3012 = vadd.s32 %v3011, %v3009
    %v3013 = vsel %vm2613, %v2973, 0
    %v3014 = vand.u32 %v3013, 65535
    %v3015 = vshrl.u32 %v3013, 16
    %v3016 = vcvt.s32.f32 %v3014
    %v3017 = vcvt.s32.f32 %v3015
    %3018 = vadd.xlane.f32.xlu0 %v3016
    %v3019 = vpop.xlane.xlu0 %3018
    %3020 = vadd.xlane.f32.xlu0 %v3017
    %v3021 = vpop.xlane.xlu0 %3020
    %v3022 = vcvt.f32.s32 %v3019
    %v3023 = vcvt.f32.s32 %v3021
    %v3024 = vshll.u32 %v3023, 16
    %v3025 = vadd.s32 %v3024, %v3022
    %vm3026 = vcmp.ge.s32.totalorder %v2986, 5
    %vm3027 = vcmp.ge.s32.totalorder %v2999, 5
    %vm3028 = vcmp.ge.s32.totalorder %v3012, 5
    %vm3029 = vcmp.ge.s32.totalorder %v3025, 5
    %v3030 = vsel %vm3026, %v2962, %v2958
    %v3031 = vsel %vm3027, %v2963, %v2959
    %v3032 = vsel %vm3028, %v2964, %v2960
    %v3033 = vsel %vm3029, %v2965, %v2961
    %v3034 = vor.u32 %v3030, 33554432
    %v3035 = vor.u32 %v3031, 33554432
    %v3036 = vor.u32 %v3032, 33554432
    %v3037 = vor.u32 %v3033, 33554432
    %vm3038 = vcmp.ge.s32.totalorder %v2601, %v3034
    %vm3039 = vcmp.ge.s32.totalorder %v2602, %v3035
    %vm3040 = vcmp.ge.s32.totalorder %v2603, %v3036
    %vm3041 = vcmp.ge.s32.totalorder %v2604, %v3037
    %v3042 = vsel %vm3038, 1, 0
    %v3043 = vsel %vm3039, 1, 0
    %v3044 = vsel %vm3040, 1, 0
    %v3045 = vsel %vm3041, 1, 0
    %v3046 = vsel %vm2613, %v3042, 0
    %v3047 = vand.u32 %v3046, 65535
    %v3048 = vshrl.u32 %v3046, 16
    %v3049 = vcvt.s32.f32 %v3047
    %v3050 = vcvt.s32.f32 %v3048
    %3051 = vadd.xlane.f32.xlu0 %v3049
    %v3052 = vpop.xlane.xlu0 %3051
    %3053 = vadd.xlane.f32.xlu0 %v3050
    %v3054 = vpop.xlane.xlu0 %3053
    %v3055 = vcvt.f32.s32 %v3052
    %v3056 = vcvt.f32.s32 %v3054
    %v3057 = vshll.u32 %v3056, 16
    %v3058 = vadd.s32 %v3057, %v3055
    %v3059 = vsel %vm2613, %v3043, 0
    %v3060 = vand.u32 %v3059, 65535
    %v3061 = vshrl.u32 %v3059, 16
    %v3062 = vcvt.s32.f32 %v3060
    %v3063 = vcvt.s32.f32 %v3061
    %3064 = vadd.xlane.f32.xlu0 %v3062
    %v3065 = vpop.xlane.xlu0 %3064
    %3066 = vadd.xlane.f32.xlu0 %v3063
    %v3067 = vpop.xlane.xlu0 %3066
    %v3068 = vcvt.f32.s32 %v3065
    %v3069 = vcvt.f32.s32 %v3067
    %v3070 = vshll.u32 %v3069, 16
    %v3071 = vadd.s32 %v3070, %v3068
    %v3072 = vsel %vm2613, %v3044, 0
    %v3073 = vand.u32 %v3072, 65535
    %v3074 = vshrl.u32 %v3072, 16
    %v3075 = vcvt.s32.f32 %v3073
    %v3076 = vcvt.s32.f32 %v3074
    %3077 = vadd.xlane.f32.xlu0 %v3075
    %v3078 = vpop.xlane.xlu0 %3077
    %3079 = vadd.xlane.f32.xlu0 %v3076
    %v3080 = vpop.xlane.xlu0 %3079
    %v3081 = vcvt.f32.s32 %v3078
    %v3082 = vcvt.f32.s32 %v3080
    %v3083 = vshll.u32 %v3082, 16
    %v3084 = vadd.s32 %v3083, %v3081
    %v3085 = vsel %vm2613, %v3045, 0
    %v3086 = vand.u32 %v3085, 65535
    %v3087 = vshrl.u32 %v3085, 16
    %v3088 = vcvt.s32.f32 %v3086
    %v3089 = vcvt.s32.f32 %v3087
    %3090 = vadd.xlane.f32.xlu0 %v3088
    %v3091 = vpop.xlane.xlu0 %3090
    %3092 = vadd.xlane.f32.xlu0 %v3089
    %v3093 = vpop.xlane.xlu0 %3092
    %v3094 = vcvt.f32.s32 %v3091
    %v3095 = vcvt.f32.s32 %v3093
    %v3096 = vshll.u32 %v3095, 16
    %v3097 = vadd.s32 %v3096, %v3094
    %vm3098 = vcmp.ge.s32.totalorder %v3058, 5
    %vm3099 = vcmp.ge.s32.totalorder %v3071, 5
    %vm3100 = vcmp.ge.s32.totalorder %v3084, 5
    %vm3101 = vcmp.ge.s32.totalorder %v3097, 5
    %v3102 = vsel %vm3098, %v3034, %v3030
    %v3103 = vsel %vm3099, %v3035, %v3031
    %v3104 = vsel %vm3100, %v3036, %v3032
    %v3105 = vsel %vm3101, %v3037, %v3033
    %v3106 = vor.u32 %v3102, 16777216
    %v3107 = vor.u32 %v3103, 16777216
    %v3108 = vor.u32 %v3104, 16777216
    %v3109 = vor.u32 %v3105, 16777216
    %vm3110 = vcmp.ge.s32.totalorder %v2601, %v3106
    %vm3111 = vcmp.ge.s32.totalorder %v2602, %v3107
    %vm3112 = vcmp.ge.s32.totalorder %v2603, %v3108
    %vm3113 = vcmp.ge.s32.totalorder %v2604, %v3109
    %v3114 = vsel %vm3110, 1, 0
    %v3115 = vsel %vm3111, 1, 0
    %v3116 = vsel %vm3112, 1, 0
    %v3117 = vsel %vm3113, 1, 0
    %v3118 = vsel %vm2613, %v3114, 0
    %v3119 = vand.u32 %v3118, 65535
    %v3120 = vshrl.u32 %v3118, 16
    %v3121 = vcvt.s32.f32 %v3119
    %v3122 = vcvt.s32.f32 %v3120
    %3123 = vadd.xlane.f32.xlu0 %v3121
    %v3124 = vpop.xlane.xlu0 %3123
    %3125 = vadd.xlane.f32.xlu0 %v3122
    %v3126 = vpop.xlane.xlu0 %3125
    %v3127 = vcvt.f32.s32 %v3124
    %v3128 = vcvt.f32.s32 %v3126
    %v3129 = vshll.u32 %v3128, 16
    %v3130 = vadd.s32 %v3129, %v3127
    %v3131 = vsel %vm2613, %v3115, 0
    %v3132 = vand.u32 %v3131, 65535
    %v3133 = vshrl.u32 %v3131, 16
    %v3134 = vcvt.s32.f32 %v3132
    %v3135 = vcvt.s32.f32 %v3133
    %3136 = vadd.xlane.f32.xlu0 %v3134
    %v3137 = vpop.xlane.xlu0 %3136
    %3138 = vadd.xlane.f32.xlu0 %v3135
    %v3139 = vpop.xlane.xlu0 %3138
    %v3140 = vcvt.f32.s32 %v3137
    %v3141 = vcvt.f32.s32 %v3139
    %v3142 = vshll.u32 %v3141, 16
    %v3143 = vadd.s32 %v3142, %v3140
    %v3144 = vsel %vm2613, %v3116, 0
    %v3145 = vand.u32 %v3144, 65535
    %v3146 = vshrl.u32 %v3144, 16
    %v3147 = vcvt.s32.f32 %v3145
    %v3148 = vcvt.s32.f32 %v3146
    %3149 = vadd.xlane.f32.xlu0 %v3147
    %v3150 = vpop.xlane.xlu0 %3149
    %3151 = vadd.xlane.f32.xlu0 %v3148
    %v3152 = vpop.xlane.xlu0 %3151
    %v3153 = vcvt.f32.s32 %v3150
    %v3154 = vcvt.f32.s32 %v3152
    %v3155 = vshll.u32 %v3154, 16
    %v3156 = vadd.s32 %v3155, %v3153
    %v3157 = vsel %vm2613, %v3117, 0
    %v3158 = vand.u32 %v3157, 65535
    %v3159 = vshrl.u32 %v3157, 16
    %v3160 = vcvt.s32.f32 %v3158
    %v3161 = vcvt.s32.f32 %v3159
    %3162 = vadd.xlane.f32.xlu0 %v3160
    %v3163 = vpop.xlane.xlu0 %3162
    %3164 = vadd.xlane.f32.xlu0 %v3161
    %v3165 = vpop.xlane.xlu0 %3164
    %v3166 = vcvt.f32.s32 %v3163
    %v3167 = vcvt.f32.s32 %v3165
    %v3168 = vshll.u32 %v3167, 16
    %v3169 = vadd.s32 %v3168, %v3166
    %vm3170 = vcmp.ge.s32.totalorder %v3130, 5
    %vm3171 = vcmp.ge.s32.totalorder %v3143, 5
    %vm3172 = vcmp.ge.s32.totalorder %v3156, 5
    %vm3173 = vcmp.ge.s32.totalorder %v3169, 5
    %v3174 = vsel %vm3170, %v3106, %v3102
    %v3175 = vsel %vm3171, %v3107, %v3103
    %v3176 = vsel %vm3172, %v3108, %v3104
    %v3177 = vsel %vm3173, %v3109, %v3105
    %v3178 = vor.u32 %v3174, 8388608
    %v3179 = vor.u32 %v3175, 8388608
    %v3180 = vor.u32 %v3176, 8388608
    %v3181 = vor.u32 %v3177, 8388608
    %vm3182 = vcmp.ge.s32.totalorder %v2601, %v3178
    %vm3183 = vcmp.ge.s32.totalorder %v2602, %v3179
    %vm3184 = vcmp.ge.s32.totalorder %v2603, %v3180
    %vm3185 = vcmp.ge.s32.totalorder %v2604, %v3181
    %v3186 = vsel %vm3182, 1, 0
    %v3187 = vsel %vm3183, 1, 0
    %v3188 = vsel %vm3184, 1, 0
    %v3189 = vsel %vm3185, 1, 0
    %v3190 = vsel %vm2613, %v3186, 0
    %v3191 = vand.u32 %v3190, 65535
    %v3192 = vshrl.u32 %v3190, 16
    %v3193 = vcvt.s32.f32 %v3191
    %v3194 = vcvt.s32.f32 %v3192
    %3195 = vadd.xlane.f32.xlu0 %v3193
    %v3196 = vpop.xlane.xlu0 %3195
    %3197 = vadd.xlane.f32.xlu0 %v3194
    %v3198 = vpop.xlane.xlu0 %3197
    %v3199 = vcvt.f32.s32 %v3196
    %v3200 = vcvt.f32.s32 %v3198
    %v3201 = vshll.u32 %v3200, 16
    %v3202 = vadd.s32 %v3201, %v3199
    %v3203 = vsel %vm2613, %v3187, 0
    %v3204 = vand.u32 %v3203, 65535
    %v3205 = vshrl.u32 %v3203, 16
    %v3206 = vcvt.s32.f32 %v3204
    %v3207 = vcvt.s32.f32 %v3205
    %3208 = vadd.xlane.f32.xlu0 %v3206
    %v3209 = vpop.xlane.xlu0 %3208
    %3210 = vadd.xlane.f32.xlu0 %v3207
    %v3211 = vpop.xlane.xlu0 %3210
    %v3212 = vcvt.f32.s32 %v3209
    %v3213 = vcvt.f32.s32 %v3211
    %v3214 = vshll.u32 %v3213, 16
    %v3215 = vadd.s32 %v3214, %v3212
    %v3216 = vsel %vm2613, %v3188, 0
    %v3217 = vand.u32 %v3216, 65535
    %v3218 = vshrl.u32 %v3216, 16
    %v3219 = vcvt.s32.f32 %v3217
    %v3220 = vcvt.s32.f32 %v3218
    %3221 = vadd.xlane.f32.xlu0 %v3219
    %v3222 = vpop.xlane.xlu0 %3221
    %3223 = vadd.xlane.f32.xlu0 %v3220
    %v3224 = vpop.xlane.xlu0 %3223
    %v3225 = vcvt.f32.s32 %v3222
    %v3226 = vcvt.f32.s32 %v3224
    %v3227 = vshll.u32 %v3226, 16
    %v3228 = vadd.s32 %v3227, %v3225
    %v3229 = vsel %vm2613, %v3189, 0
    %v3230 = vand.u32 %v3229, 65535
    %v3231 = vshrl.u32 %v3229, 16
    %v3232 = vcvt.s32.f32 %v3230
    %v3233 = vcvt.s32.f32 %v3231
    %3234 = vadd.xlane.f32.xlu0 %v3232
    %v3235 = vpop.xlane.xlu0 %3234
    %3236 = vadd.xlane.f32.xlu0 %v3233
    %v3237 = vpop.xlane.xlu0 %3236
    %v3238 = vcvt.f32.s32 %v3235
    %v3239 = vcvt.f32.s32 %v3237
    %v3240 = vshll.u32 %v3239, 16
    %v3241 = vadd.s32 %v3240, %v3238
    %vm3242 = vcmp.ge.s32.totalorder %v3202, 5
    %vm3243 = vcmp.ge.s32.totalorder %v3215, 5
    %vm3244 = vcmp.ge.s32.totalorder %v3228, 5
    %vm3245 = vcmp.ge.s32.totalorder %v3241, 5
    %v3246 = vsel %vm3242, %v3178, %v3174
    %v3247 = vsel %vm3243, %v3179, %v3175
    %v3248 = vsel %vm3244, %v3180, %v3176
    %v3249 = vsel %vm3245, %v3181, %v3177
    %v3250 = vor.u32 %v3246, 4194304
    %v3251 = vor.u32 %v3247, 4194304
    %v3252 = vor.u32 %v3248, 4194304
    %v3253 = vor.u32 %v3249, 4194304
    %vm3254 = vcmp.ge.s32.totalorder %v2601, %v3250
    %vm3255 = vcmp.ge.s32.totalorder %v2602, %v3251
    %vm3256 = vcmp.ge.s32.totalorder %v2603, %v3252
    %vm3257 = vcmp.ge.s32.totalorder %v2604, %v3253
    %v3258 = vsel %vm3254, 1, 0
    %v3259 = vsel %vm3255, 1, 0
    %v3260 = vsel %vm3256, 1, 0
    %v3261 = vsel %vm3257, 1, 0
    %v3262 = vsel %vm2613, %v3258, 0
    %v3263 = vand.u32 %v3262, 65535
    %v3264 = vshrl.u32 %v3262, 16
    %v3265 = vcvt.s32.f32 %v3263
    %v3266 = vcvt.s32.f32 %v3264
    %3267 = vadd.xlane.f32.xlu0 %v3265
    %v3268 = vpop.xlane.xlu0 %3267
    %3269 = vadd.xlane.f32.xlu0 %v3266
    %v3270 = vpop.xlane.xlu0 %3269
    %v3271 = vcvt.f32.s32 %v3268
    %v3272 = vcvt.f32.s32 %v3270
    %v3273 = vshll.u32 %v3272, 16
    %v3274 = vadd.s32 %v3273, %v3271
    %v3275 = vsel %vm2613, %v3259, 0
    %v3276 = vand.u32 %v3275, 65535
    %v3277 = vshrl.u32 %v3275, 16
    %v3278 = vcvt.s32.f32 %v3276
    %v3279 = vcvt.s32.f32 %v3277
    %3280 = vadd.xlane.f32.xlu0 %v3278
    %v3281 = vpop.xlane.xlu0 %3280
    %3282 = vadd.xlane.f32.xlu0 %v3279
    %v3283 = vpop.xlane.xlu0 %3282
    %v3284 = vcvt.f32.s32 %v3281
    %v3285 = vcvt.f32.s32 %v3283
    %v3286 = vshll.u32 %v3285, 16
    %v3287 = vadd.s32 %v3286, %v3284
    %v3288 = vsel %vm2613, %v3260, 0
    %v3289 = vand.u32 %v3288, 65535
    %v3290 = vshrl.u32 %v3288, 16
    %v3291 = vcvt.s32.f32 %v3289
    %v3292 = vcvt.s32.f32 %v3290
    %3293 = vadd.xlane.f32.xlu0 %v3291
    %v3294 = vpop.xlane.xlu0 %3293
    %3295 = vadd.xlane.f32.xlu0 %v3292
    %v3296 = vpop.xlane.xlu0 %3295
    %v3297 = vcvt.f32.s32 %v3294
    %v3298 = vcvt.f32.s32 %v3296
    %v3299 = vshll.u32 %v3298, 16
    %v3300 = vadd.s32 %v3299, %v3297
    %v3301 = vsel %vm2613, %v3261, 0
    %v3302 = vand.u32 %v3301, 65535
    %v3303 = vshrl.u32 %v3301, 16
    %v3304 = vcvt.s32.f32 %v3302
    %v3305 = vcvt.s32.f32 %v3303
    %3306 = vadd.xlane.f32.xlu0 %v3304
    %v3307 = vpop.xlane.xlu0 %3306
    %3308 = vadd.xlane.f32.xlu0 %v3305
    %v3309 = vpop.xlane.xlu0 %3308
    %v3310 = vcvt.f32.s32 %v3307
    %v3311 = vcvt.f32.s32 %v3309
    %v3312 = vshll.u32 %v3311, 16
    %v3313 = vadd.s32 %v3312, %v3310
    %vm3314 = vcmp.ge.s32.totalorder %v3274, 5
    %vm3315 = vcmp.ge.s32.totalorder %v3287, 5
    %vm3316 = vcmp.ge.s32.totalorder %v3300, 5
    %vm3317 = vcmp.ge.s32.totalorder %v3313, 5
    %v3318 = vsel %vm3314, %v3250, %v3246
    %v3319 = vsel %vm3315, %v3251, %v3247
    %v3320 = vsel %vm3316, %v3252, %v3248
    %v3321 = vsel %vm3317, %v3253, %v3249
    %v3322 = vor.u32 %v3318, 2097152
    %v3323 = vor.u32 %v3319, 2097152
    %v3324 = vor.u32 %v3320, 2097152
    %v3325 = vor.u32 %v3321, 2097152
    %vm3326 = vcmp.ge.s32.totalorder %v2601, %v3322
    %vm3327 = vcmp.ge.s32.totalorder %v2602, %v3323
    %vm3328 = vcmp.ge.s32.totalorder %v2603, %v3324
    %vm3329 = vcmp.ge.s32.totalorder %v2604, %v3325
    %v3330 = vsel %vm3326, 1, 0
    %v3331 = vsel %vm3327, 1, 0
    %v3332 = vsel %vm3328, 1, 0
    %v3333 = vsel %vm3329, 1, 0
    %v3334 = vsel %vm2613, %v3330, 0
    %v3335 = vand.u32 %v3334, 65535
    %v3336 = vshrl.u32 %v3334, 16
    %v3337 = vcvt.s32.f32 %v3335
    %v3338 = vcvt.s32.f32 %v3336
    %3339 = vadd.xlane.f32.xlu0 %v3337
    %v3340 = vpop.xlane.xlu0 %3339
    %3341 = vadd.xlane.f32.xlu0 %v3338
    %v3342 = vpop.xlane.xlu0 %3341
    %v3343 = vcvt.f32.s32 %v3340
    %v3344 = vcvt.f32.s32 %v3342
    %v3345 = vshll.u32 %v3344, 16
    %v3346 = vadd.s32 %v3345, %v3343
    %v3347 = vsel %vm2613, %v3331, 0
    %v3348 = vand.u32 %v3347, 65535
    %v3349 = vshrl.u32 %v3347, 16
    %v3350 = vcvt.s32.f32 %v3348
    %v3351 = vcvt.s32.f32 %v3349
    %3352 = vadd.xlane.f32.xlu0 %v3350
    %v3353 = vpop.xlane.xlu0 %3352
    %3354 = vadd.xlane.f32.xlu0 %v3351
    %v3355 = vpop.xlane.xlu0 %3354
    %v3356 = vcvt.f32.s32 %v3353
    %v3357 = vcvt.f32.s32 %v3355
    %v3358 = vshll.u32 %v3357, 16
    %v3359 = vadd.s32 %v3358, %v3356
    %v3360 = vsel %vm2613, %v3332, 0
    %v3361 = vand.u32 %v3360, 65535
    %v3362 = vshrl.u32 %v3360, 16
    %v3363 = vcvt.s32.f32 %v3361
    %v3364 = vcvt.s32.f32 %v3362
    %3365 = vadd.xlane.f32.xlu0 %v3363
    %v3366 = vpop.xlane.xlu0 %3365
    %3367 = vadd.xlane.f32.xlu0 %v3364
    %v3368 = vpop.xlane.xlu0 %3367
    %v3369 = vcvt.f32.s32 %v3366
    %v3370 = vcvt.f32.s32 %v3368
    %v3371 = vshll.u32 %v3370, 16
    %v3372 = vadd.s32 %v3371, %v3369
    %v3373 = vsel %vm2613, %v3333, 0
    %v3374 = vand.u32 %v3373, 65535
    %v3375 = vshrl.u32 %v3373, 16
    %v3376 = vcvt.s32.f32 %v3374
    %v3377 = vcvt.s32.f32 %v3375
    %3378 = vadd.xlane.f32.xlu0 %v3376
    %v3379 = vpop.xlane.xlu0 %3378
    %3380 = vadd.xlane.f32.xlu0 %v3377
    %v3381 = vpop.xlane.xlu0 %3380
    %v3382 = vcvt.f32.s32 %v3379
    %v3383 = vcvt.f32.s32 %v3381
    %v3384 = vshll.u32 %v3383, 16
    %v3385 = vadd.s32 %v3384, %v3382
    %vm3386 = vcmp.ge.s32.totalorder %v3346, 5
    %vm3387 = vcmp.ge.s32.totalorder %v3359, 5
    %vm3388 = vcmp.ge.s32.totalorder %v3372, 5
    %vm3389 = vcmp.ge.s32.totalorder %v3385, 5
    %v3390 = vsel %vm3386, %v3322, %v3318
    %v3391 = vsel %vm3387, %v3323, %v3319
    %v3392 = vsel %vm3388, %v3324, %v3320
    %v3393 = vsel %vm3389, %v3325, %v3321
    %v3394 = vor.u32 %v3390, 1048576
    %v3395 = vor.u32 %v3391, 1048576
    %v3396 = vor.u32 %v3392, 1048576
    %v3397 = vor.u32 %v3393, 1048576
    %vm3398 = vcmp.ge.s32.totalorder %v2601, %v3394
    %vm3399 = vcmp.ge.s32.totalorder %v2602, %v3395
    %vm3400 = vcmp.ge.s32.totalorder %v2603, %v3396
    %vm3401 = vcmp.ge.s32.totalorder %v2604, %v3397
    %v3402 = vsel %vm3398, 1, 0
    %v3403 = vsel %vm3399, 1, 0
    %v3404 = vsel %vm3400, 1, 0
    %v3405 = vsel %vm3401, 1, 0
    %v3406 = vsel %vm2613, %v3402, 0
    %v3407 = vand.u32 %v3406, 65535
    %v3408 = vshrl.u32 %v3406, 16
    %v3409 = vcvt.s32.f32 %v3407
    %v3410 = vcvt.s32.f32 %v3408
    %3411 = vadd.xlane.f32.xlu0 %v3409
    %v3412 = vpop.xlane.xlu0 %3411
    %3413 = vadd.xlane.f32.xlu0 %v3410
    %v3414 = vpop.xlane.xlu0 %3413
    %v3415 = vcvt.f32.s32 %v3412
    %v3416 = vcvt.f32.s32 %v3414
    %v3417 = vshll.u32 %v3416, 16
    %v3418 = vadd.s32 %v3417, %v3415
    %v3419 = vsel %vm2613, %v3403, 0
    %v3420 = vand.u32 %v3419, 65535
    %v3421 = vshrl.u32 %v3419, 16
    %v3422 = vcvt.s32.f32 %v3420
    %v3423 = vcvt.s32.f32 %v3421
    %3424 = vadd.xlane.f32.xlu0 %v3422
    %v3425 = vpop.xlane.xlu0 %3424
    %3426 = vadd.xlane.f32.xlu0 %v3423
    %v3427 = vpop.xlane.xlu0 %3426
    %v3428 = vcvt.f32.s32 %v3425
    %v3429 = vcvt.f32.s32 %v3427
    %v3430 = vshll.u32 %v3429, 16
    %v3431 = vadd.s32 %v3430, %v3428
    %v3432 = vsel %vm2613, %v3404, 0
    %v3433 = vand.u32 %v3432, 65535
    %v3434 = vshrl.u32 %v3432, 16
    %v3435 = vcvt.s32.f32 %v3433
    %v3436 = vcvt.s32.f32 %v3434
    %3437 = vadd.xlane.f32.xlu0 %v3435
    %v3438 = vpop.xlane.xlu0 %3437
    %3439 = vadd.xlane.f32.xlu0 %v3436
    %v3440 = vpop.xlane.xlu0 %3439
    %v3441 = vcvt.f32.s32 %v3438
    %v3442 = vcvt.f32.s32 %v3440
    %v3443 = vshll.u32 %v3442, 16
    %v3444 = vadd.s32 %v3443, %v3441
    %v3445 = vsel %vm2613, %v3405, 0
    %v3446 = vand.u32 %v3445, 65535
    %v3447 = vshrl.u32 %v3445, 16
    %v3448 = vcvt.s32.f32 %v3446
    %v3449 = vcvt.s32.f32 %v3447
    %3450 = vadd.xlane.f32.xlu0 %v3448
    %v3451 = vpop.xlane.xlu0 %3450
    %3452 = vadd.xlane.f32.xlu0 %v3449
    %v3453 = vpop.xlane.xlu0 %3452
    %v3454 = vcvt.f32.s32 %v3451
    %v3455 = vcvt.f32.s32 %v3453
    %v3456 = vshll.u32 %v3455, 16
    %v3457 = vadd.s32 %v3456, %v3454
    %vm3458 = vcmp.ge.s32.totalorder %v3418, 5
    %vm3459 = vcmp.ge.s32.totalorder %v3431, 5
    %vm3460 = vcmp.ge.s32.totalorder %v3444, 5
    %vm3461 = vcmp.ge.s32.totalorder %v3457, 5
    %v3462 = vsel %vm3458, %v3394, %v3390
    %v3463 = vsel %vm3459, %v3395, %v3391
    %v3464 = vsel %vm3460, %v3396, %v3392
    %v3465 = vsel %vm3461, %v3397, %v3393
    %v3466 = vor.u32 %v3462, 524288
    %v3467 = vor.u32 %v3463, 524288
    %v3468 = vor.u32 %v3464, 524288
    %v3469 = vor.u32 %v3465, 524288
    %vm3470 = vcmp.ge.s32.totalorder %v2601, %v3466
    %vm3471 = vcmp.ge.s32.totalorder %v2602, %v3467
    %vm3472 = vcmp.ge.s32.totalorder %v2603, %v3468
    %vm3473 = vcmp.ge.s32.totalorder %v2604, %v3469
    %v3474 = vsel %vm3470, 1, 0
    %v3475 = vsel %vm3471, 1, 0
    %v3476 = vsel %vm3472, 1, 0
    %v3477 = vsel %vm3473, 1, 0
    %v3478 = vsel %vm2613, %v3474, 0
    %v3479 = vand.u32 %v3478, 65535
    %v3480 = vshrl.u32 %v3478, 16
    %v3481 = vcvt.s32.f32 %v3479
    %v3482 = vcvt.s32.f32 %v3480
    %3483 = vadd.xlane.f32.xlu0 %v3481
    %v3484 = vpop.xlane.xlu0 %3483
    %3485 = vadd.xlane.f32.xlu0 %v3482
    %v3486 = vpop.xlane.xlu0 %3485
    %v3487 = vcvt.f32.s32 %v3484
    %v3488 = vcvt.f32.s32 %v3486
    %v3489 = vshll.u32 %v3488, 16
    %v3490 = vadd.s32 %v3489, %v3487
    %v3491 = vsel %vm2613, %v3475, 0
    %v3492 = vand.u32 %v3491, 65535
    %v3493 = vshrl.u32 %v3491, 16
    %v3494 = vcvt.s32.f32 %v3492
    %v3495 = vcvt.s32.f32 %v3493
    %3496 = vadd.xlane.f32.xlu0 %v3494
    %v3497 = vpop.xlane.xlu0 %3496
    %3498 = vadd.xlane.f32.xlu0 %v3495
    %v3499 = vpop.xlane.xlu0 %3498
    %v3500 = vcvt.f32.s32 %v3497
    %v3501 = vcvt.f32.s32 %v3499
    %v3502 = vshll.u32 %v3501, 16
    %v3503 = vadd.s32 %v3502, %v3500
    %v3504 = vsel %vm2613, %v3476, 0
    %v3505 = vand.u32 %v3504, 65535
    %v3506 = vshrl.u32 %v3504, 16
    %v3507 = vcvt.s32.f32 %v3505
    %v3508 = vcvt.s32.f32 %v3506
    %3509 = vadd.xlane.f32.xlu0 %v3507
    %v3510 = vpop.xlane.xlu0 %3509
    %3511 = vadd.xlane.f32.xlu0 %v3508
    %v3512 = vpop.xlane.xlu0 %3511
    %v3513 = vcvt.f32.s32 %v3510
    %v3514 = vcvt.f32.s32 %v3512
    %v3515 = vshll.u32 %v3514, 16
    %v3516 = vadd.s32 %v3515, %v3513
    %v3517 = vsel %vm2613, %v3477, 0
    %v3518 = vand.u32 %v3517, 65535
    %v3519 = vshrl.u32 %v3517, 16
    %v3520 = vcvt.s32.f32 %v3518
    %v3521 = vcvt.s32.f32 %v3519
    %3522 = vadd.xlane.f32.xlu0 %v3520
    %v3523 = vpop.xlane.xlu0 %3522
    %3524 = vadd.xlane.f32.xlu0 %v3521
    %v3525 = vpop.xlane.xlu0 %3524
    %v3526 = vcvt.f32.s32 %v3523
    %v3527 = vcvt.f32.s32 %v3525
    %v3528 = vshll.u32 %v3527, 16
    %v3529 = vadd.s32 %v3528, %v3526
    %vm3530 = vcmp.ge.s32.totalorder %v3490, 5
    %vm3531 = vcmp.ge.s32.totalorder %v3503, 5
    %vm3532 = vcmp.ge.s32.totalorder %v3516, 5
    %vm3533 = vcmp.ge.s32.totalorder %v3529, 5
    %v3534 = vsel %vm3530, %v3466, %v3462
    %v3535 = vsel %vm3531, %v3467, %v3463
    %v3536 = vsel %vm3532, %v3468, %v3464
    %v3537 = vsel %vm3533, %v3469, %v3465
    %v3538 = vor.u32 %v3534, 262144
    %v3539 = vor.u32 %v3535, 262144
    %v3540 = vor.u32 %v3536, 262144
    %v3541 = vor.u32 %v3537, 262144
    %vm3542 = vcmp.ge.s32.totalorder %v2601, %v3538
    %vm3543 = vcmp.ge.s32.totalorder %v2602, %v3539
    %vm3544 = vcmp.ge.s32.totalorder %v2603, %v3540
    %vm3545 = vcmp.ge.s32.totalorder %v2604, %v3541
    %v3546 = vsel %vm3542, 1, 0
    %v3547 = vsel %vm3543, 1, 0
    %v3548 = vsel %vm3544, 1, 0
    %v3549 = vsel %vm3545, 1, 0
    %v3550 = vsel %vm2613, %v3546, 0
    %v3551 = vand.u32 %v3550, 65535
    %v3552 = vshrl.u32 %v3550, 16
    %v3553 = vcvt.s32.f32 %v3551
    %v3554 = vcvt.s32.f32 %v3552
    %3555 = vadd.xlane.f32.xlu0 %v3553
    %v3556 = vpop.xlane.xlu0 %3555
    %3557 = vadd.xlane.f32.xlu0 %v3554
    %v3558 = vpop.xlane.xlu0 %3557
    %v3559 = vcvt.f32.s32 %v3556
    %v3560 = vcvt.f32.s32 %v3558
    %v3561 = vshll.u32 %v3560, 16
    %v3562 = vadd.s32 %v3561, %v3559
    %v3563 = vsel %vm2613, %v3547, 0
    %v3564 = vand.u32 %v3563, 65535
    %v3565 = vshrl.u32 %v3563, 16
    %v3566 = vcvt.s32.f32 %v3564
    %v3567 = vcvt.s32.f32 %v3565
    %3568 = vadd.xlane.f32.xlu0 %v3566
    %v3569 = vpop.xlane.xlu0 %3568
    %3570 = vadd.xlane.f32.xlu0 %v3567
    %v3571 = vpop.xlane.xlu0 %3570
    %v3572 = vcvt.f32.s32 %v3569
    %v3573 = vcvt.f32.s32 %v3571
    %v3574 = vshll.u32 %v3573, 16
    %v3575 = vadd.s32 %v3574, %v3572
    %v3576 = vsel %vm2613, %v3548, 0
    %v3577 = vand.u32 %v3576, 65535
    %v3578 = vshrl.u32 %v3576, 16
    %v3579 = vcvt.s32.f32 %v3577
    %v3580 = vcvt.s32.f32 %v3578
    %3581 = vadd.xlane.f32.xlu0 %v3579
    %v3582 = vpop.xlane.xlu0 %3581
    %3583 = vadd.xlane.f32.xlu0 %v3580
    %v3584 = vpop.xlane.xlu0 %3583
    %v3585 = vcvt.f32.s32 %v3582
    %v3586 = vcvt.f32.s32 %v3584
    %v3587 = vshll.u32 %v3586, 16
    %v3588 = vadd.s32 %v3587, %v3585
    %v3589 = vsel %vm2613, %v3549, 0
    %v3590 = vand.u32 %v3589, 65535
    %v3591 = vshrl.u32 %v3589, 16
    %v3592 = vcvt.s32.f32 %v3590
    %v3593 = vcvt.s32.f32 %v3591
    %3594 = vadd.xlane.f32.xlu0 %v3592
    %v3595 = vpop.xlane.xlu0 %3594
    %3596 = vadd.xlane.f32.xlu0 %v3593
    %v3597 = vpop.xlane.xlu0 %3596
    %v3598 = vcvt.f32.s32 %v3595
    %v3599 = vcvt.f32.s32 %v3597
    %v3600 = vshll.u32 %v3599, 16
    %v3601 = vadd.s32 %v3600, %v3598
    %vm3602 = vcmp.ge.s32.totalorder %v3562, 5
    %vm3603 = vcmp.ge.s32.totalorder %v3575, 5
    %vm3604 = vcmp.ge.s32.totalorder %v3588, 5
    %vm3605 = vcmp.ge.s32.totalorder %v3601, 5
    %v3606 = vsel %vm3602, %v3538, %v3534
    %v3607 = vsel %vm3603, %v3539, %v3535
    %v3608 = vsel %vm3604, %v3540, %v3536
    %v3609 = vsel %vm3605, %v3541, %v3537
    %v3610 = vor.u32 %v3606, 131072
    %v3611 = vor.u32 %v3607, 131072
    %v3612 = vor.u32 %v3608, 131072
    %v3613 = vor.u32 %v3609, 131072
    %vm3614 = vcmp.ge.s32.totalorder %v2601, %v3610
    %vm3615 = vcmp.ge.s32.totalorder %v2602, %v3611
    %vm3616 = vcmp.ge.s32.totalorder %v2603, %v3612
    %vm3617 = vcmp.ge.s32.totalorder %v2604, %v3613
    %v3618 = vsel %vm3614, 1, 0
    %v3619 = vsel %vm3615, 1, 0
    %v3620 = vsel %vm3616, 1, 0
    %v3621 = vsel %vm3617, 1, 0
    %v3622 = vsel %vm2613, %v3618, 0
    %v3623 = vand.u32 %v3622, 65535
    %v3624 = vshrl.u32 %v3622, 16
    %v3625 = vcvt.s32.f32 %v3623
    %v3626 = vcvt.s32.f32 %v3624
    %3627 = vadd.xlane.f32.xlu0 %v3625
    %v3628 = vpop.xlane.xlu0 %3627
    %3629 = vadd.xlane.f32.xlu0 %v3626
    %v3630 = vpop.xlane.xlu0 %3629
    %v3631 = vcvt.f32.s32 %v3628
    %v3632 = vcvt.f32.s32 %v3630
    %v3633 = vshll.u32 %v3632, 16
    %v3634 = vadd.s32 %v3633, %v3631
    %v3635 = vsel %vm2613, %v3619, 0
    %v3636 = vand.u32 %v3635, 65535
    %v3637 = vshrl.u32 %v3635, 16
    %v3638 = vcvt.s32.f32 %v3636
    %v3639 = vcvt.s32.f32 %v3637
    %3640 = vadd.xlane.f32.xlu0 %v3638
    %v3641 = vpop.xlane.xlu0 %3640
    %3642 = vadd.xlane.f32.xlu0 %v3639
    %v3643 = vpop.xlane.xlu0 %3642
    %v3644 = vcvt.f32.s32 %v3641
    %v3645 = vcvt.f32.s32 %v3643
    %v3646 = vshll.u32 %v3645, 16
    %v3647 = vadd.s32 %v3646, %v3644
    %v3648 = vsel %vm2613, %v3620, 0
    %v3649 = vand.u32 %v3648, 65535
    %v3650 = vshrl.u32 %v3648, 16
    %v3651 = vcvt.s32.f32 %v3649
    %v3652 = vcvt.s32.f32 %v3650
    %3653 = vadd.xlane.f32.xlu0 %v3651
    %v3654 = vpop.xlane.xlu0 %3653
    %3655 = vadd.xlane.f32.xlu0 %v3652
    %v3656 = vpop.xlane.xlu0 %3655
    %v3657 = vcvt.f32.s32 %v3654
    %v3658 = vcvt.f32.s32 %v3656
    %v3659 = vshll.u32 %v3658, 16
    %v3660 = vadd.s32 %v3659, %v3657
    %v3661 = vsel %vm2613, %v3621, 0
    %v3662 = vand.u32 %v3661, 65535
    %v3663 = vshrl.u32 %v3661, 16
    %v3664 = vcvt.s32.f32 %v3662
    %v3665 = vcvt.s32.f32 %v3663
    %3666 = vadd.xlane.f32.xlu0 %v3664
    %v3667 = vpop.xlane.xlu0 %3666
    %3668 = vadd.xlane.f32.xlu0 %v3665
    %v3669 = vpop.xlane.xlu0 %3668
    %v3670 = vcvt.f32.s32 %v3667
    %v3671 = vcvt.f32.s32 %v3669
    %v3672 = vshll.u32 %v3671, 16
    %v3673 = vadd.s32 %v3672, %v3670
    %vm3674 = vcmp.ge.s32.totalorder %v3634, 5
    %vm3675 = vcmp.ge.s32.totalorder %v3647, 5
    %vm3676 = vcmp.ge.s32.totalorder %v3660, 5
    %vm3677 = vcmp.ge.s32.totalorder %v3673, 5
    %v3678 = vsel %vm3674, %v3610, %v3606
    %v3679 = vsel %vm3675, %v3611, %v3607
    %v3680 = vsel %vm3676, %v3612, %v3608
    %v3681 = vsel %vm3677, %v3613, %v3609
    %v3682 = vor.u32 %v3678, 65536
    %v3683 = vor.u32 %v3679, 65536
    %v3684 = vor.u32 %v3680, 65536
    %v3685 = vor.u32 %v3681, 65536
    %vm3686 = vcmp.ge.s32.totalorder %v2601, %v3682
    %vm3687 = vcmp.ge.s32.totalorder %v2602, %v3683
    %vm3688 = vcmp.ge.s32.totalorder %v2603, %v3684
    %vm3689 = vcmp.ge.s32.totalorder %v2604, %v3685
    %v3690 = vsel %vm3686, 1, 0
    %v3691 = vsel %vm3687, 1, 0
    %v3692 = vsel %vm3688, 1, 0
    %v3693 = vsel %vm3689, 1, 0
    %v3694 = vsel %vm2613, %v3690, 0
    %v3695 = vand.u32 %v3694, 65535
    %v3696 = vshrl.u32 %v3694, 16
    %v3697 = vcvt.s32.f32 %v3695
    %v3698 = vcvt.s32.f32 %v3696
    %3699 = vadd.xlane.f32.xlu0 %v3697
    %v3700 = vpop.xlane.xlu0 %3699
    %3701 = vadd.xlane.f32.xlu0 %v3698
    %v3702 = vpop.xlane.xlu0 %3701
    %v3703 = vcvt.f32.s32 %v3700
    %v3704 = vcvt.f32.s32 %v3702
    %v3705 = vshll.u32 %v3704, 16
    %v3706 = vadd.s32 %v3705, %v3703
    %v3707 = vsel %vm2613, %v3691, 0
    %v3708 = vand.u32 %v3707, 65535
    %v3709 = vshrl.u32 %v3707, 16
    %v3710 = vcvt.s32.f32 %v3708
    %v3711 = vcvt.s32.f32 %v3709
    %3712 = vadd.xlane.f32.xlu0 %v3710
    %v3713 = vpop.xlane.xlu0 %3712
    %3714 = vadd.xlane.f32.xlu0 %v3711
    %v3715 = vpop.xlane.xlu0 %3714
    %v3716 = vcvt.f32.s32 %v3713
    %v3717 = vcvt.f32.s32 %v3715
    %v3718 = vshll.u32 %v3717, 16
    %v3719 = vadd.s32 %v3718, %v3716
    %v3720 = vsel %vm2613, %v3692, 0
    %v3721 = vand.u32 %v3720, 65535
    %v3722 = vshrl.u32 %v3720, 16
    %v3723 = vcvt.s32.f32 %v3721
    %v3724 = vcvt.s32.f32 %v3722
    %3725 = vadd.xlane.f32.xlu0 %v3723
    %v3726 = vpop.xlane.xlu0 %3725
    %3727 = vadd.xlane.f32.xlu0 %v3724
    %v3728 = vpop.xlane.xlu0 %3727
    %v3729 = vcvt.f32.s32 %v3726
    %v3730 = vcvt.f32.s32 %v3728
    %v3731 = vshll.u32 %v3730, 16
    %v3732 = vadd.s32 %v3731, %v3729
    %v3733 = vsel %vm2613, %v3693, 0
    %v3734 = vand.u32 %v3733, 65535
    %v3735 = vshrl.u32 %v3733, 16
    %v3736 = vcvt.s32.f32 %v3734
    %v3737 = vcvt.s32.f32 %v3735
    %3738 = vadd.xlane.f32.xlu0 %v3736
    %v3739 = vpop.xlane.xlu0 %3738
    %3740 = vadd.xlane.f32.xlu0 %v3737
    %v3741 = vpop.xlane.xlu0 %3740
    %v3742 = vcvt.f32.s32 %v3739
    %v3743 = vcvt.f32.s32 %v3741
    %v3744 = vshll.u32 %v3743, 16
    %v3745 = vadd.s32 %v3744, %v3742
    %vm3746 = vcmp.ge.s32.totalorder %v3706, 5
    %vm3747 = vcmp.ge.s32.totalorder %v3719, 5
    %vm3748 = vcmp.ge.s32.totalorder %v3732, 5
    %vm3749 = vcmp.ge.s32.totalorder %v3745, 5
    %v3750 = vsel %vm3746, %v3682, %v3678
    %v3751 = vsel %vm3747, %v3683, %v3679
    %v3752 = vsel %vm3748, %v3684, %v3680
    %v3753 = vsel %vm3749, %v3685, %v3681
    %v3754 = vor.u32 %v3750, 32768
    %v3755 = vor.u32 %v3751, 32768
    %v3756 = vor.u32 %v3752, 32768
    %v3757 = vor.u32 %v3753, 32768
    %vm3758 = vcmp.ge.s32.totalorder %v2601, %v3754
    %vm3759 = vcmp.ge.s32.totalorder %v2602, %v3755
    %vm3760 = vcmp.ge.s32.totalorder %v2603, %v3756
    %vm3761 = vcmp.ge.s32.totalorder %v2604, %v3757
    %v3762 = vsel %vm3758, 1, 0
    %v3763 = vsel %vm3759, 1, 0
    %v3764 = vsel %vm3760, 1, 0
    %v3765 = vsel %vm3761, 1, 0
    %v3766 = vsel %vm2613, %v3762, 0
    %v3767 = vand.u32 %v3766, 65535
    %v3768 = vshrl.u32 %v3766, 16
    %v3769 = vcvt.s32.f32 %v3767
    %v3770 = vcvt.s32.f32 %v3768
    %3771 = vadd.xlane.f32.xlu0 %v3769
    %v3772 = vpop.xlane.xlu0 %3771
    %3773 = vadd.xlane.f32.xlu0 %v3770
    %v3774 = vpop.xlane.xlu0 %3773
    %v3775 = vcvt.f32.s32 %v3772
    %v3776 = vcvt.f32.s32 %v3774
    %v3777 = vshll.u32 %v3776, 16
    %v3778 = vadd.s32 %v3777, %v3775
    %v3779 = vsel %vm2613, %v3763, 0
    %v3780 = vand.u32 %v3779, 65535
    %v3781 = vshrl.u32 %v3779, 16
    %v3782 = vcvt.s32.f32 %v3780
    %v3783 = vcvt.s32.f32 %v3781
    %3784 = vadd.xlane.f32.xlu0 %v3782
    %v3785 = vpop.xlane.xlu0 %3784
    %3786 = vadd.xlane.f32.xlu0 %v3783
    %v3787 = vpop.xlane.xlu0 %3786
    %v3788 = vcvt.f32.s32 %v3785
    %v3789 = vcvt.f32.s32 %v3787
    %v3790 = vshll.u32 %v3789, 16
    %v3791 = vadd.s32 %v3790, %v3788
    %v3792 = vsel %vm2613, %v3764, 0
    %v3793 = vand.u32 %v3792, 65535
    %v3794 = vshrl.u32 %v3792, 16
    %v3795 = vcvt.s32.f32 %v3793
    %v3796 = vcvt.s32.f32 %v3794
    %3797 = vadd.xlane.f32.xlu0 %v3795
    %v3798 = vpop.xlane.xlu0 %3797
    %3799 = vadd.xlane.f32.xlu0 %v3796
    %v3800 = vpop.xlane.xlu0 %3799
    %v3801 = vcvt.f32.s32 %v3798
    %v3802 = vcvt.f32.s32 %v3800
    %v3803 = vshll.u32 %v3802, 16
    %v3804 = vadd.s32 %v3803, %v3801
    %v3805 = vsel %vm2613, %v3765, 0
    %v3806 = vand.u32 %v3805, 65535
    %v3807 = vshrl.u32 %v3805, 16
    %v3808 = vcvt.s32.f32 %v3806
    %v3809 = vcvt.s32.f32 %v3807
    %3810 = vadd.xlane.f32.xlu0 %v3808
    %v3811 = vpop.xlane.xlu0 %3810
    %3812 = vadd.xlane.f32.xlu0 %v3809
    %v3813 = vpop.xlane.xlu0 %3812
    %v3814 = vcvt.f32.s32 %v3811
    %v3815 = vcvt.f32.s32 %v3813
    %v3816 = vshll.u32 %v3815, 16
    %v3817 = vadd.s32 %v3816, %v3814
    %vm3818 = vcmp.ge.s32.totalorder %v3778, 5
    %vm3819 = vcmp.ge.s32.totalorder %v3791, 5
    %vm3820 = vcmp.ge.s32.totalorder %v3804, 5
    %vm3821 = vcmp.ge.s32.totalorder %v3817, 5
    %v3822 = vsel %vm3818, %v3754, %v3750
    %v3823 = vsel %vm3819, %v3755, %v3751
    %v3824 = vsel %vm3820, %v3756, %v3752
    %v3825 = vsel %vm3821, %v3757, %v3753
    %v3826 = vor.u32 %v3822, 16384
    %v3827 = vor.u32 %v3823, 16384
    %v3828 = vor.u32 %v3824, 16384
    %v3829 = vor.u32 %v3825, 16384
    %vm3830 = vcmp.ge.s32.totalorder %v2601, %v3826
    %vm3831 = vcmp.ge.s32.totalorder %v2602, %v3827
    %vm3832 = vcmp.ge.s32.totalorder %v2603, %v3828
    %vm3833 = vcmp.ge.s32.totalorder %v2604, %v3829
    %v3834 = vsel %vm3830, 1, 0
    %v3835 = vsel %vm3831, 1, 0
    %v3836 = vsel %vm3832, 1, 0
    %v3837 = vsel %vm3833, 1, 0
    %v3838 = vsel %vm2613, %v3834, 0
    %v3839 = vand.u32 %v3838, 65535
    %v3840 = vshrl.u32 %v3838, 16
    %v3841 = vcvt.s32.f32 %v3839
    %v3842 = vcvt.s32.f32 %v3840
    %3843 = vadd.xlane.f32.xlu0 %v3841
    %v3844 = vpop.xlane.xlu0 %3843
    %3845 = vadd.xlane.f32.xlu0 %v3842
    %v3846 = vpop.xlane.xlu0 %3845
    %v3847 = vcvt.f32.s32 %v3844
    %v3848 = vcvt.f32.s32 %v3846
    %v3849 = vshll.u32 %v3848, 16
    %v3850 = vadd.s32 %v3849, %v3847
    %v3851 = vsel %vm2613, %v3835, 0
    %v3852 = vand.u32 %v3851, 65535
    %v3853 = vshrl.u32 %v3851, 16
    %v3854 = vcvt.s32.f32 %v3852
    %v3855 = vcvt.s32.f32 %v3853
    %3856 = vadd.xlane.f32.xlu0 %v3854
    %v3857 = vpop.xlane.xlu0 %3856
    %3858 = vadd.xlane.f32.xlu0 %v3855
    %v3859 = vpop.xlane.xlu0 %3858
    %v3860 = vcvt.f32.s32 %v3857
    %v3861 = vcvt.f32.s32 %v3859
    %v3862 = vshll.u32 %v3861, 16
    %v3863 = vadd.s32 %v3862, %v3860
    %v3864 = vsel %vm2613, %v3836, 0
    %v3865 = vand.u32 %v3864, 65535
    %v3866 = vshrl.u32 %v3864, 16
    %v3867 = vcvt.s32.f32 %v3865
    %v3868 = vcvt.s32.f32 %v3866
    %3869 = vadd.xlane.f32.xlu0 %v3867
    %v3870 = vpop.xlane.xlu0 %3869
    %3871 = vadd.xlane.f32.xlu0 %v3868
    %v3872 = vpop.xlane.xlu0 %3871
    %v3873 = vcvt.f32.s32 %v3870
    %v3874 = vcvt.f32.s32 %v3872
    %v3875 = vshll.u32 %v3874, 16
    %v3876 = vadd.s32 %v3875, %v3873
    %v3877 = vsel %vm2613, %v3837, 0
    %v3878 = vand.u32 %v3877, 65535
    %v3879 = vshrl.u32 %v3877, 16
    %v3880 = vcvt.s32.f32 %v3878
    %v3881 = vcvt.s32.f32 %v3879
    %3882 = vadd.xlane.f32.xlu0 %v3880
    %v3883 = vpop.xlane.xlu0 %3882
    %3884 = vadd.xlane.f32.xlu0 %v3881
    %v3885 = vpop.xlane.xlu0 %3884
    %v3886 = vcvt.f32.s32 %v3883
    %v3887 = vcvt.f32.s32 %v3885
    %v3888 = vshll.u32 %v3887, 16
    %v3889 = vadd.s32 %v3888, %v3886
    %vm3890 = vcmp.ge.s32.totalorder %v3850, 5
    %vm3891 = vcmp.ge.s32.totalorder %v3863, 5
    %vm3892 = vcmp.ge.s32.totalorder %v3876, 5
    %vm3893 = vcmp.ge.s32.totalorder %v3889, 5
    %v3894 = vsel %vm3890, %v3826, %v3822
    %v3895 = vsel %vm3891, %v3827, %v3823
    %v3896 = vsel %vm3892, %v3828, %v3824
    %v3897 = vsel %vm3893, %v3829, %v3825
    %v3898 = vor.u32 %v3894, 8192
    %v3899 = vor.u32 %v3895, 8192
    %v3900 = vor.u32 %v3896, 8192
    %v3901 = vor.u32 %v3897, 8192
    %vm3902 = vcmp.ge.s32.totalorder %v2601, %v3898
    %vm3903 = vcmp.ge.s32.totalorder %v2602, %v3899
    %vm3904 = vcmp.ge.s32.totalorder %v2603, %v3900
    %vm3905 = vcmp.ge.s32.totalorder %v2604, %v3901
    %v3906 = vsel %vm3902, 1, 0
    %v3907 = vsel %vm3903, 1, 0
    %v3908 = vsel %vm3904, 1, 0
    %v3909 = vsel %vm3905, 1, 0
    %v3910 = vsel %vm2613, %v3906, 0
    %v3911 = vand.u32 %v3910, 65535
    %v3912 = vshrl.u32 %v3910, 16
    %v3913 = vcvt.s32.f32 %v3911
    %v3914 = vcvt.s32.f32 %v3912
    %3915 = vadd.xlane.f32.xlu0 %v3913
    %v3916 = vpop.xlane.xlu0 %3915
    %3917 = vadd.xlane.f32.xlu0 %v3914
    %v3918 = vpop.xlane.xlu0 %3917
    %v3919 = vcvt.f32.s32 %v3916
    %v3920 = vcvt.f32.s32 %v3918
    %v3921 = vshll.u32 %v3920, 16
    %v3922 = vadd.s32 %v3921, %v3919
    %v3923 = vsel %vm2613, %v3907, 0
    %v3924 = vand.u32 %v3923, 65535
    %v3925 = vshrl.u32 %v3923, 16
    %v3926 = vcvt.s32.f32 %v3924
    %v3927 = vcvt.s32.f32 %v3925
    %3928 = vadd.xlane.f32.xlu0 %v3926
    %v3929 = vpop.xlane.xlu0 %3928
    %3930 = vadd.xlane.f32.xlu0 %v3927
    %v3931 = vpop.xlane.xlu0 %3930
    %v3932 = vcvt.f32.s32 %v3929
    %v3933 = vcvt.f32.s32 %v3931
    %v3934 = vshll.u32 %v3933, 16
    %v3935 = vadd.s32 %v3934, %v3932
    %v3936 = vsel %vm2613, %v3908, 0
    %v3937 = vand.u32 %v3936, 65535
    %v3938 = vshrl.u32 %v3936, 16
    %v3939 = vcvt.s32.f32 %v3937
    %v3940 = vcvt.s32.f32 %v3938
    %3941 = vadd.xlane.f32.xlu0 %v3939
    %v3942 = vpop.xlane.xlu0 %3941
    %3943 = vadd.xlane.f32.xlu0 %v3940
    %v3944 = vpop.xlane.xlu0 %3943
    %v3945 = vcvt.f32.s32 %v3942
    %v3946 = vcvt.f32.s32 %v3944
    %v3947 = vshll.u32 %v3946, 16
    %v3948 = vadd.s32 %v3947, %v3945
    %v3949 = vsel %vm2613, %v3909, 0
    %v3950 = vand.u32 %v3949, 65535
    %v3951 = vshrl.u32 %v3949, 16
    %v3952 = vcvt.s32.f32 %v3950
    %v3953 = vcvt.s32.f32 %v3951
    %3954 = vadd.xlane.f32.xlu0 %v3952
    %v3955 = vpop.xlane.xlu0 %3954
    %3956 = vadd.xlane.f32.xlu0 %v3953
    %v3957 = vpop.xlane.xlu0 %3956
    %v3958 = vcvt.f32.s32 %v3955
    %v3959 = vcvt.f32.s32 %v3957
    %v3960 = vshll.u32 %v3959, 16
    %v3961 = vadd.s32 %v3960, %v3958
    %vm3962 = vcmp.ge.s32.totalorder %v3922, 5
    %vm3963 = vcmp.ge.s32.totalorder %v3935, 5
    %vm3964 = vcmp.ge.s32.totalorder %v3948, 5
    %vm3965 = vcmp.ge.s32.totalorder %v3961, 5
    %v3966 = vsel %vm3962, %v3898, %v3894
    %v3967 = vsel %vm3963, %v3899, %v3895
    %v3968 = vsel %vm3964, %v3900, %v3896
    %v3969 = vsel %vm3965, %v3901, %v3897
    %v3970 = vor.u32 %v3966, 4096
    %v3971 = vor.u32 %v3967, 4096
    %v3972 = vor.u32 %v3968, 4096
    %v3973 = vor.u32 %v3969, 4096
    %vm3974 = vcmp.ge.s32.totalorder %v2601, %v3970
    %vm3975 = vcmp.ge.s32.totalorder %v2602, %v3971
    %vm3976 = vcmp.ge.s32.totalorder %v2603, %v3972
    %vm3977 = vcmp.ge.s32.totalorder %v2604, %v3973
    %v3978 = vsel %vm3974, 1, 0
    %v3979 = vsel %vm3975, 1, 0
    %v3980 = vsel %vm3976, 1, 0
    %v3981 = vsel %vm3977, 1, 0
    %v3982 = vsel %vm2613, %v3978, 0
    %v3983 = vand.u32 %v3982, 65535
    %v3984 = vshrl.u32 %v3982, 16
    %v3985 = vcvt.s32.f32 %v3983
    %v3986 = vcvt.s32.f32 %v3984
    %3987 = vadd.xlane.f32.xlu0 %v3985
    %v3988 = vpop.xlane.xlu0 %3987
    %3989 = vadd.xlane.f32.xlu0 %v3986
    %v3990 = vpop.xlane.xlu0 %3989
    %v3991 = vcvt.f32.s32 %v3988
    %v3992 = vcvt.f32.s32 %v3990
    %v3993 = vshll.u32 %v3992, 16
    %v3994 = vadd.s32 %v3993, %v3991
    %v3995 = vsel %vm2613, %v3979, 0
    %v3996 = vand.u32 %v3995, 65535
    %v3997 = vshrl.u32 %v3995, 16
    %v3998 = vcvt.s32.f32 %v3996
    %v3999 = vcvt.s32.f32 %v3997
    %4000 = vadd.xlane.f32.xlu0 %v3998
    %v4001 = vpop.xlane.xlu0 %4000
    %4002 = vadd.xlane.f32.xlu0 %v3999
    %v4003 = vpop.xlane.xlu0 %4002
    %v4004 = vcvt.f32.s32 %v4001
    %v4005 = vcvt.f32.s32 %v4003
    %v4006 = vshll.u32 %v4005, 16
    %v4007 = vadd.s32 %v4006, %v4004
    %v4008 = vsel %vm2613, %v3980, 0
    %v4009 = vand.u32 %v4008, 65535
    %v4010 = vshrl.u32 %v4008, 16
    %v4011 = vcvt.s32.f32 %v4009
    %v4012 = vcvt.s32.f32 %v4010
    %4013 = vadd.xlane.f32.xlu0 %v4011
    %v4014 = vpop.xlane.xlu0 %4013
    %4015 = vadd.xlane.f32.xlu0 %v4012
    %v4016 = vpop.xlane.xlu0 %4015
    %v4017 = vcvt.f32.s32 %v4014
    %v4018 = vcvt.f32.s32 %v4016
    %v4019 = vshll.u32 %v4018, 16
    %v4020 = vadd.s32 %v4019, %v4017
    %v4021 = vsel %vm2613, %v3981, 0
    %v4022 = vand.u32 %v4021, 65535
    %v4023 = vshrl.u32 %v4021, 16
    %v4024 = vcvt.s32.f32 %v4022
    %v4025 = vcvt.s32.f32 %v4023
    %4026 = vadd.xlane.f32.xlu0 %v4024
    %v4027 = vpop.xlane.xlu0 %4026
    %4028 = vadd.xlane.f32.xlu0 %v4025
    %v4029 = vpop.xlane.xlu0 %4028
    %v4030 = vcvt.f32.s32 %v4027
    %v4031 = vcvt.f32.s32 %v4029
    %v4032 = vshll.u32 %v4031, 16
    %v4033 = vadd.s32 %v4032, %v4030
    %vm4034 = vcmp.ge.s32.totalorder %v3994, 5
    %vm4035 = vcmp.ge.s32.totalorder %v4007, 5
    %vm4036 = vcmp.ge.s32.totalorder %v4020, 5
    %vm4037 = vcmp.ge.s32.totalorder %v4033, 5
    %v4038 = vsel %vm4034, %v3970, %v3966
    %v4039 = vsel %vm4035, %v3971, %v3967
    %v4040 = vsel %vm4036, %v3972, %v3968
    %v4041 = vsel %vm4037, %v3973, %v3969
    %v4042 = vor.u32 %v4038, 2048
    %v4043 = vor.u32 %v4039, 2048
    %v4044 = vor.u32 %v4040, 2048
    %v4045 = vor.u32 %v4041, 2048
    %vm4046 = vcmp.ge.s32.totalorder %v2601, %v4042
    %vm4047 = vcmp.ge.s32.totalorder %v2602, %v4043
    %vm4048 = vcmp.ge.s32.totalorder %v2603, %v4044
    %vm4049 = vcmp.ge.s32.totalorder %v2604, %v4045
    %v4050 = vsel %vm4046, 1, 0
    %v4051 = vsel %vm4047, 1, 0
    %v4052 = vsel %vm4048, 1, 0
    %v4053 = vsel %vm4049, 1, 0
    %v4054 = vsel %vm2613, %v4050, 0
    %v4055 = vand.u32 %v4054, 65535
    %v4056 = vshrl.u32 %v4054, 16
    %v4057 = vcvt.s32.f32 %v4055
    %v4058 = vcvt.s32.f32 %v4056
    %4059 = vadd.xlane.f32.xlu0 %v4057
    %v4060 = vpop.xlane.xlu0 %4059
    %4061 = vadd.xlane.f32.xlu0 %v4058
    %v4062 = vpop.xlane.xlu0 %4061
    %v4063 = vcvt.f32.s32 %v4060
    %v4064 = vcvt.f32.s32 %v4062
    %v4065 = vshll.u32 %v4064, 16
    %v4066 = vadd.s32 %v4065, %v4063
    %v4067 = vsel %vm2613, %v4051, 0
    %v4068 = vand.u32 %v4067, 65535
    %v4069 = vshrl.u32 %v4067, 16
    %v4070 = vcvt.s32.f32 %v4068
    %v4071 = vcvt.s32.f32 %v4069
    %4072 = vadd.xlane.f32.xlu0 %v4070
    %v4073 = vpop.xlane.xlu0 %4072
    %4074 = vadd.xlane.f32.xlu0 %v4071
    %v4075 = vpop.xlane.xlu0 %4074
    %v4076 = vcvt.f32.s32 %v4073
    %v4077 = vcvt.f32.s32 %v4075
    %v4078 = vshll.u32 %v4077, 16
    %v4079 = vadd.s32 %v4078, %v4076
    %v4080 = vsel %vm2613, %v4052, 0
    %v4081 = vand.u32 %v4080, 65535
    %v4082 = vshrl.u32 %v4080, 16
    %v4083 = vcvt.s32.f32 %v4081
    %v4084 = vcvt.s32.f32 %v4082
    %4085 = vadd.xlane.f32.xlu0 %v4083
    %v4086 = vpop.xlane.xlu0 %4085
    %4087 = vadd.xlane.f32.xlu0 %v4084
    %v4088 = vpop.xlane.xlu0 %4087
    %v4089 = vcvt.f32.s32 %v4086
    %v4090 = vcvt.f32.s32 %v4088
    %v4091 = vshll.u32 %v4090, 16
    %v4092 = vadd.s32 %v4091, %v4089
    %v4093 = vsel %vm2613, %v4053, 0
    %v4094 = vand.u32 %v4093, 65535
    %v4095 = vshrl.u32 %v4093, 16
    %v4096 = vcvt.s32.f32 %v4094
    %v4097 = vcvt.s32.f32 %v4095
    %4098 = vadd.xlane.f32.xlu0 %v4096
    %v4099 = vpop.xlane.xlu0 %4098
    %4100 = vadd.xlane.f32.xlu0 %v4097
    %v4101 = vpop.xlane.xlu0 %4100
    %v4102 = vcvt.f32.s32 %v4099
    %v4103 = vcvt.f32.s32 %v4101
    %v4104 = vshll.u32 %v4103, 16
    %v4105 = vadd.s32 %v4104, %v4102
    %vm4106 = vcmp.ge.s32.totalorder %v4066, 5
    %vm4107 = vcmp.ge.s32.totalorder %v4079, 5
    %vm4108 = vcmp.ge.s32.totalorder %v4092, 5
    %vm4109 = vcmp.ge.s32.totalorder %v4105, 5
    %v4110 = vsel %vm4106, %v4042, %v4038
    %v4111 = vsel %vm4107, %v4043, %v4039
    %v4112 = vsel %vm4108, %v4044, %v4040
    %v4113 = vsel %vm4109, %v4045, %v4041
    %v4114 = vor.u32 %v4110, 1024
    %v4115 = vor.u32 %v4111, 1024
    %v4116 = vor.u32 %v4112, 1024
    %v4117 = vor.u32 %v4113, 1024
    %vm4118 = vcmp.ge.s32.totalorder %v2601, %v4114
    %vm4119 = vcmp.ge.s32.totalorder %v2602, %v4115
    %vm4120 = vcmp.ge.s32.totalorder %v2603, %v4116
    %vm4121 = vcmp.ge.s32.totalorder %v2604, %v4117
    %v4122 = vsel %vm4118, 1, 0
    %v4123 = vsel %vm4119, 1, 0
    %v4124 = vsel %vm4120, 1, 0
    %v4125 = vsel %vm4121, 1, 0
    %v4126 = vsel %vm2613, %v4122, 0
    %v4127 = vand.u32 %v4126, 65535
    %v4128 = vshrl.u32 %v4126, 16
    %v4129 = vcvt.s32.f32 %v4127
    %v4130 = vcvt.s32.f32 %v4128
    %4131 = vadd.xlane.f32.xlu0 %v4129
    %v4132 = vpop.xlane.xlu0 %4131
    %4133 = vadd.xlane.f32.xlu0 %v4130
    %v4134 = vpop.xlane.xlu0 %4133
    %v4135 = vcvt.f32.s32 %v4132
    %v4136 = vcvt.f32.s32 %v4134
    %v4137 = vshll.u32 %v4136, 16
    %v4138 = vadd.s32 %v4137, %v4135
    %v4139 = vsel %vm2613, %v4123, 0
    %v4140 = vand.u32 %v4139, 65535
    %v4141 = vshrl.u32 %v4139, 16
    %v4142 = vcvt.s32.f32 %v4140
    %v4143 = vcvt.s32.f32 %v4141
    %4144 = vadd.xlane.f32.xlu0 %v4142
    %v4145 = vpop.xlane.xlu0 %4144
    %4146 = vadd.xlane.f32.xlu0 %v4143
    %v4147 = vpop.xlane.xlu0 %4146
    %v4148 = vcvt.f32.s32 %v4145
    %v4149 = vcvt.f32.s32 %v4147
    %v4150 = vshll.u32 %v4149, 16
    %v4151 = vadd.s32 %v4150, %v4148
    %v4152 = vsel %vm2613, %v4124, 0
    %v4153 = vand.u32 %v4152, 65535
    %v4154 = vshrl.u32 %v4152, 16
    %v4155 = vcvt.s32.f32 %v4153
    %v4156 = vcvt.s32.f32 %v4154
    %4157 = vadd.xlane.f32.xlu0 %v4155
    %v4158 = vpop.xlane.xlu0 %4157
    %4159 = vadd.xlane.f32.xlu0 %v4156
    %v4160 = vpop.xlane.xlu0 %4159
    %v4161 = vcvt.f32.s32 %v4158
    %v4162 = vcvt.f32.s32 %v4160
    %v4163 = vshll.u32 %v4162, 16
    %v4164 = vadd.s32 %v4163, %v4161
    %v4165 = vsel %vm2613, %v4125, 0
    %v4166 = vand.u32 %v4165, 65535
    %v4167 = vshrl.u32 %v4165, 16
    %v4168 = vcvt.s32.f32 %v4166
    %v4169 = vcvt.s32.f32 %v4167
    %4170 = vadd.xlane.f32.xlu0 %v4168
    %v4171 = vpop.xlane.xlu0 %4170
    %4172 = vadd.xlane.f32.xlu0 %v4169
    %v4173 = vpop.xlane.xlu0 %4172
    %v4174 = vcvt.f32.s32 %v4171
    %v4175 = vcvt.f32.s32 %v4173
    %v4176 = vshll.u32 %v4175, 16
    %v4177 = vadd.s32 %v4176, %v4174
    %vm4178 = vcmp.ge.s32.totalorder %v4138, 5
    %vm4179 = vcmp.ge.s32.totalorder %v4151, 5
    %vm4180 = vcmp.ge.s32.totalorder %v4164, 5
    %vm4181 = vcmp.ge.s32.totalorder %v4177, 5
    %v4182 = vsel %vm4178, %v4114, %v4110
    %v4183 = vsel %vm4179, %v4115, %v4111
    %v4184 = vsel %vm4180, %v4116, %v4112
    %v4185 = vsel %vm4181, %v4117, %v4113
    %v4186 = vor.u32 %v4182, 512
    %v4187 = vor.u32 %v4183, 512
    %v4188 = vor.u32 %v4184, 512
    %v4189 = vor.u32 %v4185, 512
    %vm4190 = vcmp.ge.s32.totalorder %v2601, %v4186
    %vm4191 = vcmp.ge.s32.totalorder %v2602, %v4187
    %vm4192 = vcmp.ge.s32.totalorder %v2603, %v4188
    %vm4193 = vcmp.ge.s32.totalorder %v2604, %v4189
    %v4194 = vsel %vm4190, 1, 0
    %v4195 = vsel %vm4191, 1, 0
    %v4196 = vsel %vm4192, 1, 0
    %v4197 = vsel %vm4193, 1, 0
    %v4198 = vsel %vm2613, %v4194, 0
    %v4199 = vand.u32 %v4198, 65535
    %v4200 = vshrl.u32 %v4198, 16
    %v4201 = vcvt.s32.f32 %v4199
    %v4202 = vcvt.s32.f32 %v4200
    %4203 = vadd.xlane.f32.xlu0 %v4201
    %v4204 = vpop.xlane.xlu0 %4203
    %4205 = vadd.xlane.f32.xlu0 %v4202
    %v4206 = vpop.xlane.xlu0 %4205
    %v4207 = vcvt.f32.s32 %v4204
    %v4208 = vcvt.f32.s32 %v4206
    %v4209 = vshll.u32 %v4208, 16
    %v4210 = vadd.s32 %v4209, %v4207
    %v4211 = vsel %vm2613, %v4195, 0
    %v4212 = vand.u32 %v4211, 65535
    %v4213 = vshrl.u32 %v4211, 16
    %v4214 = vcvt.s32.f32 %v4212
    %v4215 = vcvt.s32.f32 %v4213
    %4216 = vadd.xlane.f32.xlu0 %v4214
    %v4217 = vpop.xlane.xlu0 %4216
    %4218 = vadd.xlane.f32.xlu0 %v4215
    %v4219 = vpop.xlane.xlu0 %4218
    %v4220 = vcvt.f32.s32 %v4217
    %v4221 = vcvt.f32.s32 %v4219
    %v4222 = vshll.u32 %v4221, 16
    %v4223 = vadd.s32 %v4222, %v4220
    %v4224 = vsel %vm2613, %v4196, 0
    %v4225 = vand.u32 %v4224, 65535
    %v4226 = vshrl.u32 %v4224, 16
    %v4227 = vcvt.s32.f32 %v4225
    %v4228 = vcvt.s32.f32 %v4226
    %4229 = vadd.xlane.f32.xlu0 %v4227
    %v4230 = vpop.xlane.xlu0 %4229
    %4231 = vadd.xlane.f32.xlu0 %v4228
    %v4232 = vpop.xlane.xlu0 %4231
    %v4233 = vcvt.f32.s32 %v4230
    %v4234 = vcvt.f32.s32 %v4232
    %v4235 = vshll.u32 %v4234, 16
    %v4236 = vadd.s32 %v4235, %v4233
    %v4237 = vsel %vm2613, %v4197, 0
    %v4238 = vand.u32 %v4237, 65535
    %v4239 = vshrl.u32 %v4237, 16
    %v4240 = vcvt.s32.f32 %v4238
    %v4241 = vcvt.s32.f32 %v4239
    %4242 = vadd.xlane.f32.xlu0 %v4240
    %v4243 = vpop.xlane.xlu0 %4242
    %4244 = vadd.xlane.f32.xlu0 %v4241
    %v4245 = vpop.xlane.xlu0 %4244
    %v4246 = vcvt.f32.s32 %v4243
    %v4247 = vcvt.f32.s32 %v4245
    %v4248 = vshll.u32 %v4247, 16
    %v4249 = vadd.s32 %v4248, %v4246
    %vm4250 = vcmp.ge.s32.totalorder %v4210, 5
    %vm4251 = vcmp.ge.s32.totalorder %v4223, 5
    %vm4252 = vcmp.ge.s32.totalorder %v4236, 5
    %vm4253 = vcmp.ge.s32.totalorder %v4249, 5
    %v4254 = vsel %vm4250, %v4186, %v4182
    %v4255 = vsel %vm4251, %v4187, %v4183
    %v4256 = vsel %vm4252, %v4188, %v4184
    %v4257 = vsel %vm4253, %v4189, %v4185
    %v4258 = vor.u32 %v4254, 256
    %v4259 = vor.u32 %v4255, 256
    %v4260 = vor.u32 %v4256, 256
    %v4261 = vor.u32 %v4257, 256
    %vm4262 = vcmp.ge.s32.totalorder %v2601, %v4258
    %vm4263 = vcmp.ge.s32.totalorder %v2602, %v4259
    %vm4264 = vcmp.ge.s32.totalorder %v2603, %v4260
    %vm4265 = vcmp.ge.s32.totalorder %v2604, %v4261
    %v4266 = vsel %vm4262, 1, 0
    %v4267 = vsel %vm4263, 1, 0
    %v4268 = vsel %vm4264, 1, 0
    %v4269 = vsel %vm4265, 1, 0
    %v4270 = vsel %vm2613, %v4266, 0
    %v4271 = vand.u32 %v4270, 65535
    %v4272 = vshrl.u32 %v4270, 16
    %v4273 = vcvt.s32.f32 %v4271
    %v4274 = vcvt.s32.f32 %v4272
    %4275 = vadd.xlane.f32.xlu0 %v4273
    %v4276 = vpop.xlane.xlu0 %4275
    %4277 = vadd.xlane.f32.xlu0 %v4274
    %v4278 = vpop.xlane.xlu0 %4277
    %v4279 = vcvt.f32.s32 %v4276
    %v4280 = vcvt.f32.s32 %v4278
    %v4281 = vshll.u32 %v4280, 16
    %v4282 = vadd.s32 %v4281, %v4279
    %v4283 = vsel %vm2613, %v4267, 0
    %v4284 = vand.u32 %v4283, 65535
    %v4285 = vshrl.u32 %v4283, 16
    %v4286 = vcvt.s32.f32 %v4284
    %v4287 = vcvt.s32.f32 %v4285
    %4288 = vadd.xlane.f32.xlu0 %v4286
    %v4289 = vpop.xlane.xlu0 %4288
    %4290 = vadd.xlane.f32.xlu0 %v4287
    %v4291 = vpop.xlane.xlu0 %4290
    %v4292 = vcvt.f32.s32 %v4289
    %v4293 = vcvt.f32.s32 %v4291
    %v4294 = vshll.u32 %v4293, 16
    %v4295 = vadd.s32 %v4294, %v4292
    %v4296 = vsel %vm2613, %v4268, 0
    %v4297 = vand.u32 %v4296, 65535
    %v4298 = vshrl.u32 %v4296, 16
    %v4299 = vcvt.s32.f32 %v4297
    %v4300 = vcvt.s32.f32 %v4298
    %4301 = vadd.xlane.f32.xlu0 %v4299
    %v4302 = vpop.xlane.xlu0 %4301
    %4303 = vadd.xlane.f32.xlu0 %v4300
    %v4304 = vpop.xlane.xlu0 %4303
    %v4305 = vcvt.f32.s32 %v4302
    %v4306 = vcvt.f32.s32 %v4304
    %v4307 = vshll.u32 %v4306, 16
    %v4308 = vadd.s32 %v4307, %v4305
    %v4309 = vsel %vm2613, %v4269, 0
    %v4310 = vand.u32 %v4309, 65535
    %v4311 = vshrl.u32 %v4309, 16
    %v4312 = vcvt.s32.f32 %v4310
    %v4313 = vcvt.s32.f32 %v4311
    %4314 = vadd.xlane.f32.xlu0 %v4312
    %v4315 = vpop.xlane.xlu0 %4314
    %4316 = vadd.xlane.f32.xlu0 %v4313
    %v4317 = vpop.xlane.xlu0 %4316
    %v4318 = vcvt.f32.s32 %v4315
    %v4319 = vcvt.f32.s32 %v4317
    %v4320 = vshll.u32 %v4319, 16
    %v4321 = vadd.s32 %v4320, %v4318
    %vm4322 = vcmp.ge.s32.totalorder %v4282, 5
    %vm4323 = vcmp.ge.s32.totalorder %v4295, 5
    %vm4324 = vcmp.ge.s32.totalorder %v4308, 5
    %vm4325 = vcmp.ge.s32.totalorder %v4321, 5
    %v4326 = vsel %vm4322, %v4258, %v4254
    %v4327 = vsel %vm4323, %v4259, %v4255
    %v4328 = vsel %vm4324, %v4260, %v4256
    %v4329 = vsel %vm4325, %v4261, %v4257
    %v4330 = vor.u32 %v4326, 128
    %v4331 = vor.u32 %v4327, 128
    %v4332 = vor.u32 %v4328, 128
    %v4333 = vor.u32 %v4329, 128
    %vm4334 = vcmp.ge.s32.totalorder %v2601, %v4330
    %vm4335 = vcmp.ge.s32.totalorder %v2602, %v4331
    %vm4336 = vcmp.ge.s32.totalorder %v2603, %v4332
    %vm4337 = vcmp.ge.s32.totalorder %v2604, %v4333
    %v4338 = vsel %vm4334, 1, 0
    %v4339 = vsel %vm4335, 1, 0
    %v4340 = vsel %vm4336, 1, 0
    %v4341 = vsel %vm4337, 1, 0
    %v4342 = vsel %vm2613, %v4338, 0
    %v4343 = vand.u32 %v4342, 65535
    %v4344 = vshrl.u32 %v4342, 16
    %v4345 = vcvt.s32.f32 %v4343
    %v4346 = vcvt.s32.f32 %v4344
    %4347 = vadd.xlane.f32.xlu0 %v4345
    %v4348 = vpop.xlane.xlu0 %4347
    %4349 = vadd.xlane.f32.xlu0 %v4346
    %v4350 = vpop.xlane.xlu0 %4349
    %v4351 = vcvt.f32.s32 %v4348
    %v4352 = vcvt.f32.s32 %v4350
    %v4353 = vshll.u32 %v4352, 16
    %v4354 = vadd.s32 %v4353, %v4351
    %v4355 = vsel %vm2613, %v4339, 0
    %v4356 = vand.u32 %v4355, 65535
    %v4357 = vshrl.u32 %v4355, 16
    %v4358 = vcvt.s32.f32 %v4356
    %v4359 = vcvt.s32.f32 %v4357
    %4360 = vadd.xlane.f32.xlu0 %v4358
    %v4361 = vpop.xlane.xlu0 %4360
    %4362 = vadd.xlane.f32.xlu0 %v4359
    %v4363 = vpop.xlane.xlu0 %4362
    %v4364 = vcvt.f32.s32 %v4361
    %v4365 = vcvt.f32.s32 %v4363
    %v4366 = vshll.u32 %v4365, 16
    %v4367 = vadd.s32 %v4366, %v4364
    %v4368 = vsel %vm2613, %v4340, 0
    %v4369 = vand.u32 %v4368, 65535
    %v4370 = vshrl.u32 %v4368, 16
    %v4371 = vcvt.s32.f32 %v4369
    %v4372 = vcvt.s32.f32 %v4370
    %4373 = vadd.xlane.f32.xlu0 %v4371
    %v4374 = vpop.xlane.xlu0 %4373
    %4375 = vadd.xlane.f32.xlu0 %v4372
    %v4376 = vpop.xlane.xlu0 %4375
    %v4377 = vcvt.f32.s32 %v4374
    %v4378 = vcvt.f32.s32 %v4376
    %v4379 = vshll.u32 %v4378, 16
    %v4380 = vadd.s32 %v4379, %v4377
    %v4381 = vsel %vm2613, %v4341, 0
    %v4382 = vand.u32 %v4381, 65535
    %v4383 = vshrl.u32 %v4381, 16
    %v4384 = vcvt.s32.f32 %v4382
    %v4385 = vcvt.s32.f32 %v4383
    %4386 = vadd.xlane.f32.xlu0 %v4384
    %v4387 = vpop.xlane.xlu0 %4386
    %4388 = vadd.xlane.f32.xlu0 %v4385
    %v4389 = vpop.xlane.xlu0 %4388
    %v4390 = vcvt.f32.s32 %v4387
    %v4391 = vcvt.f32.s32 %v4389
    %v4392 = vshll.u32 %v4391, 16
    %v4393 = vadd.s32 %v4392, %v4390
    %vm4394 = vcmp.ge.s32.totalorder %v4354, 5
    %vm4395 = vcmp.ge.s32.totalorder %v4367, 5
    %vm4396 = vcmp.ge.s32.totalorder %v4380, 5
    %vm4397 = vcmp.ge.s32.totalorder %v4393, 5
    %v4398 = vsel %vm4394, %v4330, %v4326
    %v4399 = vsel %vm4395, %v4331, %v4327
    %v4400 = vsel %vm4396, %v4332, %v4328
    %v4401 = vsel %vm4397, %v4333, %v4329
    %v4402 = vor.u32 %v4398, 64
    %v4403 = vor.u32 %v4399, 64
    %v4404 = vor.u32 %v4400, 64
    %v4405 = vor.u32 %v4401, 64
    %vm4406 = vcmp.ge.s32.totalorder %v2601, %v4402
    %vm4407 = vcmp.ge.s32.totalorder %v2602, %v4403
    %vm4408 = vcmp.ge.s32.totalorder %v2603, %v4404
    %vm4409 = vcmp.ge.s32.totalorder %v2604, %v4405
    %v4410 = vsel %vm4406, 1, 0
    %v4411 = vsel %vm4407, 1, 0
    %v4412 = vsel %vm4408, 1, 0
    %v4413 = vsel %vm4409, 1, 0
    %v4414 = vsel %vm2613, %v4410, 0
    %v4415 = vand.u32 %v4414, 65535
    %v4416 = vshrl.u32 %v4414, 16
    %v4417 = vcvt.s32.f32 %v4415
    %v4418 = vcvt.s32.f32 %v4416
    %4419 = vadd.xlane.f32.xlu0 %v4417
    %v4420 = vpop.xlane.xlu0 %4419
    %4421 = vadd.xlane.f32.xlu0 %v4418
    %v4422 = vpop.xlane.xlu0 %4421
    %v4423 = vcvt.f32.s32 %v4420
    %v4424 = vcvt.f32.s32 %v4422
    %v4425 = vshll.u32 %v4424, 16
    %v4426 = vadd.s32 %v4425, %v4423
    %v4427 = vsel %vm2613, %v4411, 0
    %v4428 = vand.u32 %v4427, 65535
    %v4429 = vshrl.u32 %v4427, 16
    %v4430 = vcvt.s32.f32 %v4428
    %v4431 = vcvt.s32.f32 %v4429
    %4432 = vadd.xlane.f32.xlu0 %v4430
    %v4433 = vpop.xlane.xlu0 %4432
    %4434 = vadd.xlane.f32.xlu0 %v4431
    %v4435 = vpop.xlane.xlu0 %4434
    %v4436 = vcvt.f32.s32 %v4433
    %v4437 = vcvt.f32.s32 %v4435
    %v4438 = vshll.u32 %v4437, 16
    %v4439 = vadd.s32 %v4438, %v4436
    %v4440 = vsel %vm2613, %v4412, 0
    %v4441 = vand.u32 %v4440, 65535
    %v4442 = vshrl.u32 %v4440, 16
    %v4443 = vcvt.s32.f32 %v4441
    %v4444 = vcvt.s32.f32 %v4442
    %4445 = vadd.xlane.f32.xlu0 %v4443
    %v4446 = vpop.xlane.xlu0 %4445
    %4447 = vadd.xlane.f32.xlu0 %v4444
    %v4448 = vpop.xlane.xlu0 %4447
    %v4449 = vcvt.f32.s32 %v4446
    %v4450 = vcvt.f32.s32 %v4448
    %v4451 = vshll.u32 %v4450, 16
    %v4452 = vadd.s32 %v4451, %v4449
    %v4453 = vsel %vm2613, %v4413, 0
    %v4454 = vand.u32 %v4453, 65535
    %v4455 = vshrl.u32 %v4453, 16
    %v4456 = vcvt.s32.f32 %v4454
    %v4457 = vcvt.s32.f32 %v4455
    %4458 = vadd.xlane.f32.xlu0 %v4456
    %v4459 = vpop.xlane.xlu0 %4458
    %4460 = vadd.xlane.f32.xlu0 %v4457
    %v4461 = vpop.xlane.xlu0 %4460
    %v4462 = vcvt.f32.s32 %v4459
    %v4463 = vcvt.f32.s32 %v4461
    %v4464 = vshll.u32 %v4463, 16
    %v4465 = vadd.s32 %v4464, %v4462
    %vm4466 = vcmp.ge.s32.totalorder %v4426, 5
    %vm4467 = vcmp.ge.s32.totalorder %v4439, 5
    %vm4468 = vcmp.ge.s32.totalorder %v4452, 5
    %vm4469 = vcmp.ge.s32.totalorder %v4465, 5
    %v4470 = vsel %vm4466, %v4402, %v4398
    %v4471 = vsel %vm4467, %v4403, %v4399
    %v4472 = vsel %vm4468, %v4404, %v4400
    %v4473 = vsel %vm4469, %v4405, %v4401
    %v4474 = vor.u32 %v4470, 32
    %v4475 = vor.u32 %v4471, 32
    %v4476 = vor.u32 %v4472, 32
    %v4477 = vor.u32 %v4473, 32
    %vm4478 = vcmp.ge.s32.totalorder %v2601, %v4474
    %vm4479 = vcmp.ge.s32.totalorder %v2602, %v4475
    %vm4480 = vcmp.ge.s32.totalorder %v2603, %v4476
    %vm4481 = vcmp.ge.s32.totalorder %v2604, %v4477
    %v4482 = vsel %vm4478, 1, 0
    %v4483 = vsel %vm4479, 1, 0
    %v4484 = vsel %vm4480, 1, 0
    %v4485 = vsel %vm4481, 1, 0
    %v4486 = vsel %vm2613, %v4482, 0
    %v4487 = vand.u32 %v4486, 65535
    %v4488 = vshrl.u32 %v4486, 16
    %v4489 = vcvt.s32.f32 %v4487
    %v4490 = vcvt.s32.f32 %v4488
    %4491 = vadd.xlane.f32.xlu0 %v4489
    %v4492 = vpop.xlane.xlu0 %4491
    %4493 = vadd.xlane.f32.xlu0 %v4490
    %v4494 = vpop.xlane.xlu0 %4493
    %v4495 = vcvt.f32.s32 %v4492
    %v4496 = vcvt.f32.s32 %v4494
    %v4497 = vshll.u32 %v4496, 16
    %v4498 = vadd.s32 %v4497, %v4495
    %v4499 = vsel %vm2613, %v4483, 0
    %v4500 = vand.u32 %v4499, 65535
    %v4501 = vshrl.u32 %v4499, 16
    %v4502 = vcvt.s32.f32 %v4500
    %v4503 = vcvt.s32.f32 %v4501
    %4504 = vadd.xlane.f32.xlu0 %v4502
    %v4505 = vpop.xlane.xlu0 %4504
    %4506 = vadd.xlane.f32.xlu0 %v4503
    %v4507 = vpop.xlane.xlu0 %4506
    %v4508 = vcvt.f32.s32 %v4505
    %v4509 = vcvt.f32.s32 %v4507
    %v4510 = vshll.u32 %v4509, 16
    %v4511 = vadd.s32 %v4510, %v4508
    %v4512 = vsel %vm2613, %v4484, 0
    %v4513 = vand.u32 %v4512, 65535
    %v4514 = vshrl.u32 %v4512, 16
    %v4515 = vcvt.s32.f32 %v4513
    %v4516 = vcvt.s32.f32 %v4514
    %4517 = vadd.xlane.f32.xlu0 %v4515
    %v4518 = vpop.xlane.xlu0 %4517
    %4519 = vadd.xlane.f32.xlu0 %v4516
    %v4520 = vpop.xlane.xlu0 %4519
    %v4521 = vcvt.f32.s32 %v4518
    %v4522 = vcvt.f32.s32 %v4520
    %v4523 = vshll.u32 %v4522, 16
    %v4524 = vadd.s32 %v4523, %v4521
    %v4525 = vsel %vm2613, %v4485, 0
    %v4526 = vand.u32 %v4525, 65535
    %v4527 = vshrl.u32 %v4525, 16
    %v4528 = vcvt.s32.f32 %v4526
    %v4529 = vcvt.s32.f32 %v4527
    %4530 = vadd.xlane.f32.xlu0 %v4528
    %v4531 = vpop.xlane.xlu0 %4530
    %4532 = vadd.xlane.f32.xlu0 %v4529
    %v4533 = vpop.xlane.xlu0 %4532
    %v4534 = vcvt.f32.s32 %v4531
    %v4535 = vcvt.f32.s32 %v4533
    %v4536 = vshll.u32 %v4535, 16
    %v4537 = vadd.s32 %v4536, %v4534
    %vm4538 = vcmp.ge.s32.totalorder %v4498, 5
    %vm4539 = vcmp.ge.s32.totalorder %v4511, 5
    %vm4540 = vcmp.ge.s32.totalorder %v4524, 5
    %vm4541 = vcmp.ge.s32.totalorder %v4537, 5
    %v4542 = vsel %vm4538, %v4474, %v4470
    %v4543 = vsel %vm4539, %v4475, %v4471
    %v4544 = vsel %vm4540, %v4476, %v4472
    %v4545 = vsel %vm4541, %v4477, %v4473
    %v4546 = vor.u32 %v4542, 16
    %v4547 = vor.u32 %v4543, 16
    %v4548 = vor.u32 %v4544, 16
    %v4549 = vor.u32 %v4545, 16
    %vm4550 = vcmp.ge.s32.totalorder %v2601, %v4546
    %vm4551 = vcmp.ge.s32.totalorder %v2602, %v4547
    %vm4552 = vcmp.ge.s32.totalorder %v2603, %v4548
    %vm4553 = vcmp.ge.s32.totalorder %v2604, %v4549
    %v4554 = vsel %vm4550, 1, 0
    %v4555 = vsel %vm4551, 1, 0
    %v4556 = vsel %vm4552, 1, 0
    %v4557 = vsel %vm4553, 1, 0
    %v4558 = vsel %vm2613, %v4554, 0
    %v4559 = vand.u32 %v4558, 65535
    %v4560 = vshrl.u32 %v4558, 16
    %v4561 = vcvt.s32.f32 %v4559
    %v4562 = vcvt.s32.f32 %v4560
    %4563 = vadd.xlane.f32.xlu0 %v4561
    %v4564 = vpop.xlane.xlu0 %4563
    %4565 = vadd.xlane.f32.xlu0 %v4562
    %v4566 = vpop.xlane.xlu0 %4565
    %v4567 = vcvt.f32.s32 %v4564
    %v4568 = vcvt.f32.s32 %v4566
    %v4569 = vshll.u32 %v4568, 16
    %v4570 = vadd.s32 %v4569, %v4567
    %v4571 = vsel %vm2613, %v4555, 0
    %v4572 = vand.u32 %v4571, 65535
    %v4573 = vshrl.u32 %v4571, 16
    %v4574 = vcvt.s32.f32 %v4572
    %v4575 = vcvt.s32.f32 %v4573
    %4576 = vadd.xlane.f32.xlu0 %v4574
    %v4577 = vpop.xlane.xlu0 %4576
    %4578 = vadd.xlane.f32.xlu0 %v4575
    %v4579 = vpop.xlane.xlu0 %4578
    %v4580 = vcvt.f32.s32 %v4577
    %v4581 = vcvt.f32.s32 %v4579
    %v4582 = vshll.u32 %v4581, 16
    %v4583 = vadd.s32 %v4582, %v4580
    %v4584 = vsel %vm2613, %v4556, 0
    %v4585 = vand.u32 %v4584, 65535
    %v4586 = vshrl.u32 %v4584, 16
    %v4587 = vcvt.s32.f32 %v4585
    %v4588 = vcvt.s32.f32 %v4586
    %4589 = vadd.xlane.f32.xlu0 %v4587
    %v4590 = vpop.xlane.xlu0 %4589
    %4591 = vadd.xlane.f32.xlu0 %v4588
    %v4592 = vpop.xlane.xlu0 %4591
    %v4593 = vcvt.f32.s32 %v4590
    %v4594 = vcvt.f32.s32 %v4592
    %v4595 = vshll.u32 %v4594, 16
    %v4596 = vadd.s32 %v4595, %v4593
    %v4597 = vsel %vm2613, %v4557, 0
    %v4598 = vand.u32 %v4597, 65535
    %v4599 = vshrl.u32 %v4597, 16
    %v4600 = vcvt.s32.f32 %v4598
    %v4601 = vcvt.s32.f32 %v4599
    %4602 = vadd.xlane.f32.xlu0 %v4600
    %v4603 = vpop.xlane.xlu0 %4602
    %4604 = vadd.xlane.f32.xlu0 %v4601
    %v4605 = vpop.xlane.xlu0 %4604
    %v4606 = vcvt.f32.s32 %v4603
    %v4607 = vcvt.f32.s32 %v4605
    %v4608 = vshll.u32 %v4607, 16
    %v4609 = vadd.s32 %v4608, %v4606
    %vm4610 = vcmp.ge.s32.totalorder %v4570, 5
    %vm4611 = vcmp.ge.s32.totalorder %v4583, 5
    %vm4612 = vcmp.ge.s32.totalorder %v4596, 5
    %vm4613 = vcmp.ge.s32.totalorder %v4609, 5
    %v4614 = vsel %vm4610, %v4546, %v4542
    %v4615 = vsel %vm4611, %v4547, %v4543
    %v4616 = vsel %vm4612, %v4548, %v4544
    %v4617 = vsel %vm4613, %v4549, %v4545
    %v4618 = vor.u32 %v4614, 8
    %v4619 = vor.u32 %v4615, 8
    %v4620 = vor.u32 %v4616, 8
    %v4621 = vor.u32 %v4617, 8
    %vm4622 = vcmp.ge.s32.totalorder %v2601, %v4618
    %vm4623 = vcmp.ge.s32.totalorder %v2602, %v4619
    %vm4624 = vcmp.ge.s32.totalorder %v2603, %v4620
    %vm4625 = vcmp.ge.s32.totalorder %v2604, %v4621
    %v4626 = vsel %vm4622, 1, 0
    %v4627 = vsel %vm4623, 1, 0
    %v4628 = vsel %vm4624, 1, 0
    %v4629 = vsel %vm4625, 1, 0
    %v4630 = vsel %vm2613, %v4626, 0
    %v4631 = vand.u32 %v4630, 65535
    %v4632 = vshrl.u32 %v4630, 16
    %v4633 = vcvt.s32.f32 %v4631
    %v4634 = vcvt.s32.f32 %v4632
    %4635 = vadd.xlane.f32.xlu0 %v4633
    %v4636 = vpop.xlane.xlu0 %4635
    %4637 = vadd.xlane.f32.xlu0 %v4634
    %v4638 = vpop.xlane.xlu0 %4637
    %v4639 = vcvt.f32.s32 %v4636
    %v4640 = vcvt.f32.s32 %v4638
    %v4641 = vshll.u32 %v4640, 16
    %v4642 = vadd.s32 %v4641, %v4639
    %v4643 = vsel %vm2613, %v4627, 0
    %v4644 = vand.u32 %v4643, 65535
    %v4645 = vshrl.u32 %v4643, 16
    %v4646 = vcvt.s32.f32 %v4644
    %v4647 = vcvt.s32.f32 %v4645
    %4648 = vadd.xlane.f32.xlu0 %v4646
    %v4649 = vpop.xlane.xlu0 %4648
    %4650 = vadd.xlane.f32.xlu0 %v4647
    %v4651 = vpop.xlane.xlu0 %4650
    %v4652 = vcvt.f32.s32 %v4649
    %v4653 = vcvt.f32.s32 %v4651
    %v4654 = vshll.u32 %v4653, 16
    %v4655 = vadd.s32 %v4654, %v4652
    %v4656 = vsel %vm2613, %v4628, 0
    %v4657 = vand.u32 %v4656, 65535
    %v4658 = vshrl.u32 %v4656, 16
    %v4659 = vcvt.s32.f32 %v4657
    %v4660 = vcvt.s32.f32 %v4658
    %4661 = vadd.xlane.f32.xlu0 %v4659
    %v4662 = vpop.xlane.xlu0 %4661
    %4663 = vadd.xlane.f32.xlu0 %v4660
    %v4664 = vpop.xlane.xlu0 %4663
    %v4665 = vcvt.f32.s32 %v4662
    %v4666 = vcvt.f32.s32 %v4664
    %v4667 = vshll.u32 %v4666, 16
    %v4668 = vadd.s32 %v4667, %v4665
    %v4669 = vsel %vm2613, %v4629, 0
    %v4670 = vand.u32 %v4669, 65535
    %v4671 = vshrl.u32 %v4669, 16
    %v4672 = vcvt.s32.f32 %v4670
    %v4673 = vcvt.s32.f32 %v4671
    %4674 = vadd.xlane.f32.xlu0 %v4672
    %v4675 = vpop.xlane.xlu0 %4674
    %4676 = vadd.xlane.f32.xlu0 %v4673
    %v4677 = vpop.xlane.xlu0 %4676
    %v4678 = vcvt.f32.s32 %v4675
    %v4679 = vcvt.f32.s32 %v4677
    %v4680 = vshll.u32 %v4679, 16
    %v4681 = vadd.s32 %v4680, %v4678
    %vm4682 = vcmp.ge.s32.totalorder %v4642, 5
    %vm4683 = vcmp.ge.s32.totalorder %v4655, 5
    %vm4684 = vcmp.ge.s32.totalorder %v4668, 5
    %vm4685 = vcmp.ge.s32.totalorder %v4681, 5
    %v4686 = vsel %vm4682, %v4618, %v4614
    %v4687 = vsel %vm4683, %v4619, %v4615
    %v4688 = vsel %vm4684, %v4620, %v4616
    %v4689 = vsel %vm4685, %v4621, %v4617
    %v4690 = vor.u32 %v4686, 4
    %v4691 = vor.u32 %v4687, 4
    %v4692 = vor.u32 %v4688, 4
    %v4693 = vor.u32 %v4689, 4
    %vm4694 = vcmp.ge.s32.totalorder %v2601, %v4690
    %vm4695 = vcmp.ge.s32.totalorder %v2602, %v4691
    %vm4696 = vcmp.ge.s32.totalorder %v2603, %v4692
    %vm4697 = vcmp.ge.s32.totalorder %v2604, %v4693
    %v4698 = vsel %vm4694, 1, 0
    %v4699 = vsel %vm4695, 1, 0
    %v4700 = vsel %vm4696, 1, 0
    %v4701 = vsel %vm4697, 1, 0
    %v4702 = vsel %vm2613, %v4698, 0
    %v4703 = vand.u32 %v4702, 65535
    %v4704 = vshrl.u32 %v4702, 16
    %v4705 = vcvt.s32.f32 %v4703
    %v4706 = vcvt.s32.f32 %v4704
    %4707 = vadd.xlane.f32.xlu0 %v4705
    %v4708 = vpop.xlane.xlu0 %4707
    %4709 = vadd.xlane.f32.xlu0 %v4706
    %v4710 = vpop.xlane.xlu0 %4709
    %v4711 = vcvt.f32.s32 %v4708
    %v4712 = vcvt.f32.s32 %v4710
    %v4713 = vshll.u32 %v4712, 16
    %v4714 = vadd.s32 %v4713, %v4711
    %v4715 = vsel %vm2613, %v4699, 0
    %v4716 = vand.u32 %v4715, 65535
    %v4717 = vshrl.u32 %v4715, 16
    %v4718 = vcvt.s32.f32 %v4716
    %v4719 = vcvt.s32.f32 %v4717
    %4720 = vadd.xlane.f32.xlu0 %v4718
    %v4721 = vpop.xlane.xlu0 %4720
    %4722 = vadd.xlane.f32.xlu0 %v4719
    %v4723 = vpop.xlane.xlu0 %4722
    %v4724 = vcvt.f32.s32 %v4721
    %v4725 = vcvt.f32.s32 %v4723
    %v4726 = vshll.u32 %v4725, 16
    %v4727 = vadd.s32 %v4726, %v4724
    %v4728 = vsel %vm2613, %v4700, 0
    %v4729 = vand.u32 %v4728, 65535
    %v4730 = vshrl.u32 %v4728, 16
    %v4731 = vcvt.s32.f32 %v4729
    %v4732 = vcvt.s32.f32 %v4730
    %4733 = vadd.xlane.f32.xlu0 %v4731
    %v4734 = vpop.xlane.xlu0 %4733
    %4735 = vadd.xlane.f32.xlu0 %v4732
    %v4736 = vpop.xlane.xlu0 %4735
    %v4737 = vcvt.f32.s32 %v4734
    %v4738 = vcvt.f32.s32 %v4736
    %v4739 = vshll.u32 %v4738, 16
    %v4740 = vadd.s32 %v4739, %v4737
    %v4741 = vsel %vm2613, %v4701, 0
    %v4742 = vand.u32 %v4741, 65535
    %v4743 = vshrl.u32 %v4741, 16
    %v4744 = vcvt.s32.f32 %v4742
    %v4745 = vcvt.s32.f32 %v4743
    %4746 = vadd.xlane.f32.xlu0 %v4744
    %v4747 = vpop.xlane.xlu0 %4746
    %4748 = vadd.xlane.f32.xlu0 %v4745
    %v4749 = vpop.xlane.xlu0 %4748
    %v4750 = vcvt.f32.s32 %v4747
    %v4751 = vcvt.f32.s32 %v4749
    %v4752 = vshll.u32 %v4751, 16
    %v4753 = vadd.s32 %v4752, %v4750
    %vm4754 = vcmp.ge.s32.totalorder %v4714, 5
    %vm4755 = vcmp.ge.s32.totalorder %v4727, 5
    %vm4756 = vcmp.ge.s32.totalorder %v4740, 5
    %vm4757 = vcmp.ge.s32.totalorder %v4753, 5
    %v4758 = vsel %vm4754, %v4690, %v4686
    %v4759 = vsel %vm4755, %v4691, %v4687
    %v4760 = vsel %vm4756, %v4692, %v4688
    %v4761 = vsel %vm4757, %v4693, %v4689
    %v4762 = vor.u32 %v4758, 2
    %v4763 = vor.u32 %v4759, 2
    %v4764 = vor.u32 %v4760, 2
    %v4765 = vor.u32 %v4761, 2
    %vm4766 = vcmp.ge.s32.totalorder %v2601, %v4762
    %vm4767 = vcmp.ge.s32.totalorder %v2602, %v4763
    %vm4768 = vcmp.ge.s32.totalorder %v2603, %v4764
    %vm4769 = vcmp.ge.s32.totalorder %v2604, %v4765
    %v4770 = vsel %vm4766, 1, 0
    %v4771 = vsel %vm4767, 1, 0
    %v4772 = vsel %vm4768, 1, 0
    %v4773 = vsel %vm4769, 1, 0
    %v4774 = vsel %vm2613, %v4770, 0
    %v4775 = vand.u32 %v4774, 65535
    %v4776 = vshrl.u32 %v4774, 16
    %v4777 = vcvt.s32.f32 %v4775
    %v4778 = vcvt.s32.f32 %v4776
    %4779 = vadd.xlane.f32.xlu0 %v4777
    %v4780 = vpop.xlane.xlu0 %4779
    %4781 = vadd.xlane.f32.xlu0 %v4778
    %v4782 = vpop.xlane.xlu0 %4781
    %v4783 = vcvt.f32.s32 %v4780
    %v4784 = vcvt.f32.s32 %v4782
    %v4785 = vshll.u32 %v4784, 16
    %v4786 = vadd.s32 %v4785, %v4783
    %v4787 = vsel %vm2613, %v4771, 0
    %v4788 = vand.u32 %v4787, 65535
    %v4789 = vshrl.u32 %v4787, 16
    %v4790 = vcvt.s32.f32 %v4788
    %v4791 = vcvt.s32.f32 %v4789
    %4792 = vadd.xlane.f32.xlu0 %v4790
    %v4793 = vpop.xlane.xlu0 %4792
    %4794 = vadd.xlane.f32.xlu0 %v4791
    %v4795 = vpop.xlane.xlu0 %4794
    %v4796 = vcvt.f32.s32 %v4793
    %v4797 = vcvt.f32.s32 %v4795
    %v4798 = vshll.u32 %v4797, 16
    %v4799 = vadd.s32 %v4798, %v4796
    %v4800 = vsel %vm2613, %v4772, 0
    %v4801 = vand.u32 %v4800, 65535
    %v4802 = vshrl.u32 %v4800, 16
    %v4803 = vcvt.s32.f32 %v4801
    %v4804 = vcvt.s32.f32 %v4802
    %4805 = vadd.xlane.f32.xlu0 %v4803
    %v4806 = vpop.xlane.xlu0 %4805
    %4807 = vadd.xlane.f32.xlu0 %v4804
    %v4808 = vpop.xlane.xlu0 %4807
    %v4809 = vcvt.f32.s32 %v4806
    %v4810 = vcvt.f32.s32 %v4808
    %v4811 = vshll.u32 %v4810, 16
    %v4812 = vadd.s32 %v4811, %v4809
    %v4813 = vsel %vm2613, %v4773, 0
    %v4814 = vand.u32 %v4813, 65535
    %v4815 = vshrl.u32 %v4813, 16
    %v4816 = vcvt.s32.f32 %v4814
    %v4817 = vcvt.s32.f32 %v4815
    %4818 = vadd.xlane.f32.xlu0 %v4816
    %v4819 = vpop.xlane.xlu0 %4818
    %4820 = vadd.xlane.f32.xlu0 %v4817
    %v4821 = vpop.xlane.xlu0 %4820
    %v4822 = vcvt.f32.s32 %v4819
    %v4823 = vcvt.f32.s32 %v4821
    %v4824 = vshll.u32 %v4823, 16
    %v4825 = vadd.s32 %v4824, %v4822
    %vm4826 = vcmp.ge.s32.totalorder %v4786, 5
    %vm4827 = vcmp.ge.s32.totalorder %v4799, 5
    %vm4828 = vcmp.ge.s32.totalorder %v4812, 5
    %vm4829 = vcmp.ge.s32.totalorder %v4825, 5
    %v4830 = vsel %vm4826, %v4762, %v4758
    %v4831 = vsel %vm4827, %v4763, %v4759
    %v4832 = vsel %vm4828, %v4764, %v4760
    %v4833 = vsel %vm4829, %v4765, %v4761
    %v4834 = vor.u32 %v4830, 1
    %v4835 = vor.u32 %v4831, 1
    %v4836 = vor.u32 %v4832, 1
    %v4837 = vor.u32 %v4833, 1
    %vm4838 = vcmp.ge.s32.totalorder %v2601, %v4834
    %vm4839 = vcmp.ge.s32.totalorder %v2602, %v4835
    %vm4840 = vcmp.ge.s32.totalorder %v2603, %v4836
    %vm4841 = vcmp.ge.s32.totalorder %v2604, %v4837
    %v4842 = vsel %vm4838, 1, 0
    %v4843 = vsel %vm4839, 1, 0
    %v4844 = vsel %vm4840, 1, 0
    %v4845 = vsel %vm4841, 1, 0
    %v4846 = vsel %vm2613, %v4842, 0
    %v4847 = vand.u32 %v4846, 65535
    %v4848 = vshrl.u32 %v4846, 16
    %v4849 = vcvt.s32.f32 %v4847
    %v4850 = vcvt.s32.f32 %v4848
    %4851 = vadd.xlane.f32.xlu0 %v4849
    %v4852 = vpop.xlane.xlu0 %4851
    %4853 = vadd.xlane.f32.xlu0 %v4850
    %v4854 = vpop.xlane.xlu0 %4853
    %v4855 = vcvt.f32.s32 %v4852
    %v4856 = vcvt.f32.s32 %v4854
    %v4857 = vshll.u32 %v4856, 16
    %v4858 = vadd.s32 %v4857, %v4855
    %v4859 = vsel %vm2613, %v4843, 0
    %v4860 = vand.u32 %v4859, 65535
    %v4861 = vshrl.u32 %v4859, 16
    %v4862 = vcvt.s32.f32 %v4860
    %v4863 = vcvt.s32.f32 %v4861
    %4864 = vadd.xlane.f32.xlu0 %v4862
    %v4865 = vpop.xlane.xlu0 %4864
    %4866 = vadd.xlane.f32.xlu0 %v4863
    %v4867 = vpop.xlane.xlu0 %4866
    %v4868 = vcvt.f32.s32 %v4865
    %v4869 = vcvt.f32.s32 %v4867
    %v4870 = vshll.u32 %v4869, 16
    %v4871 = vadd.s32 %v4870, %v4868
    %v4872 = vsel %vm2613, %v4844, 0
    %v4873 = vand.u32 %v4872, 65535
    %v4874 = vshrl.u32 %v4872, 16
    %v4875 = vcvt.s32.f32 %v4873
    %v4876 = vcvt.s32.f32 %v4874
    %4877 = vadd.xlane.f32.xlu0 %v4875
    %v4878 = vpop.xlane.xlu0 %4877
    %4879 = vadd.xlane.f32.xlu0 %v4876
    %v4880 = vpop.xlane.xlu0 %4879
    %v4881 = vcvt.f32.s32 %v4878
    %v4882 = vcvt.f32.s32 %v4880
    %v4883 = vshll.u32 %v4882, 16
    %v4884 = vadd.s32 %v4883, %v4881
    %v4885 = vsel %vm2613, %v4845, 0
    %v4886 = vand.u32 %v4885, 65535
    %v4887 = vshrl.u32 %v4885, 16
    %v4888 = vcvt.s32.f32 %v4886
    %v4889 = vcvt.s32.f32 %v4887
    %4890 = vadd.xlane.f32.xlu0 %v4888
    %v4891 = vpop.xlane.xlu0 %4890
    %4892 = vadd.xlane.f32.xlu0 %v4889
    %v4893 = vpop.xlane.xlu0 %4892
    %v4894 = vcvt.f32.s32 %v4891
    %v4895 = vcvt.f32.s32 %v4893
    %v4896 = vshll.u32 %v4895, 16
    %v4897 = vadd.s32 %v4896, %v4894
    %vm4898 = vcmp.ge.s32.totalorder %v4858, 5
    %vm4899 = vcmp.ge.s32.totalorder %v4871, 5
    %vm4900 = vcmp.ge.s32.totalorder %v4884, 5
    %vm4901 = vcmp.ge.s32.totalorder %v4897, 5
    %v4902 = vsel %vm4898, %v4834, %v4830
    %v4903 = vsel %vm4899, %v4835, %v4831
    %v4904 = vsel %vm4900, %v4836, %v4832
    %v4905 = vsel %vm4901, %v4837, %v4833
    %vm4906 = vcmp.ge.s32.totalorder %v2601, %v4902
    %vm4907 = vcmp.ge.s32.totalorder %v2602, %v4903
    %vm4908 = vcmp.ge.s32.totalorder %v2603, %v4904
    %vm4909 = vcmp.ge.s32.totalorder %v2604, %v4905
    %v4910 = vsel %vm4906, %v2571, 0.0
    %v4911 = vsel %vm4907, %v2576, 0.0
    %v4912 = vsel %vm4908, %v2581, 0.0
    %v4913 = vsel %vm4909, %v2586, 0.0
    %4914 = vst.msk [vmem:[%s5] sm:$0xff] %vm2613, %v4910
    %4915 = vst.msk [vmem:[%s5 + $0x8] sm:$0xff] %vm2613, %v4911
    %4916 = vst.msk [vmem:[%s5 + $0x10] sm:$0xff] %vm2613, %v4912
    %4917 = vst.msk [vmem:[%s5 + $0x18] sm:$0xff] %vm2613, %v4913
    // Predicated region
    $region26: #{tpu_custom_call.1} parent=1 // pred_check
      _
    $region27: #{tpu_custom_call.1} parent=1 // pred_check_branch
      %4919 = sbr.rel (0) target = $region29
    $region28: #{tpu_custom_call.1} parent=1 // pred_region
      _
    $region29: #{tpu_custom_call.1} parent=1 // pred_fallthru
      _
    // Predicated region
    $region30: #{tpu_custom_call.1} parent=1 // pred_check
      _
    $region31: #{tpu_custom_call.1} parent=1 // pred_check_branch
      %4921 = sbr.rel (0) target = $region33
    $region32: #{tpu_custom_call.1} parent=1 // pred_region
      _
    $region33: #{tpu_custom_call.1} parent=1 // pred_fallthru
      _
    %4922 = vsyncpa [#allocation3], 1

</llo_original>
